<compile_context>
chip_gen: v5e
topology: v5e:2x2
jax: 0.10.0
libtpu: 0.0.40
codegen_flags: <defaults>
</compile_context>

<pallas_src>
import math
import functools

import jax
import jax.numpy as jnp
from jax import lax
from jax.experimental import pallas as pl
from jax.experimental.pallas import tpu as pltpu


def _round_up(v, m):
    return ((v + m - 1) // m) * m


def _rodimus_kernel(hs_ref,
                    wfc_ref, wconv_ref, bconv_ref,
                    win_ref, wg1_ref, wg2_ref, bg2_ref,
                    wmg_ref, bmg_ref,
                    resw_ref, rmsw_ref, wout_ref,
                    y_ref,
                    st_ref, xconv_ref,
                    *, TL, C, d_inner, mp, mem_size, d_conv, num_l_tiles,
                    norm_eps, normalize_eps, exp_cap):
    f32 = jnp.float32
    bf16 = jnp.bfloat16
    l_idx = pl.program_id(1)

    # ---- init carried state at the start of every sequence -----------------
    @pl.when(l_idx == 0)
    def _():
        st_ref[...] = jnp.zeros_like(st_ref)
        xconv_ref[pl.ds(0, 8), :] = jnp.zeros((8, d_inner), f32)   # conv carry

    hs = hs_ref[...]                                               # (TL, dim)

    # ---- fc: split into x (mixer input) and g (RMSNorm gate) ----------------
    xg = jnp.dot(hs.astype(bf16), wfc_ref[...], preferred_element_type=f32)
    x = xg[:, :d_inner]                                            # (TL, Di) f32
    g = xg[:, d_inner:]

    # ---- causal depthwise conv1d + SiLU (carry in scratch, ref-sliced taps) -
    xconv_ref[pl.ds(8, TL), :] = x                                 # rows 8..8+TL
    wconv = wconv_ref[...]                                         # (d_conv, Di)
    acc = jnp.zeros((TL, d_inner), f32)
    for j in range(d_conv):
        off = 8 - (d_conv - 1) + j                                 # 5..8 for d_conv=4
        acc = acc + xconv_ref[pl.ds(off, TL), :] * wconv[j:j + 1, :]
    if num_l_tiles > 1:
        # carry the last 8 rows of x for the next sequence tile (aligned copy)
        xconv_ref[pl.ds(0, 8), :] = xconv_ref[pl.ds(TL, 8), :]
    sc = acc + bconv_ref[...]
    sc = sc * jax.nn.sigmoid(sc)                                   # SiLU
    residual = sc                                                  # fp32 residual
    sc16 = sc.astype(bf16)
    x16 = x.astype(bf16)

    # ---- in_proj -> r, k (mem dim zero-padded to mp lanes, exact) -----------
    rk = jnp.dot(sc16, win_ref[...], preferred_element_type=f32)   # (TL, 2*mp)
    r_all = rk[:, :mp]
    k_all = rk[:, mp:]

    # ---- low-rank channel gate -> u (low_rank zero-padded, exact) -----------
    lowr = jnp.dot(x16, wg1_ref[...], preferred_element_type=f32)  # (TL, lrp)
    ch_gate = jax.nn.sigmoid(
        jnp.dot(lowr.astype(bf16), wg2_ref[...], preferred_element_type=f32)
        + bg2_ref[...])
    u = ch_gate * x                                                # (TL, Di)
    u16 = u.astype(bf16)

    # ---- memory gates --------------------------------------------------------
    mem = jnp.dot(sc16, wmg_ref[...], preferred_element_type=f32) + bmg_ref[...]
    sel = jax.nn.softplus(mem[:, :mp])                             # (TL, mp) >= 0
    tau = jax.nn.sigmoid(mem[:, mp:])                              # (TL, mp)
    # sel ** tau, safe when softplus underflows to 0 (avoids log(0) -> NaN)
    it_gate = jnp.exp(tau * jnp.log(jnp.maximum(sel, 1e-24)))
    g_log_all = -sel * tau                                         # log decay <= 0

    # ---- normalize k, apply input gate ---------------------------------------
    knorm = k_all / jnp.maximum(
        jnp.sqrt(jnp.sum(k_all * k_all, axis=-1, keepdims=True)), normalize_eps)
    kq_all = knorm * it_gate
    rs_all = r_all * (1.0 / math.sqrt(mem_size))                   # scale uses true M

    # ---- GLA recurrence: sub-chunks of C rows, state carried in st_ref ------
    row = lax.broadcasted_iota(jnp.int32, (C, C), 0)
    col = lax.broadcasted_iota(jnp.int32, (C, C), 1)
    causal = row >= col
    tri = causal.astype(f32)

    St = st_ref[...]                                               # (Di, mp) f32
    o_chunks = []
    for c in range(TL // C):                                       # static unroll
        s0 = c * C                                                 # 64-aligned slices
        rs = rs_all[s0:s0 + C, :]
        kq = kq_all[s0:s0 + C, :]
        gl = g_log_all[s0:s0 + C, :]
        uc = u16[s0:s0 + C, :]

        # inclusive cumsum of log-decay (exact f32 tri matmul; tiny at C=64)
        Bc = jnp.dot(tri, gl, preferred_element_type=f32)          # (C, mp) <= 0
        b_last = Bc[C - 1:C, :]                                    # (1, mp)
        s_half = 0.5 * b_last                                      # midpoint ref (<= 0)
        e_shift = jnp.exp(s_half)                                  # (1, mp) <= 1

        # one big exp + one reciprocal cover all intra/cross decay factors.
        # symmetric clamp keeps everything finite (inf*0 NaN impossible).
        dq = jnp.exp(jnp.clip(Bc - s_half, -exp_cap, exp_cap))     # q-side decay
        dk = pl.reciprocal(dq, approx=False)                       # == exp(s_half-Bc)

        qs16 = (rs * dq).astype(bf16)
        ks16 = (kq * dk).astype(bf16)
        qdec16 = (rs * (dq * e_shift)).astype(bf16)                # ~ rs*exp(Bc)      <= |rs|
        ktail16 = (kq * (dk * e_shift)).astype(bf16)               # ~ kq*exp(b_last-Bc)

        o_inter = lax.dot_general(qdec16, St.astype(bf16),
                                  (((1,), (1,)), ((), ())),
                                  preferred_element_type=f32)      # (C, Di)
        A = lax.dot_general(qs16, ks16, (((1,), (1,)), ((), ())),
                            preferred_element_type=f32)            # (C, C)
        A = jnp.where(causal, A, 0.0)                              # non-causal inf/NaN -> 0
        o_c = o_inter + jnp.dot(A.astype(bf16), uc, preferred_element_type=f32)
        o_chunks.append(o_c)

        St = St * (e_shift * e_shift) + lax.dot_general(
            uc, ktail16, (((0,), (0,)), ((), ())),
            preferred_element_type=f32)                            # (Di, mp)
    st_ref[...] = St

    o = o_chunks[0] if len(o_chunks) == 1 else jnp.concatenate(o_chunks, axis=0)

    # ---- residual add, gated RMSNorm (norm_before_gate=False), out proj -----
    o = o + residual * resw_ref[...]
    zg = o * (g * jax.nn.sigmoid(g))
    rstd = lax.rsqrt(jnp.mean(zg * zg, axis=-1, keepdims=True) + norm_eps)
    normed = zg * rstd * rmsw_ref[...]
    y = jnp.dot(normed.astype(bf16), wout_ref[...], preferred_element_type=f32)
    y_ref[...] = y.astype(y_ref.dtype)


def _vmem_limit_bytes():
    try:
        cap = int(pltpu.get_tpu_info().vmem_capacity_bytes)
        return min((cap * 3) // 4, 110 * 1024 * 1024)
    except Exception:
        return 64 * 1024 * 1024


def rodimus_flow_forward(hidden_states, params, *, mem_size, d_conv,
                         norm_eps=1e-5, normalize_eps=1e-12,
                         seq_tile=128, gla_chunk=64, exp_cap=80.0):
    B, L, dim = hidden_states.shape
    d_inner = params["w_in"].shape[0]
    low_rank = params["w_g1"].shape[1]
    assert d_conv <= 9, "conv carry holds the previous 8 rows"
    assert seq_tile % 8 == 0

    # ---- lane padding of the memory / low-rank dims (exact: padded cols are 0)
    mp = _round_up(mem_size, 128)
    lrp = _round_up(low_rank, 128)

    def _pad_last(a, new_last):
        pad = new_last - a.shape[-1]
        return a if pad == 0 else jnp.pad(a, [(0, 0)] * (a.ndim - 1) + [(0, pad)])

    def _pad_halves(a):   # [first | second] halves each padded to mp columns
        return jnp.concatenate(
            [_pad_last(a[..., :mem_size], mp), _pad_last(a[..., mem_size:], mp)],
            axis=-1)

    padded = dict(params)
    padded["w_in"] = _pad_halves(params["w_in"])
    padded["w_mg"] = _pad_halves(params["w_mg"])
    padded["b_mg"] = _pad_halves(params["b_mg"])
    padded["w_g1"] = _pad_last(params["w_g1"], lrp)
    padded["w_g2"] = jnp.pad(params["w_g2"], ((0, lrp - low_rank), (0, 0)))

    # ---- sequence tiling: pad L to a multiple of the tile (causal -> exact) --
    TL = seq_tile
    if L < TL:
        TL = max(8, _round_up(L, 8))
    L_pad = _round_up(L, TL)
    num_l = L_pad // TL
    C = gla_chunk if TL % gla_chunk == 0 else TL
    hs = hidden_states
    if L_pad != L:
        hs = jnp.pad(hs, ((0, 0), (0, L_pad - L), (0, 0)))

    kernel = functools.partial(
        _rodimus_kernel,
        TL=TL, C=C, d_inner=d_inner, mp=mp, mem_size=mem_size, d_conv=d_conv,
        num_l_tiles=num_l, norm_eps=norm_eps, normalize_eps=normalize_eps,
        exp_cap=exp_cap)

    # Matmul weights go to the MXU in bf16 (f32 accumulation); biases, conv
    # taps, and norm/residual scales stay in f32.
    bf16_names = {"w_fc", "w_in", "w_g1", "w_g2", "w_mg", "w_out"}
    weight_names = ["w_fc", "w_conv", "b_conv", "w_in", "w_g1", "w_g2", "b_g2",
                    "w_mg", "b_mg", "res_w", "rms_w", "w_out"]
    weights = [padded[n].astype(jnp.bfloat16 if n in bf16_names else jnp.float32)
               for n in weight_names]

    out_shape = jax.ShapeDtypeStruct((B, L_pad, dim), hidden_states.dtype)

    def _call(single_buffer_weights):
        def wspec(arr):
            nd = arr.ndim
            imap = lambda b, l, _nd=nd: (0,) * _nd
            if single_buffer_weights:
                # constant index_map => one resident copy is enough (halves weight VMEM)
                return pl.BlockSpec(arr.shape, imap, pipeline_mode=pl.Buffered(1))
            return pl.BlockSpec(arr.shape, imap)

        in_specs = [pl.BlockSpec((None, TL, dim), lambda b, l: (b, l, 0))]
        in_specs += [wspec(w) for w in weights]
        out_spec = pl.BlockSpec((None, TL, dim), lambda b, l: (b, l, 0))

        fn = pl.pallas_call(
            kernel,
            out_shape=out_shape,
            grid_spec=pltpu.PrefetchScalarGridSpec(
                num_scalar_prefetch=0,
                grid=(B, num_l),
                in_specs=in_specs,
                out_specs=out_spec,
                scratch_shapes=[
                    pltpu.VMEM((d_inner, mp), jnp.float32),      # GLA state S^T
                    pltpu.VMEM((TL + 8, d_inner), jnp.float32),  # conv carry || x
                ],
            ),
            compiler_params=pltpu.CompilerParams(
                dimension_semantics=("parallel", "arbitrary"),
                vmem_limit_bytes=_vmem_limit_bytes()),
        )
        return fn(hs, *weights)

    try:
        y_full = _call(single_buffer_weights=True)
    except Exception:
        # pipeline_mode=pl.Buffered(1) not supported on this JAX version:
        # fall back to default double-buffered weights (correct, more VMEM).
        y_full = _call(single_buffer_weights=False)

    return y_full if L_pad == L else y_full[:, :L, :]


def init_params(key, dim, d_inner, mem_size, low_rank, d_conv):
    ks = jax.random.split(key, 10)

    def xavier_t(k, fan_in, fan_out):
        bound = math.sqrt(6.0 / (fan_in + fan_out))
        # stored already transposed: (fan_in, fan_out)
        return jax.random.uniform(k, (fan_in, fan_out), jnp.float32, -bound, bound)

    p = {}
    p["w_fc"] = xavier_t(ks[0], dim, 2 * d_inner)
    # depthwise conv weight stored as (d_conv, d_inner): w[j, d] == torch_w[d, 0, j]
    cb = math.sqrt(1.0 / d_conv)
    p["w_conv"] = jax.random.uniform(ks[1], (d_conv, d_inner), jnp.float32, -cb, cb)
    p["b_conv"] = jax.random.uniform(ks[2], (1, d_inner), jnp.float32, -cb, cb)
    p["w_in"] = xavier_t(ks[3], d_inner, 2 * mem_size)
    p["w_g1"] = xavier_t(ks[4], d_inner, low_rank)
    p["w_g2"] = xavier_t(ks[5], low_rank, d_inner)
    gb = math.sqrt(1.0 / low_rank)
    p["b_g2"] = jax.random.uniform(ks[6], (1, d_inner), jnp.float32, -gb, gb)
    p["w_mg"] = xavier_t(ks[7], d_inner, 2 * mem_size)

    # special mem_gate bias init (rt_bias || tau_bias), as in _init_weights
    max_, min_, init_floor = 1 - 0.9, 1 - 0.999, 1e-4
    urt = jax.random.uniform(ks[8], (mem_size,), jnp.float32)
    rt = jnp.exp(urt * (math.log(max_) - math.log(min_)) + math.log(min_))
    rt = jnp.maximum(rt, init_floor)
    rt = rt + jnp.log(-jnp.expm1(-rt))
    utau = jax.random.uniform(ks[9], (mem_size,), jnp.float32, 1.0 / 16, 0.9)
    tau = jnp.log(utau / (1.0 - utau))
    p["b_mg"] = jnp.concatenate([rt, tau], axis=0).reshape(1, 2 * mem_size)

    p["res_w"] = jnp.ones((1, d_inner), jnp.float32)
    p["rms_w"] = jnp.ones((1, d_inner), jnp.float32)
    p["w_out"] = xavier_t(jax.random.fold_in(key, 123), d_inner, dim)
    return p


if __name__ == "__main__":
    # Small shapes consistent with the module: dim=32, expand_ratio=2 -> d_inner=64
    B, L, dim = 2, 8, 32
    expand_ratio = 2
    d_inner = ((int(dim * expand_ratio) + 7) // 8) * 8     # align_multiple(., 8)
    mem_size = 64
    d_conv = 4
    low_rank = max(dim // 64, 16)                          # input_gate_low_rank='auto'

    key = jax.random.PRNGKey(0)
    kx, kp = jax.random.split(key)
    hidden_states = jax.random.normal(kx, (B, L, dim), jnp.float32)
    params = init_params(kp, dim, d_inner, mem_size, low_rank, d_conv)

    y = rodimus_flow_forward(hidden_states, params, mem_size=mem_size, d_conv=d_conv)
    y = jax.block_until_ready(y)
    assert y.shape == (B, L, dim)
    assert y.dtype == hidden_states.dtype
    assert bool(jnp.all(jnp.isfinite(y)))
    print("KERNEL_OK")
</pallas_src>

<mosaic_0001>
module attributes {stable_mosaic.version = 11 : i64} {
  func.func @_rodimus_kernel(%arg0: i32, %arg1: i32, %arg2: memref<1x8x32xf32, #tpu.memory_space<vmem>>, %arg3: memref<32x128xbf16, #tpu.memory_space<vmem>>, %arg4: memref<4x64xf32, #tpu.memory_space<vmem>>, %arg5: memref<1x64xf32, #tpu.memory_space<vmem>>, %arg6: memref<64x256xbf16, #tpu.memory_space<vmem>>, %arg7: memref<64x128xbf16, #tpu.memory_space<vmem>>, %arg8: memref<128x64xbf16, #tpu.memory_space<vmem>>, %arg9: memref<1x64xf32, #tpu.memory_space<vmem>>, %arg10: memref<64x256xbf16, #tpu.memory_space<vmem>>, %arg11: memref<1x256xf32, #tpu.memory_space<vmem>>, %arg12: memref<1x64xf32, #tpu.memory_space<vmem>>, %arg13: memref<1x64xf32, #tpu.memory_space<vmem>>, %arg14: memref<64x32xbf16, #tpu.memory_space<vmem>>, %arg15: memref<1x8x32xf32, #tpu.memory_space<vmem>>, %arg16: memref<64x128xf32, #tpu.memory_space<vmem>>, %arg17: memref<16x64xf32, #tpu.memory_space<vmem>>) attributes {dimension_semantics = [#tpu.dimension_semantics<parallel>, #tpu.dimension_semantics<arbitrary>], iteration_bounds = array<i64: 2, 1>, scalar_prefetch = 0 : i64, scratch_operands = 2 : i64, tpu.core_type = #tpu.core_type<tc>, window_params = [{transform_indices = @transform_0, window_bounds = array<i64: 1, 8, 32>}, {pipeline_mode = #tpu.pipeline_mode<synchronous>, transform_indices = @transform_1, window_bounds = array<i64: 32, 128>}, {pipeline_mode = #tpu.pipeline_mode<synchronous>, transform_indices = @transform_2, window_bounds = array<i64: 4, 64>}, {pipeline_mode = #tpu.pipeline_mode<synchronous>, transform_indices = @transform_3, window_bounds = array<i64: 1, 64>}, {pipeline_mode = #tpu.pipeline_mode<synchronous>, transform_indices = @transform_4, window_bounds = array<i64: 64, 256>}, {pipeline_mode = #tpu.pipeline_mode<synchronous>, transform_indices = @transform_5, window_bounds = array<i64: 64, 128>}, {pipeline_mode = #tpu.pipeline_mode<synchronous>, transform_indices = @transform_6, window_bounds = array<i64: 128, 64>}, {pipeline_mode = #tpu.pipeline_mode<synchronous>, transform_indices = @transform_7, window_bounds = array<i64: 1, 64>}, {pipeline_mode = #tpu.pipeline_mode<synchronous>, transform_indices = @transform_8, window_bounds = array<i64: 64, 256>}, {pipeline_mode = #tpu.pipeline_mode<synchronous>, transform_indices = @transform_9, window_bounds = array<i64: 1, 256>}, {pipeline_mode = #tpu.pipeline_mode<synchronous>, transform_indices = @transform_10, window_bounds = array<i64: 1, 64>}, {pipeline_mode = #tpu.pipeline_mode<synchronous>, transform_indices = @transform_11, window_bounds = array<i64: 1, 64>}, {pipeline_mode = #tpu.pipeline_mode<synchronous>, transform_indices = @transform_12, window_bounds = array<i64: 64, 32>}, {transform_indices = @transform_13, window_bounds = array<i64: 1, 8, 32>}]} {
    %c0_i32 = arith.constant 0 : i32
    %0 = arith.cmpi eq, %arg1, %c0_i32 : i32
    %1 = arith.extui %0 : i1 to i32
    %c0_i32_0 = arith.constant 0 : i32
    %2 = arith.cmpi ne, %1, %c0_i32_0 : i32
    scf.if %2 {
      %cst_69 = arith.constant 0.000000e+00 : f32
      %183 = vector.broadcast %cst_69 : f32 to vector<64x128xf32>
      %c0_70 = arith.constant 0 : index
      %c0_71 = arith.constant 0 : index
      %184 = vector.load %arg16[%c0_70, %c0_71] : memref<64x128xf32, #tpu.memory_space<vmem>>, vector<64x128xf32>
      tpu.vector_store %arg16[%c0_70, %c0_71], %183 {strides = array<i32>} : memref<64x128xf32, #tpu.memory_space<vmem>>, vector<64x128xf32>,
      %cst_72 = arith.constant 0.000000e+00 : f32
      %185 = vector.broadcast %cst_72 : f32 to vector<8x64xf32>
      %c0_73 = arith.constant 0 : index
      %c0_74 = arith.constant 0 : index
      %186 = vector.load %arg17[%c0_73, %c0_74] : memref<16x64xf32, #tpu.memory_space<vmem>>, vector<8x64xf32>
      tpu.vector_store %arg17[%c0_73, %c0_74], %185 {strides = array<i32>} : memref<16x64xf32, #tpu.memory_space<vmem>>, vector<8x64xf32>,
    } else {
    }
    %c0 = arith.constant 0 : index
    %c0_1 = arith.constant 0 : index
    %c0_2 = arith.constant 0 : index
    %3 = vector.load %arg2[%c0, %c0_1, %c0_2] : memref<1x8x32xf32, #tpu.memory_space<vmem>>, vector<1x8x32xf32>
    %4 = vector.shape_cast %3 : vector<1x8x32xf32> to vector<8x32xf32>
    %5 = arith.truncf %4 : vector<8x32xf32> to vector<8x32xbf16>
    %c0_3 = arith.constant 0 : index
    %c0_4 = arith.constant 0 : index
    %6 = vector.load %arg3[%c0_3, %c0_4] : memref<32x128xbf16, #tpu.memory_space<vmem>>, vector<32x128xbf16>
    %cst = arith.constant dense<0.000000e+00> : vector<8x128xf32>
    %7 = tpu.matmul %5, %6, %cst {dimension_numbers = #tpu.dot_dimension_numbers<[1], [0], [0], [1], [0, 0, 1, 1], [], []>} : vector<8x32xbf16>, vector<32x128xbf16>, vector<8x128xf32> -> vector<8x128xf32>
    %8 = vector.extract_strided_slice %7 {offsets = [0, 0], sizes = [8, 64], strides = [1, 1]} : vector<8x128xf32> to vector<8x64xf32>
    %9 = vector.extract_strided_slice %7 {offsets = [0, 64], sizes = [8, 64], strides = [1, 1]} : vector<8x128xf32> to vector<8x64xf32>
    %c8 = arith.constant 8 : index
    %c0_5 = arith.constant 0 : index
    %10 = vector.load %arg17[%c8, %c0_5] : memref<16x64xf32, #tpu.memory_space<vmem>>, vector<8x64xf32>
    tpu.vector_store %arg17[%c8, %c0_5], %8 {strides = array<i32>} : memref<16x64xf32, #tpu.memory_space<vmem>>, vector<8x64xf32>,
    %c0_6 = arith.constant 0 : index
    %c0_7 = arith.constant 0 : index
    %11 = vector.load %arg4[%c0_6, %c0_7] : memref<4x64xf32, #tpu.memory_space<vmem>>, vector<4x64xf32>
    %cst_8 = arith.constant 0.000000e+00 : f32
    %12 = vector.broadcast %cst_8 : f32 to vector<8x64xf32>
    %c5 = arith.constant 5 : index
    %c0_9 = arith.constant 0 : index
    %13 = vector.load %arg17[%c5, %c0_9] : memref<16x64xf32, #tpu.memory_space<vmem>>, vector<8x64xf32>
    %14 = vector.extract_strided_slice %11 {offsets = [0, 0], sizes = [1, 64], strides = [1, 1]} : vector<4x64xf32> to vector<1x64xf32>
    %15 = vector.broadcast %14 : vector<1x64xf32> to vector<8x64xf32>
    %16 = arith.mulf %13, %15 : vector<8x64xf32>
    %17 = arith.addf %12, %16 : vector<8x64xf32>
    %c6 = arith.constant 6 : index
    %c0_10 = arith.constant 0 : index
    %18 = vector.load %arg17[%c6, %c0_10] : memref<16x64xf32, #tpu.memory_space<vmem>>, vector<8x64xf32>
    %19 = vector.extract_strided_slice %11 {offsets = [1, 0], sizes = [1, 64], strides = [1, 1]} : vector<4x64xf32> to vector<1x64xf32>
    %20 = vector.broadcast %19 : vector<1x64xf32> to vector<8x64xf32>
    %21 = arith.mulf %18, %20 : vector<8x64xf32>
    %22 = arith.addf %17, %21 : vector<8x64xf32>
    %c7 = arith.constant 7 : index
    %c0_11 = arith.constant 0 : index
    %23 = vector.load %arg17[%c7, %c0_11] : memref<16x64xf32, #tpu.memory_space<vmem>>, vector<8x64xf32>
    %24 = vector.extract_strided_slice %11 {offsets = [2, 0], sizes = [1, 64], strides = [1, 1]} : vector<4x64xf32> to vector<1x64xf32>
    %25 = vector.broadcast %24 : vector<1x64xf32> to vector<8x64xf32>
    %26 = arith.mulf %23, %25 : vector<8x64xf32>
    %27 = arith.addf %22, %26 : vector<8x64xf32>
    %c8_12 = arith.constant 8 : index
    %c0_13 = arith.constant 0 : index
    %28 = vector.load %arg17[%c8_12, %c0_13] : memref<16x64xf32, #tpu.memory_space<vmem>>, vector<8x64xf32>
    %29 = vector.extract_strided_slice %11 {offsets = [3, 0], sizes = [1, 64], strides = [1, 1]} : vector<4x64xf32> to vector<1x64xf32>
    %30 = vector.broadcast %29 : vector<1x64xf32> to vector<8x64xf32>
    %31 = arith.mulf %28, %30 : vector<8x64xf32>
    %32 = arith.addf %27, %31 : vector<8x64xf32>
    %c0_14 = arith.constant 0 : index
    %c0_15 = arith.constant 0 : index
    %33 = vector.load %arg5[%c0_14, %c0_15] : memref<1x64xf32, #tpu.memory_space<vmem>>, vector<1x64xf32>
    %34 = vector.broadcast %33 : vector<1x64xf32> to vector<8x64xf32>
    %35 = arith.addf %32, %34 : vector<8x64xf32>
    %36 = arith.negf %35 : vector<8x64xf32>
    %37 = math.exp %36 : vector<8x64xf32>
    %cst_16 = arith.constant 1.000000e+00 : f32
    %38 = vector.broadcast %cst_16 : f32 to vector<8x64xf32>
    %39 = arith.addf %38, %37 : vector<8x64xf32>
    %40 = arith.divf %38, %39 : vector<8x64xf32>
    %41 = arith.mulf %35, %40 : vector<8x64xf32>
    %42 = arith.truncf %41 : vector<8x64xf32> to vector<8x64xbf16>
    %43 = arith.truncf %8 : vector<8x64xf32> to vector<8x64xbf16>
    %c0_17 = arith.constant 0 : index
    %c0_18 = arith.constant 0 : index
    %44 = vector.load %arg6[%c0_17, %c0_18] : memref<64x256xbf16, #tpu.memory_space<vmem>>, vector<64x256xbf16>
    %cst_19 = arith.constant dense<0.000000e+00> : vector<8x256xf32>
    %45 = tpu.matmul %42, %44, %cst_19 {dimension_numbers = #tpu.dot_dimension_numbers<[1], [0], [0], [1], [0, 0, 1, 1], [], []>} : vector<8x64xbf16>, vector<64x256xbf16>, vector<8x256xf32> -> vector<8x256xf32>
    %46 = vector.extract_strided_slice %45 {offsets = [0, 0], sizes = [8, 128], strides = [1, 1]} : vector<8x256xf32> to vector<8x128xf32>
    %47 = vector.extract_strided_slice %45 {offsets = [0, 128], sizes = [8, 128], strides = [1, 1]} : vector<8x256xf32> to vector<8x128xf32>
    %c0_20 = arith.constant 0 : index
    %c0_21 = arith.constant 0 : index
    %48 = vector.load %arg7[%c0_20, %c0_21] : memref<64x128xbf16, #tpu.memory_space<vmem>>, vector<64x128xbf16>
    %cst_22 = arith.constant dense<0.000000e+00> : vector<8x128xf32>
    %49 = tpu.matmul %43, %48, %cst_22 {dimension_numbers = #tpu.dot_dimension_numbers<[1], [0], [0], [1], [0, 0, 1, 1], [], []>} : vector<8x64xbf16>, vector<64x128xbf16>, vector<8x128xf32> -> vector<8x128xf32>
    %50 = arith.truncf %49 : vector<8x128xf32> to vector<8x128xbf16>
    %c0_23 = arith.constant 0 : index
    %c0_24 = arith.constant 0 : index
    %51 = vector.load %arg8[%c0_23, %c0_24] : memref<128x64xbf16, #tpu.memory_space<vmem>>, vector<128x64xbf16>
    %cst_25 = arith.constant dense<0.000000e+00> : vector<8x64xf32>
    %52 = tpu.matmul %50, %51, %cst_25 {dimension_numbers = #tpu.dot_dimension_numbers<[1], [0], [0], [1], [0, 0, 1, 1], [], []>} : vector<8x128xbf16>, vector<128x64xbf16>, vector<8x64xf32> -> vector<8x64xf32>
    %c0_26 = arith.constant 0 : index
    %c0_27 = arith.constant 0 : index
    %53 = vector.load %arg9[%c0_26, %c0_27] : memref<1x64xf32, #tpu.memory_space<vmem>>, vector<1x64xf32>
    %54 = vector.broadcast %53 : vector<1x64xf32> to vector<8x64xf32>
    %55 = arith.addf %52, %54 : vector<8x64xf32>
    %56 = arith.negf %55 : vector<8x64xf32>
    %57 = math.exp %56 : vector<8x64xf32>
    %cst_28 = arith.constant 1.000000e+00 : f32
    %58 = vector.broadcast %cst_28 : f32 to vector<8x64xf32>
    %59 = arith.addf %58, %57 : vector<8x64xf32>
    %60 = arith.divf %58, %59 : vector<8x64xf32>
    %61 = arith.mulf %60, %8 : vector<8x64xf32>
    %62 = arith.truncf %61 : vector<8x64xf32> to vector<8x64xbf16>
    %c0_29 = arith.constant 0 : index
    %c0_30 = arith.constant 0 : index
    %63 = vector.load %arg10[%c0_29, %c0_30] : memref<64x256xbf16, #tpu.memory_space<vmem>>, vector<64x256xbf16>
    %cst_31 = arith.constant dense<0.000000e+00> : vector<8x256xf32>
    %64 = tpu.matmul %42, %63, %cst_31 {dimension_numbers = #tpu.dot_dimension_numbers<[1], [0], [0], [1], [0, 0, 1, 1], [], []>} : vector<8x64xbf16>, vector<64x256xbf16>, vector<8x256xf32> -> vector<8x256xf32>
    %c0_32 = arith.constant 0 : index
    %c0_33 = arith.constant 0 : index
    %65 = vector.load %arg11[%c0_32, %c0_33] : memref<1x256xf32, #tpu.memory_space<vmem>>, vector<1x256xf32>
    %66 = vector.broadcast %65 : vector<1x256xf32> to vector<8x256xf32>
    %67 = arith.addf %64, %66 : vector<8x256xf32>
    %68 = vector.extract_strided_slice %67 {offsets = [0, 0], sizes = [8, 128], strides = [1, 1]} : vector<8x256xf32> to vector<8x128xf32>
    %cst_34 = arith.constant 0.000000e+00 : f32
    %69 = vector.broadcast %cst_34 : f32 to vector<8x128xf32>
    %70 = arith.maximumf %68, %69 : vector<8x128xf32>
    %71 = vector.broadcast %cst_34 : f32 to vector<8x128xf32>
    %72 = arith.subf %68, %71 : vector<8x128xf32>
    %73 = arith.cmpf one, %72, %72 : vector<8x128xf32>
    %74 = vector.broadcast %cst_34 : f32 to vector<8x128xf32>
    %75 = arith.addf %68, %74 : vector<8x128xf32>
    %76 = math.absf %72 : vector<8x128xf32>
    %cst_35 = arith.constant 0.000000e+00 : f32
    %77 = vector.broadcast %cst_35 : f32 to vector<8x128xf32>
    %78 = arith.subf %77, %76 : vector<8x128xf32>
    %79 = math.exp %78 : vector<8x128xf32>
    %80 = math.log1p %79 : vector<8x128xf32>
    %81 = arith.addf %70, %80 : vector<8x128xf32>
    %82 = arith.select %73, %75, %81 : vector<8x128xi1>, vector<8x128xf32>
    %83 = vector.extract_strided_slice %67 {offsets = [0, 128], sizes = [8, 128], strides = [1, 1]} : vector<8x256xf32> to vector<8x128xf32>
    %84 = arith.negf %83 : vector<8x128xf32>
    %85 = math.exp %84 : vector<8x128xf32>
    %cst_36 = arith.constant 1.000000e+00 : f32
    %86 = vector.broadcast %cst_36 : f32 to vector<8x128xf32>
    %87 = arith.addf %86, %85 : vector<8x128xf32>
    %88 = arith.divf %86, %87 : vector<8x128xf32>
    %cst_37 = arith.constant 1.000000e-24 : f32
    %89 = vector.broadcast %cst_37 : f32 to vector<8x128xf32>
    %90 = arith.maximumf %82, %89 : vector<8x128xf32>
    %91 = math.log %90 : vector<8x128xf32>
    %92 = arith.mulf %88, %91 : vector<8x128xf32>
    %93 = math.exp %92 : vector<8x128xf32>
    %cst_38 = arith.constant 0.000000e+00 : f32
    %94 = vector.broadcast %cst_38 : f32 to vector<8x128xf32>
    %95 = arith.subf %94, %82 : vector<8x128xf32>
    %96 = arith.mulf %95, %88 : vector<8x128xf32>
    %97 = arith.mulf %47, %47 : vector<8x128xf32>
    %cst_39 = arith.constant dense<0.000000e+00> : vector<8xf32>
    %98 = vector.multi_reduction <add>, %97, %cst_39 [1] : vector<8x128xf32> to vector<8xf32>
    %99 = vector.shape_cast %98 : vector<8xf32> to vector<8x1xf32>
    %100 = math.sqrt %99 : vector<8x1xf32>
    %cst_40 = arith.constant 9.99999996E-13 : f32
    %101 = vector.broadcast %cst_40 : f32 to vector<8x1xf32>
    %102 = arith.maximumf %100, %101 : vector<8x1xf32>
    %103 = vector.broadcast %102 : vector<8x1xf32> to vector<8x128xf32>
    %104 = arith.divf %47, %103 : vector<8x128xf32>
    %105 = arith.mulf %104, %93 : vector<8x128xf32>
    %cst_41 = arith.constant 1.250000e-01 : f32
    %106 = vector.broadcast %cst_41 : f32 to vector<8x128xf32>
    %107 = arith.mulf %46, %106 : vector<8x128xf32>
    %108 = tpu.iota {dimensions = array<i32: 0>} : vector<8x8xi32>
    %109 = tpu.iota {dimensions = array<i32: 1>} : vector<8x8xi32>
    %110 = arith.cmpi sge, %108, %109 : vector<8x8xi32>
    %111 = arith.extui %110 : vector<8x8xi1> to vector<8x8xi32>
    %112 = arith.sitofp %111 : vector<8x8xi32> to vector<8x8xf32>
    %c0_42 = arith.constant 0 : index
    %c0_43 = arith.constant 0 : index
    %113 = vector.load %arg16[%c0_42, %c0_43] : memref<64x128xf32, #tpu.memory_space<vmem>>, vector<64x128xf32>
    %cst_44 = arith.constant dense<0.000000e+00> : vector<8x128xf32>
    %114 = tpu.matmul %112, %96, %cst_44 {dimension_numbers = #tpu.dot_dimension_numbers<[1], [0], [0], [1], [0, 0, 1, 1], [], []>} : vector<8x8xf32>, vector<8x128xf32>, vector<8x128xf32> -> vector<8x128xf32>
    %115 = vector.extract_strided_slice %114 {offsets = [7, 0], sizes = [1, 128], strides = [1, 1]} : vector<8x128xf32> to vector<1x128xf32>
    %cst_45 = arith.constant 5.000000e-01 : f32
    %116 = vector.broadcast %cst_45 : f32 to vector<1x128xf32>
    %117 = arith.mulf %116, %115 : vector<1x128xf32>
    %118 = math.exp %117 : vector<1x128xf32>
    %119 = vector.broadcast %117 : vector<1x128xf32> to vector<8x128xf32>
    %120 = arith.subf %114, %119 : vector<8x128xf32>
    %cst_46 = arith.constant -8.000000e+01 : f32
    %cst_47 = arith.constant 8.000000e+01 : f32
    %121 = vector.broadcast %cst_46 : f32 to vector<8x128xf32>
    %122 = arith.maximumf %121, %120 : vector<8x128xf32>
    %123 = vector.broadcast %cst_47 : f32 to vector<8x128xf32>
    %124 = arith.minimumf %123, %122 : vector<8x128xf32>
    %125 = math.exp %124 : vector<8x128xf32>
    %126 = tpu.reciprocal %125 : vector<8x128xf32> -> vector<8x128xf32>
    %127 = arith.mulf %107, %125 : vector<8x128xf32>
    %128 = arith.truncf %127 : vector<8x128xf32> to vector<8x128xbf16>
    %129 = arith.mulf %105, %126 : vector<8x128xf32>
    %130 = arith.truncf %129 : vector<8x128xf32> to vector<8x128xbf16>
    %131 = vector.broadcast %118 : vector<1x128xf32> to vector<8x128xf32>
    %132 = arith.mulf %125, %131 : vector<8x128xf32>
    %133 = arith.mulf %107, %132 : vector<8x128xf32>
    %134 = arith.truncf %133 : vector<8x128xf32> to vector<8x128xbf16>
    %135 = vector.broadcast %118 : vector<1x128xf32> to vector<8x128xf32>
    %136 = arith.mulf %126, %135 : vector<8x128xf32>
    %137 = arith.mulf %105, %136 : vector<8x128xf32>
    %138 = arith.truncf %137 : vector<8x128xf32> to vector<8x128xbf16>
    %139 = arith.truncf %113 : vector<64x128xf32> to vector<64x128xbf16>
    %cst_48 = arith.constant dense<0.000000e+00> : vector<8x64xf32>
    %140 = tpu.matmul %134, %139, %cst_48 {dimension_numbers = #tpu.dot_dimension_numbers<[1], [1], [0], [0], [0, 0, 1, 0], [], []>} : vector<8x128xbf16>, vector<64x128xbf16>, vector<8x64xf32> -> vector<8x64xf32>
    %cst_49 = arith.constant dense<0.000000e+00> : vector<8x8xf32>
    %141 = tpu.matmul %128, %130, %cst_49 {dimension_numbers = #tpu.dot_dimension_numbers<[1], [1], [0], [0], [0, 0, 1, 0], [], []>} : vector<8x128xbf16>, vector<8x128xbf16>, vector<8x8xf32> -> vector<8x8xf32>
    %cst_50 = arith.constant 0.000000e+00 : f32
    %142 = vector.broadcast %cst_50 : f32 to vector<8x8xf32>
    %143 = arith.select %110, %141, %142 : vector<8x8xi1>, vector<8x8xf32>
    %144 = arith.truncf %143 : vector<8x8xf32> to vector<8x8xbf16>
    %cst_51 = arith.constant dense<0.000000e+00> : vector<8x64xf32>
    %145 = tpu.matmul %144, %62, %cst_51 {dimension_numbers = #tpu.dot_dimension_numbers<[1], [0], [0], [1], [0, 0, 1, 1], [], []>} : vector<8x8xbf16>, vector<8x64xbf16>, vector<8x64xf32> -> vector<8x64xf32>
    %146 = arith.addf %140, %145 : vector<8x64xf32>
    %147 = arith.mulf %118, %118 : vector<1x128xf32>
    %148 = vector.broadcast %147 : vector<1x128xf32> to vector<64x128xf32>
    %149 = arith.mulf %113, %148 : vector<64x128xf32>
    %cst_52 = arith.constant dense<0.000000e+00> : vector<64x128xf32>
    %150 = tpu.matmul %62, %138, %cst_52 {dimension_numbers = #tpu.dot_dimension_numbers<[0], [0], [1], [1], [0, 1, 1, 1], [], []>} : vector<8x64xbf16>, vector<8x128xbf16>, vector<64x128xf32> -> vector<64x128xf32>
    %151 = arith.addf %149, %150 : vector<64x128xf32>
    %c0_53 = arith.constant 0 : index
    %c0_54 = arith.constant 0 : index
    %152 = vector.load %arg16[%c0_53, %c0_54] : memref<64x128xf32, #tpu.memory_space<vmem>>, vector<64x128xf32>
    tpu.vector_store %arg16[%c0_53, %c0_54], %151 {strides = array<i32>} : memref<64x128xf32, #tpu.memory_space<vmem>>, vector<64x128xf32>,
    %c0_55 = arith.constant 0 : index
    %c0_56 = arith.constant 0 : index
    %153 = vector.load %arg12[%c0_55, %c0_56] : memref<1x64xf32, #tpu.memory_space<vmem>>, vector<1x64xf32>
    %154 = vector.broadcast %153 : vector<1x64xf32> to vector<8x64xf32>
    %155 = arith.mulf %41, %154 : vector<8x64xf32>
    %156 = arith.addf %146, %155 : vector<8x64xf32>
    %157 = arith.negf %9 : vector<8x64xf32>
    %158 = math.exp %157 : vector<8x64xf32>
    %cst_57 = arith.constant 1.000000e+00 : f32
    %159 = vector.broadcast %cst_57 : f32 to vector<8x64xf32>
    %160 = arith.addf %159, %158 : vector<8x64xf32>
    %161 = arith.divf %159, %160 : vector<8x64xf32>
    %162 = arith.mulf %9, %161 : vector<8x64xf32>
    %163 = arith.mulf %156, %162 : vector<8x64xf32>
    %164 = arith.mulf %163, %163 : vector<8x64xf32>
    %cst_58 = arith.constant dense<0.000000e+00> : vector<8xf32>
    %165 = vector.multi_reduction <add>, %164, %cst_58 [1] : vector<8x64xf32> to vector<8xf32>
    %166 = vector.shape_cast %165 : vector<8xf32> to vector<8x1xf32>
    %cst_59 = arith.constant 6.400000e+01 : f32
    %167 = vector.broadcast %cst_59 : f32 to vector<8x1xf32>
    %168 = arith.divf %166, %167 : vector<8x1xf32>
    %cst_60 = arith.constant 9.99999974E-6 : f32
    %169 = vector.broadcast %cst_60 : f32 to vector<8x1xf32>
    %170 = arith.addf %168, %169 : vector<8x1xf32>
    %171 = math.rsqrt %170 : vector<8x1xf32>
    %172 = vector.broadcast %171 : vector<8x1xf32> to vector<8x64xf32>
    %173 = arith.mulf %163, %172 : vector<8x64xf32>
    %c0_61 = arith.constant 0 : index
    %c0_62 = arith.constant 0 : index
    %174 = vector.load %arg13[%c0_61, %c0_62] : memref<1x64xf32, #tpu.memory_space<vmem>>, vector<1x64xf32>
    %175 = vector.broadcast %174 : vector<1x64xf32> to vector<8x64xf32>
    %176 = arith.mulf %173, %175 : vector<8x64xf32>
    %177 = arith.truncf %176 : vector<8x64xf32> to vector<8x64xbf16>
    %c0_63 = arith.constant 0 : index
    %c0_64 = arith.constant 0 : index
    %178 = vector.load %arg14[%c0_63, %c0_64] : memref<64x32xbf16, #tpu.memory_space<vmem>>, vector<64x32xbf16>
    %cst_65 = arith.constant dense<0.000000e+00> : vector<8x32xf32>
    %179 = tpu.matmul %177, %178, %cst_65 {dimension_numbers = #tpu.dot_dimension_numbers<[1], [0], [0], [1], [0, 0, 1, 1], [], []>} : vector<8x64xbf16>, vector<64x32xbf16>, vector<8x32xf32> -> vector<8x32xf32>
    %c0_66 = arith.constant 0 : index
    %c0_67 = arith.constant 0 : index
    %c0_68 = arith.constant 0 : index
    %180 = vector.load %arg15[%c0_66, %c0_67, %c0_68] : memref<1x8x32xf32, #tpu.memory_space<vmem>>, vector<1x8x32xf32>
    %181 = vector.shape_cast %180 : vector<1x8x32xf32> to vector<8x32xf32>
    %182 = vector.shape_cast %179 : vector<8x32xf32> to vector<1x8x32xf32>
    tpu.vector_store %arg15[%c0_66, %c0_67, %c0_68], %182 {strides = array<i32>} : memref<1x8x32xf32, #tpu.memory_space<vmem>>, vector<1x8x32xf32>,
    return
  }
  func.func @transform_0(%arg0: i32, %arg1: i32) -> (i32, i32, i32) {
    %c0_i32 = arith.constant 0 : i32
    %c0_i32_0 = arith.constant 0 : i32
    return %arg0, %arg1, %c0_i32 : i32, i32, i32
  }
  func.func @transform_1(%arg0: i32, %arg1: i32) -> (i32, i32) {
    %c0_i32 = arith.constant 0 : i32
    %c0_i32_0 = arith.constant 0 : i32
    %c0_i32_1 = arith.constant 0 : i32
    return %c0_i32, %c0_i32_0 : i32, i32
  }
  func.func @transform_2(%arg0: i32, %arg1: i32) -> (i32, i32) {
    %c0_i32 = arith.constant 0 : i32
    %c0_i32_0 = arith.constant 0 : i32
    %c0_i32_1 = arith.constant 0 : i32
    return %c0_i32, %c0_i32_0 : i32, i32
  }
  func.func @transform_3(%arg0: i32, %arg1: i32) -> (i32, i32) {
    %c0_i32 = arith.constant 0 : i32
    %c0_i32_0 = arith.constant 0 : i32
    %c0_i32_1 = arith.constant 0 : i32
    return %c0_i32, %c0_i32_0 : i32, i32
  }
  func.func @transform_4(%arg0: i32, %arg1: i32) -> (i32, i32) {
    %c0_i32 = arith.constant 0 : i32
    %c0_i32_0 = arith.constant 0 : i32
    %c0_i32_1 = arith.constant 0 : i32
    return %c0_i32, %c0_i32_0 : i32, i32
  }
  func.func @transform_5(%arg0: i32, %arg1: i32) -> (i32, i32) {
    %c0_i32 = arith.constant 0 : i32
    %c0_i32_0 = arith.constant 0 : i32
    %c0_i32_1 = arith.constant 0 : i32
    return %c0_i32, %c0_i32_0 : i32, i32
  }
  func.func @transform_6(%arg0: i32, %arg1: i32) -> (i32, i32) {
    %c0_i32 = arith.constant 0 : i32
    %c0_i32_0 = arith.constant 0 : i32
    %c0_i32_1 = arith.constant 0 : i32
    return %c0_i32, %c0_i32_0 : i32, i32
  }
  func.func @transform_7(%arg0: i32, %arg1: i32) -> (i32, i32) {
    %c0_i32 = arith.constant 0 : i32
    %c0_i32_0 = arith.constant 0 : i32
    %c0_i32_1 = arith.constant 0 : i32
    return %c0_i32, %c0_i32_0 : i32, i32
  }
  func.func @transform_8(%arg0: i32, %arg1: i32) -> (i32, i32) {
    %c0_i32 = arith.constant 0 : i32
    %c0_i32_0 = arith.constant 0 : i32
    %c0_i32_1 = arith.constant 0 : i32
    return %c0_i32, %c0_i32_0 : i32, i32
  }
  func.func @transform_9(%arg0: i32, %arg1: i32) -> (i32, i32) {
    %c0_i32 = arith.constant 0 : i32
    %c0_i32_0 = arith.constant 0 : i32
    %c0_i32_1 = arith.constant 0 : i32
    return %c0_i32, %c0_i32_0 : i32, i32
  }
  func.func @transform_10(%arg0: i32, %arg1: i32) -> (i32, i32) {
    %c0_i32 = arith.constant 0 : i32
    %c0_i32_0 = arith.constant 0 : i32
    %c0_i32_1 = arith.constant 0 : i32
    return %c0_i32, %c0_i32_0 : i32, i32
  }
  func.func @transform_11(%arg0: i32, %arg1: i32) -> (i32, i32) {
    %c0_i32 = arith.constant 0 : i32
    %c0_i32_0 = arith.constant 0 : i32
    %c0_i32_1 = arith.constant 0 : i32
    return %c0_i32, %c0_i32_0 : i32, i32
  }
  func.func @transform_12(%arg0: i32, %arg1: i32) -> (i32, i32) {
    %c0_i32 = arith.constant 0 : i32
    %c0_i32_0 = arith.constant 0 : i32
    %c0_i32_1 = arith.constant 0 : i32
    return %c0_i32, %c0_i32_0 : i32, i32
  }
  func.func @transform_13(%arg0: i32, %arg1: i32) -> (i32, i32, i32) {
    %c0_i32 = arith.constant 0 : i32
    %c0_i32_0 = arith.constant 0 : i32
    return %arg0, %arg1, %c0_i32 : i32, i32, i32
  }
}

module attributes {stable_mosaic.version = 11 : i64} {
  func.func @_rodimus_kernel(%arg0: i32, %arg1: i32, %arg2: memref<1x8x32xf32, #tpu.memory_space<vmem>>, %arg3: memref<32x128xbf16, #tpu.memory_space<vmem>>, %arg4: memref<4x64xf32, #tpu.memory_space<vmem>>, %arg5: memref<1x64xf32, #tpu.memory_space<vmem>>, %arg6: memref<64x256xbf16, #tpu.memory_space<vmem>>, %arg7: memref<64x128xbf16, #tpu.memory_space<vmem>>, %arg8: memref<128x64xbf16, #tpu.memory_space<vmem>>, %arg9: memref<1x64xf32, #tpu.memory_space<vmem>>, %arg10: memref<64x256xbf16, #tpu.memory_space<vmem>>, %arg11: memref<1x256xf32, #tpu.memory_space<vmem>>, %arg12: memref<1x64xf32, #tpu.memory_space<vmem>>, %arg13: memref<1x64xf32, #tpu.memory_space<vmem>>, %arg14: memref<64x32xbf16, #tpu.memory_space<vmem>>, %arg15: memref<1x8x32xf32, #tpu.memory_space<vmem>>, %arg16: memref<64x128xf32, #tpu.memory_space<vmem>>, %arg17: memref<16x64xf32, #tpu.memory_space<vmem>>) attributes {dimension_semantics = [#tpu.dimension_semantics<parallel>, #tpu.dimension_semantics<arbitrary>], iteration_bounds = array<i64: 2, 1>, scalar_prefetch = 0 : i64, scratch_operands = 2 : i64, tpu.core_type = #tpu.core_type<tc>, window_params = [{transform_indices = @transform_0, window_bounds = array<i64: 1, 8, 32>}, {pipeline_mode = #tpu.pipeline_mode<synchronous>, transform_indices = @transform_1, window_bounds = array<i64: 32, 128>}, {pipeline_mode = #tpu.pipeline_mode<synchronous>, transform_indices = @transform_2, window_bounds = array<i64: 4, 64>}, {pipeline_mode = #tpu.pipeline_mode<synchronous>, transform_indices = @transform_3, window_bounds = array<i64: 1, 64>}, {pipeline_mode = #tpu.pipeline_mode<synchronous>, transform_indices = @transform_4, window_bounds = array<i64: 64, 256>}, {pipeline_mode = #tpu.pipeline_mode<synchronous>, transform_indices = @transform_5, window_bounds = array<i64: 64, 128>}, {pipeline_mode = #tpu.pipeline_mode<synchronous>, transform_indices = @transform_6, window_bounds = array<i64: 128, 64>}, {pipeline_mode = #tpu.pipeline_mode<synchronous>, transform_indices = @transform_7, window_bounds = array<i64: 1, 64>}, {pipeline_mode = #tpu.pipeline_mode<synchronous>, transform_indices = @transform_8, window_bounds = array<i64: 64, 256>}, {pipeline_mode = #tpu.pipeline_mode<synchronous>, transform_indices = @transform_9, window_bounds = array<i64: 1, 256>}, {pipeline_mode = #tpu.pipeline_mode<synchronous>, transform_indices = @transform_10, window_bounds = array<i64: 1, 64>}, {pipeline_mode = #tpu.pipeline_mode<synchronous>, transform_indices = @transform_11, window_bounds = array<i64: 1, 64>}, {pipeline_mode = #tpu.pipeline_mode<synchronous>, transform_indices = @transform_12, window_bounds = array<i64: 64, 32>}, {transform_indices = @transform_13, window_bounds = array<i64: 1, 8, 32>}]} {
    %c0_i32 = arith.constant 0 : i32
    %0 = arith.cmpi eq, %arg1, %c0_i32 : i32
    %1 = arith.extui %0 : i1 to i32
    %c0_i32_0 = arith.constant 0 : i32
    %2 = arith.cmpi ne, %1, %c0_i32_0 : i32
    scf.if %2 {
      %cst_69 = arith.constant 0.000000e+00 : f32
      %183 = vector.broadcast %cst_69 : f32 to vector<64x128xf32>
      %c0_70 = arith.constant 0 : index
      %c0_71 = arith.constant 0 : index
      %184 = vector.load %arg16[%c0_70, %c0_71] : memref<64x128xf32, #tpu.memory_space<vmem>>, vector<64x128xf32>
      tpu.vector_store %arg16[%c0_70, %c0_71], %183 {strides = array<i32>} : memref<64x128xf32, #tpu.memory_space<vmem>>, vector<64x128xf32>,
      %cst_72 = arith.constant 0.000000e+00 : f32
      %185 = vector.broadcast %cst_72 : f32 to vector<8x64xf32>
      %c0_73 = arith.constant 0 : index
      %c0_74 = arith.constant 0 : index
      %186 = vector.load %arg17[%c0_73, %c0_74] : memref<16x64xf32, #tpu.memory_space<vmem>>, vector<8x64xf32>
      tpu.vector_store %arg17[%c0_73, %c0_74], %185 {strides = array<i32>} : memref<16x64xf32, #tpu.memory_space<vmem>>, vector<8x64xf32>,
    } else {
    }
    %c0 = arith.constant 0 : index
    %c0_1 = arith.constant 0 : index
    %c0_2 = arith.constant 0 : index
    %3 = vector.load %arg2[%c0, %c0_1, %c0_2] : memref<1x8x32xf32, #tpu.memory_space<vmem>>, vector<1x8x32xf32>
    %4 = vector.shape_cast %3 : vector<1x8x32xf32> to vector<8x32xf32>
    %5 = arith.truncf %4 : vector<8x32xf32> to vector<8x32xbf16>
    %c0_3 = arith.constant 0 : index
    %c0_4 = arith.constant 0 : index
    %6 = vector.load %arg3[%c0_3, %c0_4] : memref<32x128xbf16, #tpu.memory_space<vmem>>, vector<32x128xbf16>
    %cst = arith.constant dense<0.000000e+00> : vector<8x128xf32>
    %7 = tpu.matmul %5, %6, %cst {dimension_numbers = #tpu.dot_dimension_numbers<[1], [0], [0], [1], [0, 0, 1, 1], [], []>} : vector<8x32xbf16>, vector<32x128xbf16>, vector<8x128xf32> -> vector<8x128xf32>
    %8 = vector.extract_strided_slice %7 {offsets = [0, 0], sizes = [8, 64], strides = [1, 1]} : vector<8x128xf32> to vector<8x64xf32>
    %9 = vector.extract_strided_slice %7 {offsets = [0, 64], sizes = [8, 64], strides = [1, 1]} : vector<8x128xf32> to vector<8x64xf32>
    %c8 = arith.constant 8 : index
    %c0_5 = arith.constant 0 : index
    %10 = vector.load %arg17[%c8, %c0_5] : memref<16x64xf32, #tpu.memory_space<vmem>>, vector<8x64xf32>
    tpu.vector_store %arg17[%c8, %c0_5], %8 {strides = array<i32>} : memref<16x64xf32, #tpu.memory_space<vmem>>, vector<8x64xf32>,
    %c0_6 = arith.constant 0 : index
    %c0_7 = arith.constant 0 : index
    %11 = vector.load %arg4[%c0_6, %c0_7] : memref<4x64xf32, #tpu.memory_space<vmem>>, vector<4x64xf32>
    %cst_8 = arith.constant 0.000000e+00 : f32
    %12 = vector.broadcast %cst_8 : f32 to vector<8x64xf32>
    %c5 = arith.constant 5 : index
    %c0_9 = arith.constant 0 : index
    %13 = vector.load %arg17[%c5, %c0_9] : memref<16x64xf32, #tpu.memory_space<vmem>>, vector<8x64xf32>
    %14 = vector.extract_strided_slice %11 {offsets = [0, 0], sizes = [1, 64], strides = [1, 1]} : vector<4x64xf32> to vector<1x64xf32>
    %15 = vector.broadcast %14 : vector<1x64xf32> to vector<8x64xf32>
    %16 = arith.mulf %13, %15 : vector<8x64xf32>
    %17 = arith.addf %12, %16 : vector<8x64xf32>
    %c6 = arith.constant 6 : index
    %c0_10 = arith.constant 0 : index
    %18 = vector.load %arg17[%c6, %c0_10] : memref<16x64xf32, #tpu.memory_space<vmem>>, vector<8x64xf32>
    %19 = vector.extract_strided_slice %11 {offsets = [1, 0], sizes = [1, 64], strides = [1, 1]} : vector<4x64xf32> to vector<1x64xf32>
    %20 = vector.broadcast %19 : vector<1x64xf32> to vector<8x64xf32>
    %21 = arith.mulf %18, %20 : vector<8x64xf32>
    %22 = arith.addf %17, %21 : vector<8x64xf32>
    %c7 = arith.constant 7 : index
    %c0_11 = arith.constant 0 : index
    %23 = vector.load %arg17[%c7, %c0_11] : memref<16x64xf32, #tpu.memory_space<vmem>>, vector<8x64xf32>
    %24 = vector.extract_strided_slice %11 {offsets = [2, 0], sizes = [1, 64], strides = [1, 1]} : vector<4x64xf32> to vector<1x64xf32>
    %25 = vector.broadcast %24 : vector<1x64xf32> to vector<8x64xf32>
    %26 = arith.mulf %23, %25 : vector<8x64xf32>
    %27 = arith.addf %22, %26 : vector<8x64xf32>
    %c8_12 = arith.constant 8 : index
    %c0_13 = arith.constant 0 : index
    %28 = vector.load %arg17[%c8_12, %c0_13] : memref<16x64xf32, #tpu.memory_space<vmem>>, vector<8x64xf32>
    %29 = vector.extract_strided_slice %11 {offsets = [3, 0], sizes = [1, 64], strides = [1, 1]} : vector<4x64xf32> to vector<1x64xf32>
    %30 = vector.broadcast %29 : vector<1x64xf32> to vector<8x64xf32>
    %31 = arith.mulf %28, %30 : vector<8x64xf32>
    %32 = arith.addf %27, %31 : vector<8x64xf32>
    %c0_14 = arith.constant 0 : index
    %c0_15 = arith.constant 0 : index
    %33 = vector.load %arg5[%c0_14, %c0_15] : memref<1x64xf32, #tpu.memory_space<vmem>>, vector<1x64xf32>
    %34 = vector.broadcast %33 : vector<1x64xf32> to vector<8x64xf32>
    %35 = arith.addf %32, %34 : vector<8x64xf32>
    %36 = arith.negf %35 : vector<8x64xf32>
    %37 = math.exp %36 : vector<8x64xf32>
    %cst_16 = arith.constant 1.000000e+00 : f32
    %38 = vector.broadcast %cst_16 : f32 to vector<8x64xf32>
    %39 = arith.addf %38, %37 : vector<8x64xf32>
    %40 = arith.divf %38, %39 : vector<8x64xf32>
    %41 = arith.mulf %35, %40 : vector<8x64xf32>
    %42 = arith.truncf %41 : vector<8x64xf32> to vector<8x64xbf16>
    %43 = arith.truncf %8 : vector<8x64xf32> to vector<8x64xbf16>
    %c0_17 = arith.constant 0 : index
    %c0_18 = arith.constant 0 : index
    %44 = vector.load %arg6[%c0_17, %c0_18] : memref<64x256xbf16, #tpu.memory_space<vmem>>, vector<64x256xbf16>
    %cst_19 = arith.constant dense<0.000000e+00> : vector<8x256xf32>
    %45 = tpu.matmul %42, %44, %cst_19 {dimension_numbers = #tpu.dot_dimension_numbers<[1], [0], [0], [1], [0, 0, 1, 1], [], []>} : vector<8x64xbf16>, vector<64x256xbf16>, vector<8x256xf32> -> vector<8x256xf32>
    %46 = vector.extract_strided_slice %45 {offsets = [0, 0], sizes = [8, 128], strides = [1, 1]} : vector<8x256xf32> to vector<8x128xf32>
    %47 = vector.extract_strided_slice %45 {offsets = [0, 128], sizes = [8, 128], strides = [1, 1]} : vector<8x256xf32> to vector<8x128xf32>
    %c0_20 = arith.constant 0 : index
    %c0_21 = arith.constant 0 : index
    %48 = vector.load %arg7[%c0_20, %c0_21] : memref<64x128xbf16, #tpu.memory_space<vmem>>, vector<64x128xbf16>
    %cst_22 = arith.constant dense<0.000000e+00> : vector<8x128xf32>
    %49 = tpu.matmul %43, %48, %cst_22 {dimension_numbers = #tpu.dot_dimension_numbers<[1], [0], [0], [1], [0, 0, 1, 1], [], []>} : vector<8x64xbf16>, vector<64x128xbf16>, vector<8x128xf32> -> vector<8x128xf32>
    %50 = arith.truncf %49 : vector<8x128xf32> to vector<8x128xbf16>
    %c0_23 = arith.constant 0 : index
    %c0_24 = arith.constant 0 : index
    %51 = vector.load %arg8[%c0_23, %c0_24] : memref<128x64xbf16, #tpu.memory_space<vmem>>, vector<128x64xbf16>
    %cst_25 = arith.constant dense<0.000000e+00> : vector<8x64xf32>
    %52 = tpu.matmul %50, %51, %cst_25 {dimension_numbers = #tpu.dot_dimension_numbers<[1], [0], [0], [1], [0, 0, 1, 1], [], []>} : vector<8x128xbf16>, vector<128x64xbf16>, vector<8x64xf32> -> vector<8x64xf32>
    %c0_26 = arith.constant 0 : index
    %c0_27 = arith.constant 0 : index
    %53 = vector.load %arg9[%c0_26, %c0_27] : memref<1x64xf32, #tpu.memory_space<vmem>>, vector<1x64xf32>
    %54 = vector.broadcast %53 : vector<1x64xf32> to vector<8x64xf32>
    %55 = arith.addf %52, %54 : vector<8x64xf32>
    %56 = arith.negf %55 : vector<8x64xf32>
    %57 = math.exp %56 : vector<8x64xf32>
    %cst_28 = arith.constant 1.000000e+00 : f32
    %58 = vector.broadcast %cst_28 : f32 to vector<8x64xf32>
    %59 = arith.addf %58, %57 : vector<8x64xf32>
    %60 = arith.divf %58, %59 : vector<8x64xf32>
    %61 = arith.mulf %60, %8 : vector<8x64xf32>
    %62 = arith.truncf %61 : vector<8x64xf32> to vector<8x64xbf16>
    %c0_29 = arith.constant 0 : index
    %c0_30 = arith.constant 0 : index
    %63 = vector.load %arg10[%c0_29, %c0_30] : memref<64x256xbf16, #tpu.memory_space<vmem>>, vector<64x256xbf16>
    %cst_31 = arith.constant dense<0.000000e+00> : vector<8x256xf32>
    %64 = tpu.matmul %42, %63, %cst_31 {dimension_numbers = #tpu.dot_dimension_numbers<[1], [0], [0], [1], [0, 0, 1, 1], [], []>} : vector<8x64xbf16>, vector<64x256xbf16>, vector<8x256xf32> -> vector<8x256xf32>
    %c0_32 = arith.constant 0 : index
    %c0_33 = arith.constant 0 : index
    %65 = vector.load %arg11[%c0_32, %c0_33] : memref<1x256xf32, #tpu.memory_space<vmem>>, vector<1x256xf32>
    %66 = vector.broadcast %65 : vector<1x256xf32> to vector<8x256xf32>
    %67 = arith.addf %64, %66 : vector<8x256xf32>
    %68 = vector.extract_strided_slice %67 {offsets = [0, 0], sizes = [8, 128], strides = [1, 1]} : vector<8x256xf32> to vector<8x128xf32>
    %cst_34 = arith.constant 0.000000e+00 : f32
    %69 = vector.broadcast %cst_34 : f32 to vector<8x128xf32>
    %70 = arith.maximumf %68, %69 : vector<8x128xf32>
    %71 = vector.broadcast %cst_34 : f32 to vector<8x128xf32>
    %72 = arith.subf %68, %71 : vector<8x128xf32>
    %73 = arith.cmpf one, %72, %72 : vector<8x128xf32>
    %74 = vector.broadcast %cst_34 : f32 to vector<8x128xf32>
    %75 = arith.addf %68, %74 : vector<8x128xf32>
    %76 = math.absf %72 : vector<8x128xf32>
    %cst_35 = arith.constant 0.000000e+00 : f32
    %77 = vector.broadcast %cst_35 : f32 to vector<8x128xf32>
    %78 = arith.subf %77, %76 : vector<8x128xf32>
    %79 = math.exp %78 : vector<8x128xf32>
    %80 = math.log1p %79 : vector<8x128xf32>
    %81 = arith.addf %70, %80 : vector<8x128xf32>
    %82 = arith.select %73, %75, %81 : vector<8x128xi1>, vector<8x128xf32>
    %83 = vector.extract_strided_slice %67 {offsets = [0, 128], sizes = [8, 128], strides = [1, 1]} : vector<8x256xf32> to vector<8x128xf32>
    %84 = arith.negf %83 : vector<8x128xf32>
    %85 = math.exp %84 : vector<8x128xf32>
    %cst_36 = arith.constant 1.000000e+00 : f32
    %86 = vector.broadcast %cst_36 : f32 to vector<8x128xf32>
    %87 = arith.addf %86, %85 : vector<8x128xf32>
    %88 = arith.divf %86, %87 : vector<8x128xf32>
    %cst_37 = arith.constant 1.000000e-24 : f32
    %89 = vector.broadcast %cst_37 : f32 to vector<8x128xf32>
    %90 = arith.maximumf %82, %89 : vector<8x128xf32>
    %91 = math.log %90 : vector<8x128xf32>
    %92 = arith.mulf %88, %91 : vector<8x128xf32>
    %93 = math.exp %92 : vector<8x128xf32>
    %cst_38 = arith.constant 0.000000e+00 : f32
    %94 = vector.broadcast %cst_38 : f32 to vector<8x128xf32>
    %95 = arith.subf %94, %82 : vector<8x128xf32>
    %96 = arith.mulf %95, %88 : vector<8x128xf32>
    %97 = arith.mulf %47, %47 : vector<8x128xf32>
    %cst_39 = arith.constant dense<0.000000e+00> : vector<8xf32>
    %98 = vector.multi_reduction <add>, %97, %cst_39 [1] : vector<8x128xf32> to vector<8xf32>
    %99 = vector.shape_cast %98 : vector<8xf32> to vector<8x1xf32>
    %100 = math.sqrt %99 : vector<8x1xf32>
    %cst_40 = arith.constant 9.99999996E-13 : f32
    %101 = vector.broadcast %cst_40 : f32 to vector<8x1xf32>
    %102 = arith.maximumf %100, %101 : vector<8x1xf32>
    %103 = vector.broadcast %102 : vector<8x1xf32> to vector<8x128xf32>
    %104 = arith.divf %47, %103 : vector<8x128xf32>
    %105 = arith.mulf %104, %93 : vector<8x128xf32>
    %cst_41 = arith.constant 1.250000e-01 : f32
    %106 = vector.broadcast %cst_41 : f32 to vector<8x128xf32>
    %107 = arith.mulf %46, %106 : vector<8x128xf32>
    %108 = tpu.iota {dimensions = array<i32: 0>} : vector<8x8xi32>
    %109 = tpu.iota {dimensions = array<i32: 1>} : vector<8x8xi32>
    %110 = arith.cmpi sge, %108, %109 : vector<8x8xi32>
    %111 = arith.extui %110 : vector<8x8xi1> to vector<8x8xi32>
    %112 = arith.sitofp %111 : vector<8x8xi32> to vector<8x8xf32>
    %c0_42 = arith.constant 0 : index
    %c0_43 = arith.constant 0 : index
    %113 = vector.load %arg16[%c0_42, %c0_43] : memref<64x128xf32, #tpu.memory_space<vmem>>, vector<64x128xf32>
    %cst_44 = arith.constant dense<0.000000e+00> : vector<8x128xf32>
    %114 = tpu.matmul %112, %96, %cst_44 {dimension_numbers = #tpu.dot_dimension_numbers<[1], [0], [0], [1], [0, 0, 1, 1], [], []>} : vector<8x8xf32>, vector<8x128xf32>, vector<8x128xf32> -> vector<8x128xf32>
    %115 = vector.extract_strided_slice %114 {offsets = [7, 0], sizes = [1, 128], strides = [1, 1]} : vector<8x128xf32> to vector<1x128xf32>
    %cst_45 = arith.constant 5.000000e-01 : f32
    %116 = vector.broadcast %cst_45 : f32 to vector<1x128xf32>
    %117 = arith.mulf %116, %115 : vector<1x128xf32>
    %118 = math.exp %117 : vector<1x128xf32>
    %119 = vector.broadcast %117 : vector<1x128xf32> to vector<8x128xf32>
    %120 = arith.subf %114, %119 : vector<8x128xf32>
    %cst_46 = arith.constant -8.000000e+01 : f32
    %cst_47 = arith.constant 8.000000e+01 : f32
    %121 = vector.broadcast %cst_46 : f32 to vector<8x128xf32>
    %122 = arith.maximumf %121, %120 : vector<8x128xf32>
    %123 = vector.broadcast %cst_47 : f32 to vector<8x128xf32>
    %124 = arith.minimumf %123, %122 : vector<8x128xf32>
    %125 = math.exp %124 : vector<8x128xf32>
    %126 = tpu.reciprocal %125 : vector<8x128xf32> -> vector<8x128xf32>
    %127 = arith.mulf %107, %125 : vector<8x128xf32>
    %128 = arith.truncf %127 : vector<8x128xf32> to vector<8x128xbf16>
    %129 = arith.mulf %105, %126 : vector<8x128xf32>
    %130 = arith.truncf %129 : vector<8x128xf32> to vector<8x128xbf16>
    %131 = vector.broadcast %118 : vector<1x128xf32> to vector<8x128xf32>
    %132 = arith.mulf %125, %131 : vector<8x128xf32>
    %133 = arith.mulf %107, %132 : vector<8x128xf32>
    %134 = arith.truncf %133 : vector<8x128xf32> to vector<8x128xbf16>
    %135 = vector.broadcast %118 : vector<1x128xf32> to vector<8x128xf32>
    %136 = arith.mulf %126, %135 : vector<8x128xf32>
    %137 = arith.mulf %105, %136 : vector<8x128xf32>
    %138 = arith.truncf %137 : vector<8x128xf32> to vector<8x128xbf16>
    %139 = arith.truncf %113 : vector<64x128xf32> to vector<64x128xbf16>
    %cst_48 = arith.constant dense<0.000000e+00> : vector<8x64xf32>
    %140 = tpu.matmul %134, %139, %cst_48 {dimension_numbers = #tpu.dot_dimension_numbers<[1], [1], [0], [0], [0, 0, 1, 0], [], []>} : vector<8x128xbf16>, vector<64x128xbf16>, vector<8x64xf32> -> vector<8x64xf32>
    %cst_49 = arith.constant dense<0.000000e+00> : vector<8x8xf32>
    %141 = tpu.matmul %128, %130, %cst_49 {dimension_numbers = #tpu.dot_dimension_numbers<[1], [1], [0], [0], [0, 0, 1, 0], [], []>} : vector<8x128xbf16>, vector<8x128xbf16>, vector<8x8xf32> -> vector<8x8xf32>
    %cst_50 = arith.constant 0.000000e+00 : f32
    %142 = vector.broadcast %cst_50 : f32 to vector<8x8xf32>
    %143 = arith.select %110, %141, %142 : vector<8x8xi1>, vector<8x8xf32>
    %144 = arith.truncf %143 : vector<8x8xf32> to vector<8x8xbf16>
    %cst_51 = arith.constant dense<0.000000e+00> : vector<8x64xf32>
    %145 = tpu.matmul %144, %62, %cst_51 {dimension_numbers = #tpu.dot_dimension_numbers<[1], [0], [0], [1], [0, 0, 1, 1], [], []>} : vector<8x8xbf16>, vector<8x64xbf16>, vector<8x64xf32> -> vector<8x64xf32>
    %146 = arith.addf %140, %145 : vector<8x64xf32>
    %147 = arith.mulf %118, %118 : vector<1x128xf32>
    %148 = vector.broadcast %147 : vector<1x128xf32> to vector<64x128xf32>
    %149 = arith.mulf %113, %148 : vector<64x128xf32>
    %cst_52 = arith.constant dense<0.000000e+00> : vector<64x128xf32>
    %150 = tpu.matmul %62, %138, %cst_52 {dimension_numbers = #tpu.dot_dimension_numbers<[0], [0], [1], [1], [0, 1, 1, 1], [], []>} : vector<8x64xbf16>, vector<8x128xbf16>, vector<64x128xf32> -> vector<64x128xf32>
    %151 = arith.addf %149, %150 : vector<64x128xf32>
    %c0_53 = arith.constant 0 : index
    %c0_54 = arith.constant 0 : index
    %152 = vector.load %arg16[%c0_53, %c0_54] : memref<64x128xf32, #tpu.memory_space<vmem>>, vector<64x128xf32>
    tpu.vector_store %arg16[%c0_53, %c0_54], %151 {strides = array<i32>} : memref<64x128xf32, #tpu.memory_space<vmem>>, vector<64x128xf32>,
    %c0_55 = arith.constant 0 : index
    %c0_56 = arith.constant 0 : index
    %153 = vector.load %arg12[%c0_55, %c0_56] : memref<1x64xf32, #tpu.memory_space<vmem>>, vector<1x64xf32>
    %154 = vector.broadcast %153 : vector<1x64xf32> to vector<8x64xf32>
    %155 = arith.mulf %41, %154 : vector<8x64xf32>
    %156 = arith.addf %146, %155 : vector<8x64xf32>
    %157 = arith.negf %9 : vector<8x64xf32>
    %158 = math.exp %157 : vector<8x64xf32>
    %cst_57 = arith.constant 1.000000e+00 : f32
    %159 = vector.broadcast %cst_57 : f32 to vector<8x64xf32>
    %160 = arith.addf %159, %158 : vector<8x64xf32>
    %161 = arith.divf %159, %160 : vector<8x64xf32>
    %162 = arith.mulf %9, %161 : vector<8x64xf32>
    %163 = arith.mulf %156, %162 : vector<8x64xf32>
    %164 = arith.mulf %163, %163 : vector<8x64xf32>
    %cst_58 = arith.constant dense<0.000000e+00> : vector<8xf32>
    %165 = vector.multi_reduction <add>, %164, %cst_58 [1] : vector<8x64xf32> to vector<8xf32>
    %166 = vector.shape_cast %165 : vector<8xf32> to vector<8x1xf32>
    %cst_59 = arith.constant 6.400000e+01 : f32
    %167 = vector.broadcast %cst_59 : f32 to vector<8x1xf32>
    %168 = arith.divf %166, %167 : vector<8x1xf32>
    %cst_60 = arith.constant 9.99999974E-6 : f32
    %169 = vector.broadcast %cst_60 : f32 to vector<8x1xf32>
    %170 = arith.addf %168, %169 : vector<8x1xf32>
    %171 = math.rsqrt %170 : vector<8x1xf32>
    %172 = vector.broadcast %171 : vector<8x1xf32> to vector<8x64xf32>
    %173 = arith.mulf %163, %172 : vector<8x64xf32>
    %c0_61 = arith.constant 0 : index
    %c0_62 = arith.constant 0 : index
    %174 = vector.load %arg13[%c0_61, %c0_62] : memref<1x64xf32, #tpu.memory_space<vmem>>, vector<1x64xf32>
    %175 = vector.broadcast %174 : vector<1x64xf32> to vector<8x64xf32>
    %176 = arith.mulf %173, %175 : vector<8x64xf32>
    %177 = arith.truncf %176 : vector<8x64xf32> to vector<8x64xbf16>
    %c0_63 = arith.constant 0 : index
    %c0_64 = arith.constant 0 : index
    %178 = vector.load %arg14[%c0_63, %c0_64] : memref<64x32xbf16, #tpu.memory_space<vmem>>, vector<64x32xbf16>
    %cst_65 = arith.constant dense<0.000000e+00> : vector<8x32xf32>
    %179 = tpu.matmul %177, %178, %cst_65 {dimension_numbers = #tpu.dot_dimension_numbers<[1], [0], [0], [1], [0, 0, 1, 1], [], []>} : vector<8x64xbf16>, vector<64x32xbf16>, vector<8x32xf32> -> vector<8x32xf32>
    %c0_66 = arith.constant 0 : index
    %c0_67 = arith.constant 0 : index
    %c0_68 = arith.constant 0 : index
    %180 = vector.load %arg15[%c0_66, %c0_67, %c0_68] : memref<1x8x32xf32, #tpu.memory_space<vmem>>, vector<1x8x32xf32>
    %181 = vector.shape_cast %180 : vector<1x8x32xf32> to vector<8x32xf32>
    %182 = vector.shape_cast %179 : vector<8x32xf32> to vector<1x8x32xf32>
    tpu.vector_store %arg15[%c0_66, %c0_67, %c0_68], %182 {strides = array<i32>} : memref<1x8x32xf32, #tpu.memory_space<vmem>>, vector<1x8x32xf32>,
    return
  }
  func.func @transform_0(%arg0: i32, %arg1: i32) -> (i32, i32, i32) {
    %c0_i32 = arith.constant 0 : i32
    %c0_i32_0 = arith.constant 0 : i32
    return %arg0, %arg1, %c0_i32 : i32, i32, i32
  }
  func.func @transform_1(%arg0: i32, %arg1: i32) -> (i32, i32) {
    %c0_i32 = arith.constant 0 : i32
    %c0_i32_0 = arith.constant 0 : i32
    %c0_i32_1 = arith.constant 0 : i32
    return %c0_i32, %c0_i32_0 : i32, i32
  }
  func.func @transform_2(%arg0: i32, %arg1: i32) -> (i32, i32) {
    %c0_i32 = arith.constant 0 : i32
    %c0_i32_0 = arith.constant 0 : i32
    %c0_i32_1 = arith.constant 0 : i32
    return %c0_i32, %c0_i32_0 : i32, i32
  }
  func.func @transform_3(%arg0: i32, %arg1: i32) -> (i32, i32) {
    %c0_i32 = arith.constant 0 : i32
    %c0_i32_0 = arith.constant 0 : i32
    %c0_i32_1 = arith.constant 0 : i32
    return %c0_i32, %c0_i32_0 : i32, i32
  }
  func.func @transform_4(%arg0: i32, %arg1: i32) -> (i32, i32) {
    %c0_i32 = arith.constant 0 : i32
    %c0_i32_0 = arith.constant 0 : i32
    %c0_i32_1 = arith.constant 0 : i32
    return %c0_i32, %c0_i32_0 : i32, i32
  }
  func.func @transform_5(%arg0: i32, %arg1: i32) -> (i32, i32) {
    %c0_i32 = arith.constant 0 : i32
    %c0_i32_0 = arith.constant 0 : i32
    %c0_i32_1 = arith.constant 0 : i32
    return %c0_i32, %c0_i32_0 : i32, i32
  }
  func.func @transform_6(%arg0: i32, %arg1: i32) -> (i32, i32) {
    %c0_i32 = arith.constant 0 : i32
    %c0_i32_0 = arith.constant 0 : i32
    %c0_i32_1 = arith.constant 0 : i32
    return %c0_i32, %c0_i32_0 : i32, i32
  }
  func.func @transform_7(%arg0: i32, %arg1: i32) -> (i32, i32) {
    %c0_i32 = arith.constant 0 : i32
    %c0_i32_0 = arith.constant 0 : i32
    %c0_i32_1 = arith.constant 0 : i32
    return %c0_i32, %c0_i32_0 : i32, i32
  }
  func.func @transform_8(%arg0: i32, %arg1: i32) -> (i32, i32) {
    %c0_i32 = arith.constant 0 : i32
    %c0_i32_0 = arith.constant 0 : i32
    %c0_i32_1 = arith.constant 0 : i32
    return %c0_i32, %c0_i32_0 : i32, i32
  }
  func.func @transform_9(%arg0: i32, %arg1: i32) -> (i32, i32) {
    %c0_i32 = arith.constant 0 : i32
    %c0_i32_0 = arith.constant 0 : i32
    %c0_i32_1 = arith.constant 0 : i32
    return %c0_i32, %c0_i32_0 : i32, i32
  }
  func.func @transform_10(%arg0: i32, %arg1: i32) -> (i32, i32) {
    %c0_i32 = arith.constant 0 : i32
    %c0_i32_0 = arith.constant 0 : i32
    %c0_i32_1 = arith.constant 0 : i32
    return %c0_i32, %c0_i32_0 : i32, i32
  }
  func.func @transform_11(%arg0: i32, %arg1: i32) -> (i32, i32) {
    %c0_i32 = arith.constant 0 : i32
    %c0_i32_0 = arith.constant 0 : i32
    %c0_i32_1 = arith.constant 0 : i32
    return %c0_i32, %c0_i32_0 : i32, i32
  }
  func.func @transform_12(%arg0: i32, %arg1: i32) -> (i32, i32) {
    %c0_i32 = arith.constant 0 : i32
    %c0_i32_0 = arith.constant 0 : i32
    %c0_i32_1 = arith.constant 0 : i32
    return %c0_i32, %c0_i32_0 : i32, i32
  }
  func.func @transform_13(%arg0: i32, %arg1: i32) -> (i32, i32, i32) {
    %c0_i32 = arith.constant 0 : i32
    %c0_i32_0 = arith.constant 0 : i32
    return %arg0, %arg1, %c0_i32 : i32, i32, i32
  }
}

</mosaic_0001>

<llo_original>
// kernel: tpu_custom_call.1
$region0: #{tpu_custom_call.1}
  #allocation0 [shape = 'u32[]', space=smem, size = 0x4, offset = 0x4, fixed_abs, tag = 'smem constant byte address 0x4 - core index']
  #allocation1 [shape = 'u32[72,128]{1,0:T(1,128)}', space=vmem, size = 0x9000, scoped, tag = 'internal scratch']
  #allocation2 [shape = 'f32[64,128]{1,0:T(8,128)}', space=vmem, size = 0x8000, scoped, tag = 'scratch operand']
  #allocation3 [shape = 'f32[16,64]{1,0:T(8,128)}', space=vmem, size = 0x2000, scoped, tag = 'scratch operand']
  %s0 = inlined_call_operand.vmem [shape: f32[2,8,32], index: 0, kind: input, shape index: {}]
  %s1 = inlined_call_operand.hbm [shape: bf16[32,128], index: 1, kind: input, shape index: {}]
  %s2 = inlined_call_operand.vmem [shape: f32[4,64], index: 2, kind: input, shape index: {}]
  %s3 = inlined_call_operand.vmem [shape: f32[1,64], index: 3, kind: input, shape index: {}]
  %s4 = inlined_call_operand.vmem [shape: bf16[64,256], index: 4, kind: input, shape index: {}]
  %s5 = inlined_call_operand.vmem [shape: bf16[64,128], index: 5, kind: input, shape index: {}]
  %s6 = inlined_call_operand.vmem [shape: bf16[128,64], index: 6, kind: input, shape index: {}]
  %s7 = inlined_call_operand.hbm [shape: f32[1,64], index: 7, kind: input, shape index: {}]
  %s8 = inlined_call_operand.hbm [shape: bf16[64,256], index: 8, kind: input, shape index: {}]
  %s9 = inlined_call_operand.vmem [shape: f32[1,256], index: 9, kind: input, shape index: {}]
  %s10 = inlined_call_operand.vmem [shape: f32[1,64], index: 10, kind: input, shape index: {}]
  %s11 = inlined_call_operand.vmem [shape: f32[1,64], index: 11, kind: input, shape index: {}]
  %s12 = inlined_call_operand.vmem [shape: bf16[64,32], index: 12, kind: input, shape index: {}]
  %s13 = inlined_call_operand.hbm [shape: f32[2,8,32], index: 13, kind: output, shape index: {}]
  %s14 = sld [smem:[#allocation0]]
  $region101: #{tpu_custom_call.1} parent=0
    _
  %s16 = ssub.s32 1, %s14
  %s17 = scalar_select 0, %s16, %s14
  $region1: #{tpu_custom_call.1} parent=0
    #allocation4 [shape = 'u8[8192]{0}', space=vmem, size = 0x2000, scoped, tag = 'input window, operand 1, single buffered']
    #allocation5 [shape = 's32[2]{0}', space=sflag, size = 0x8, scoped, tag = 'scoped memory for tpu_custom_call.1']
    #allocation6 [shape = 's32[2]{0}', space=sflag, size = 0x8, scoped, tag = 'scoped memory for tpu_custom_call.1']
    #allocation7 [shape = 'u8[512]{0}', space=vmem, size = 0x400, scoped, tag = 'input window, operand 7, single buffered']
    #allocation8 [shape = 's32[1]{0}', space=sflag, size = 0x4, scoped, tag = 'scoped memory for tpu_custom_call.1']
    #allocation9 [shape = 'u8[32768]{0}', space=vmem, size = 0x8000, scoped, tag = 'input window, operand 8, single buffered']
    #allocation10 [shape = 'u8[8192]{0}', space=vmem, size = 0x2000, scoped, tag = 'output window, operand 0']
    %18 = vsyncpa [#allocation5], 0
    %19 = vsyncpa [#allocation8], 0
    %20 = vsyncpa [#allocation6], 0
    %s21 = scalar_lea.sflag [#allocation6], 1
    %22 = vsyncpa %s21, 0
    loop: start=0, step=1, limit=4
    $region2: #{tpu_custom_call.1} parent=1 // loop_pre_header
      _
    $region3: #{tpu_custom_call.1} parent=1 // loop_header
      %s24 = sphi 0, %s28
      %p25 = scmp.ge.s32.totalorder %s24, 4
      %s31 = sphi 0, %s43
      %s32 = sphi 0, %s39
      %s33 = sphi 0, %s31
      %s34 = sphi 0, %s32
      %s35 = sphi 0, %s33
      %s36 = sphi 0, %s34
      %s48 = sphi 0, %s50
      %s51 = sphi 0, %s48
      %s52 = sphi 0, %s51
      %s68 = sphi 0, %s52
      %s72 = sphi 0, %s72
      %s74 = sphi 0, %s72
      %s75 = sphi 0, %s74
      %s89 = sphi 0, %s75
      %s93 = sphi 0, %s93
      %s95 = sphi 0, %s93
      %s96 = sphi 0, %s95
      %s110 = sphi 0, %s96
      %s114 = sphi 0, %s114
      %s116 = sphi 0, %s114
      %s117 = sphi 0, %s116
      %s131 = sphi 0, %s117
      %s135 = sphi 0, %s135
      %s137 = sphi 0, %s135
      %s138 = sphi 0, %s137
      %s152 = sphi 0, %s138
      %s156 = sphi 0, %s156
      %s158 = sphi 0, %s156
      %s159 = sphi 0, %s158
      %s173 = sphi 0, %s159
      %s177 = sphi 0, %s177
      %s179 = sphi 0, %s177
      %s180 = sphi 0, %s179
      %s194 = sphi 0, %s180
      %s198 = sphi 0, %s198
      %s200 = sphi 0, %s198
      %s201 = sphi 0, %s200
      %s215 = sphi 0, %s201
      %s219 = sphi 0, %s219
      %s221 = sphi 0, %s219
      %s222 = sphi 0, %s221
      %s236 = sphi 0, %s222
      %s240 = sphi 0, %s240
      %s242 = sphi 0, %s240
      %s243 = sphi 0, %s242
      %s257 = sphi 0, %s243
      %s261 = sphi 0, %s261
      %s263 = sphi 0, %s261
      %s264 = sphi 0, %s263
      %s278 = sphi 0, %s264
      %s282 = sphi 0, %s282
      %s284 = sphi 0, %s282
      %s285 = sphi 0, %s284
      %s299 = sphi 0, %s285
      %s303 = sphi 0, %s303
      %s305 = sphi 0, %s303
      %s306 = sphi 0, %s305
      %s320 = sphi 0, %s306
      %s328 = sphi 0, %s330
      %s331 = sphi 0, %s328
      %s332 = sphi 0, %s331
      %s348 = sphi 0, %s332
    $region4: #{tpu_custom_call.1} parent=1 // loop_header_branch
      %27 = sbr.rel (%p25) target = $region8
    $region5: #{tpu_custom_call.1} parent=1 // loop_body
      %s29 = ssub.s32 %s24, 1
      %s30 = ssub.s32 %s24, 2
      %s37 = sadd.s32 1, %s32
      %p38 = scmp.ge.s32.totalorder %s37, 1
      %s39 = scalar_select %p38, 0, %s37
      %s40 = sadd.s32 1, %s31
      %s41 = scalar_select %p38, %s40, %s31
      %p42 = scmp.ge.s32.totalorder %s41, 2
      %s43 = scalar_select %p42, 0, %s41
      %s44 = ssub.s32 %s31, %s43
      %s45 = ssub.s32 %s32, %s39
      %s46 = sor.u32 %s44, %s45
      %p47 = scmp.eq.s32.totalorder %s46, 0
      %s49 = sadd.s32 %s48, 1
      %s50 = scalar_select %p47, %s48, %s49
      %p53 = pneg %p47
      %p54 = scmp.eq.s32.totalorder %s24, 1
      %p55 = por %p53, %p54
      %p56 = scmp.ne.s32.totalorder %s48, %s51
      %p57 = scmp.eq.s32.totalorder %s24, 0
      %p58 = por %p56, %p57
      %p59 = scmp.ne.s32.totalorder %s48, %s51
      %p60 = scmp.eq.s32.totalorder %s29, 1
      %p61 = por %p59, %p60
      %p62 = scmp.ne.s32.totalorder %s51, %s52
      %p63 = scmp.eq.s32.totalorder %s29, 0
      %p64 = por %p62, %p63
      %p65 = scmp.ne.s32.totalorder %s51, %s52
      %p66 = scmp.eq.s32.totalorder %s30, 1
      %p67 = por %p65, %p66
      %p69 = scmp.ne.s32.totalorder %s52, %s68
      %p70 = scmp.eq.s32.totalorder %s30, 0
      %p71 = por %p69, %p70
      %s73 = sadd.s32 %s72, 1
      %p76 = scmp.eq.s32.totalorder %s24, 1
      %p77 = scmp.ne.s32.totalorder %s72, %s74
      %p78 = scmp.eq.s32.totalorder %s24, 0
      %p79 = por %p77, %p78
      %p80 = scmp.ne.s32.totalorder %s72, %s74
      %p81 = scmp.eq.s32.totalorder %s29, 1
      %p82 = por %p80, %p81
      %p83 = scmp.ne.s32.totalorder %s74, %s75
      %p84 = scmp.eq.s32.totalorder %s29, 0
      %p85 = por %p83, %p84
      %p86 = scmp.ne.s32.totalorder %s74, %s75
      %p87 = scmp.eq.s32.totalorder %s30, 1
      %p88 = por %p86, %p87
      %p90 = scmp.ne.s32.totalorder %s75, %s89
      %p91 = scmp.eq.s32.totalorder %s30, 0
      %p92 = por %p90, %p91
      %s94 = sadd.s32 %s93, 1
      %p97 = scmp.eq.s32.totalorder %s24, 1
      %p98 = scmp.ne.s32.totalorder %s93, %s95
      %p99 = scmp.eq.s32.totalorder %s24, 0
      %p100 = por %p98, %p99
      %p101 = scmp.ne.s32.totalorder %s93, %s95
      %p102 = scmp.eq.s32.totalorder %s29, 1
      %p103 = por %p101, %p102
      %p104 = scmp.ne.s32.totalorder %s95, %s96
      %p105 = scmp.eq.s32.totalorder %s29, 0
      %p106 = por %p104, %p105
      %p107 = scmp.ne.s32.totalorder %s95, %s96
      %p108 = scmp.eq.s32.totalorder %s30, 1
      %p109 = por %p107, %p108
      %p111 = scmp.ne.s32.totalorder %s96, %s110
      %p112 = scmp.eq.s32.totalorder %s30, 0
      %p113 = por %p111, %p112
      %s115 = sadd.s32 %s114, 1
      %p118 = scmp.eq.s32.totalorder %s24, 1
      %p119 = scmp.ne.s32.totalorder %s114, %s116
      %p120 = scmp.eq.s32.totalorder %s24, 0
      %p121 = por %p119, %p120
      %p122 = scmp.ne.s32.totalorder %s114, %s116
      %p123 = scmp.eq.s32.totalorder %s29, 1
      %p124 = por %p122, %p123
      %p125 = scmp.ne.s32.totalorder %s116, %s117
      %p126 = scmp.eq.s32.totalorder %s29, 0
      %p127 = por %p125, %p126
      %p128 = scmp.ne.s32.totalorder %s116, %s117
      %p129 = scmp.eq.s32.totalorder %s30, 1
      %p130 = por %p128, %p129
      %p132 = scmp.ne.s32.totalorder %s117, %s131
      %p133 = scmp.eq.s32.totalorder %s30, 0
      %p134 = por %p132, %p133
      %s136 = sadd.s32 %s135, 1
      %p139 = scmp.eq.s32.totalorder %s24, 1
      %p140 = scmp.ne.s32.totalorder %s135, %s137
      %p141 = scmp.eq.s32.totalorder %s24, 0
      %p142 = por %p140, %p141
      %p143 = scmp.ne.s32.totalorder %s135, %s137
      %p144 = scmp.eq.s32.totalorder %s29, 1
      %p145 = por %p143, %p144
      %p146 = scmp.ne.s32.totalorder %s137, %s138
      %p147 = scmp.eq.s32.totalorder %s29, 0
      %p148 = por %p146, %p147
      %p149 = scmp.ne.s32.totalorder %s137, %s138
      %p150 = scmp.eq.s32.totalorder %s30, 1
      %p151 = por %p149, %p150
      %p153 = scmp.ne.s32.totalorder %s138, %s152
      %p154 = scmp.eq.s32.totalorder %s30, 0
      %p155 = por %p153, %p154
      %s157 = sadd.s32 %s156, 1
      %p160 = scmp.eq.s32.totalorder %s24, 1
      %p161 = scmp.ne.s32.totalorder %s156, %s158
      %p162 = scmp.eq.s32.totalorder %s24, 0
      %p163 = por %p161, %p162
      %p164 = scmp.ne.s32.totalorder %s156, %s158
      %p165 = scmp.eq.s32.totalorder %s29, 1
      %p166 = por %p164, %p165
      %p167 = scmp.ne.s32.totalorder %s158, %s159
      %p168 = scmp.eq.s32.totalorder %s29, 0
      %p169 = por %p167, %p168
      %p170 = scmp.ne.s32.totalorder %s158, %s159
      %p171 = scmp.eq.s32.totalorder %s30, 1
      %p172 = por %p170, %p171
      %p174 = scmp.ne.s32.totalorder %s159, %s173
      %p175 = scmp.eq.s32.totalorder %s30, 0
      %p176 = por %p174, %p175
      %s178 = sadd.s32 %s177, 1
      %p181 = scmp.eq.s32.totalorder %s24, 1
      %p182 = scmp.ne.s32.totalorder %s177, %s179
      %p183 = scmp.eq.s32.totalorder %s24, 0
      %p184 = por %p182, %p183
      %p185 = scmp.ne.s32.totalorder %s177, %s179
      %p186 = scmp.eq.s32.totalorder %s29, 1
      %p187 = por %p185, %p186
      %p188 = scmp.ne.s32.totalorder %s179, %s180
      %p189 = scmp.eq.s32.totalorder %s29, 0
      %p190 = por %p188, %p189
      %p191 = scmp.ne.s32.totalorder %s179, %s180
      %p192 = scmp.eq.s32.totalorder %s30, 1
      %p193 = por %p191, %p192
      %p195 = scmp.ne.s32.totalorder %s180, %s194
      %p196 = scmp.eq.s32.totalorder %s30, 0
      %p197 = por %p195, %p196
      %s199 = sadd.s32 %s198, 1
      %p202 = scmp.eq.s32.totalorder %s24, 1
      %p203 = scmp.ne.s32.totalorder %s198, %s200
      %p204 = scmp.eq.s32.totalorder %s24, 0
      %p205 = por %p203, %p204
      %p206 = scmp.ne.s32.totalorder %s198, %s200
      %p207 = scmp.eq.s32.totalorder %s29, 1
      %p208 = por %p206, %p207
      %p209 = scmp.ne.s32.totalorder %s200, %s201
      %p210 = scmp.eq.s32.totalorder %s29, 0
      %p211 = por %p209, %p210
      %p212 = scmp.ne.s32.totalorder %s200, %s201
      %p213 = scmp.eq.s32.totalorder %s30, 1
      %p214 = por %p212, %p213
      %p216 = scmp.ne.s32.totalorder %s201, %s215
      %p217 = scmp.eq.s32.totalorder %s30, 0
      %p218 = por %p216, %p217
      %s220 = sadd.s32 %s219, 1
      %p223 = scmp.eq.s32.totalorder %s24, 1
      %p224 = scmp.ne.s32.totalorder %s219, %s221
      %p225 = scmp.eq.s32.totalorder %s24, 0
      %p226 = por %p224, %p225
      %p227 = scmp.ne.s32.totalorder %s219, %s221
      %p228 = scmp.eq.s32.totalorder %s29, 1
      %p229 = por %p227, %p228
      %p230 = scmp.ne.s32.totalorder %s221, %s222
      %p231 = scmp.eq.s32.totalorder %s29, 0
      %p232 = por %p230, %p231
      %p233 = scmp.ne.s32.totalorder %s221, %s222
      %p234 = scmp.eq.s32.totalorder %s30, 1
      %p235 = por %p233, %p234
      %p237 = scmp.ne.s32.totalorder %s222, %s236
      %p238 = scmp.eq.s32.totalorder %s30, 0
      %p239 = por %p237, %p238
      %s241 = sadd.s32 %s240, 1
      %p244 = scmp.eq.s32.totalorder %s24, 1
      %p245 = scmp.ne.s32.totalorder %s240, %s242
      %p246 = scmp.eq.s32.totalorder %s24, 0
      %p247 = por %p245, %p246
      %p248 = scmp.ne.s32.totalorder %s240, %s242
      %p249 = scmp.eq.s32.totalorder %s29, 1
      %p250 = por %p248, %p249
      %p251 = scmp.ne.s32.totalorder %s242, %s243
      %p252 = scmp.eq.s32.totalorder %s29, 0
      %p253 = por %p251, %p252
      %p254 = scmp.ne.s32.totalorder %s242, %s243
      %p255 = scmp.eq.s32.totalorder %s30, 1
      %p256 = por %p254, %p255
      %p258 = scmp.ne.s32.totalorder %s243, %s257
      %p259 = scmp.eq.s32.totalorder %s30, 0
      %p260 = por %p258, %p259
      %s262 = sadd.s32 %s261, 1
      %p265 = scmp.eq.s32.totalorder %s24, 1
      %p266 = scmp.ne.s32.totalorder %s261, %s263
      %p267 = scmp.eq.s32.totalorder %s24, 0
      %p268 = por %p266, %p267
      %p269 = scmp.ne.s32.totalorder %s261, %s263
      %p270 = scmp.eq.s32.totalorder %s29, 1
      %p271 = por %p269, %p270
      %p272 = scmp.ne.s32.totalorder %s263, %s264
      %p273 = scmp.eq.s32.totalorder %s29, 0
      %p274 = por %p272, %p273
      %p275 = scmp.ne.s32.totalorder %s263, %s264
      %p276 = scmp.eq.s32.totalorder %s30, 1
      %p277 = por %p275, %p276
      %p279 = scmp.ne.s32.totalorder %s264, %s278
      %p280 = scmp.eq.s32.totalorder %s30, 0
      %p281 = por %p279, %p280
      %s283 = sadd.s32 %s282, 1
      %p286 = scmp.eq.s32.totalorder %s24, 1
      %p287 = scmp.ne.s32.totalorder %s282, %s284
      %p288 = scmp.eq.s32.totalorder %s24, 0
      %p289 = por %p287, %p288
      %p290 = scmp.ne.s32.totalorder %s282, %s284
      %p291 = scmp.eq.s32.totalorder %s29, 1
      %p292 = por %p290, %p291
      %p293 = scmp.ne.s32.totalorder %s284, %s285
      %p294 = scmp.eq.s32.totalorder %s29, 0
      %p295 = por %p293, %p294
      %p296 = scmp.ne.s32.totalorder %s284, %s285
      %p297 = scmp.eq.s32.totalorder %s30, 1
      %p298 = por %p296, %p297
      %p300 = scmp.ne.s32.totalorder %s285, %s299
      %p301 = scmp.eq.s32.totalorder %s30, 0
      %p302 = por %p300, %p301
      %s304 = sadd.s32 %s303, 1
      %p307 = scmp.eq.s32.totalorder %s24, 1
      %p308 = scmp.ne.s32.totalorder %s303, %s305
      %p309 = scmp.eq.s32.totalorder %s24, 0
      %p310 = por %p308, %p309
      %p311 = scmp.ne.s32.totalorder %s303, %s305
      %p312 = scmp.eq.s32.totalorder %s29, 1
      %p313 = por %p311, %p312
      %p314 = scmp.ne.s32.totalorder %s305, %s306
      %p315 = scmp.eq.s32.totalorder %s29, 0
      %p316 = por %p314, %p315
      %p317 = scmp.ne.s32.totalorder %s305, %s306
      %p318 = scmp.eq.s32.totalorder %s30, 1
      %p319 = por %p317, %p318
      %p321 = scmp.ne.s32.totalorder %s306, %s320
      %p322 = scmp.eq.s32.totalorder %s30, 0
      %p323 = por %p321, %p322
      %s324 = ssub.s32 %s31, %s43
      %s325 = ssub.s32 %s32, %s39
      %s326 = sor.u32 %s324, %s325
      %p327 = scmp.eq.s32.totalorder %s326, 0
      %s329 = sadd.s32 %s328, 1
      %s330 = scalar_select %p327, %s328, %s329
      %p333 = pneg %p327
      %p334 = scmp.eq.s32.totalorder %s24, 1
      %p335 = por %p333, %p334
      %p336 = scmp.ne.s32.totalorder %s328, %s331
      %p337 = scmp.eq.s32.totalorder %s24, 0
      %p338 = por %p336, %p337
      %p339 = scmp.ne.s32.totalorder %s328, %s331
      %p340 = scmp.eq.s32.totalorder %s29, 1
      %p341 = por %p339, %p340
      %p342 = scmp.ne.s32.totalorder %s331, %s332
      %p343 = scmp.eq.s32.totalorder %s29, 0
      %p344 = por %p342, %p343
      %p345 = scmp.ne.s32.totalorder %s331, %s332
      %p346 = scmp.eq.s32.totalorder %s30, 1
      %p347 = por %p345, %p346
      %p349 = scmp.ne.s32.totalorder %s332, %s348
      %p350 = scmp.eq.s32.totalorder %s30, 0
      %p351 = por %p349, %p350
      %p352 = scmp.le.s32.totalorder 1, %s24
      %p353 = scmp.lt.s32.totalorder %s24, 3
      %p354 = pnand %p352, %p353
      %p355 = pneg %p354
      // Predicated region
      $region9: #{tpu_custom_call.1} parent=5 // pred_check
        _
      $region10: #{tpu_custom_call.1} parent=5 // pred_check_branch
        %357 = sbr.rel (%p354) target = $region12
      $region11: #{tpu_custom_call.1} parent=5 // pred_region
        %s358 = ssub.s32 %s24, 1
        // Predicated region
        $region13: #{tpu_custom_call.1} parent=11 // pred_check
          %p359 = pneg %p85
        $region14: #{tpu_custom_call.1} parent=11 // pred_check_branch
          %361 = sbr.rel (%p359) target = $region16
        $region15: #{tpu_custom_call.1} parent=11 // pred_region
          %363 = vsyncadd [#allocation5], 0
          %s364 = sshll.u32 %s1, 4
          %s365 = int_to_ptr.hbm [resolvable:$true] %s364
          %s366 = sshll.u32 [#allocation4], 4
          %s367 = int_to_ptr.vmem [resolvable:$true] %s366
          %372 = dma.hbm_to_vmem [thread:$0]  %s365, 256, %s367, [#allocation5], 64, 64, 4
        $region16: #{tpu_custom_call.1} parent=11 // pred_fallthru
          _
        // Predicated region
        $region17: #{tpu_custom_call.1} parent=11 // pred_check
          %p373 = pneg %p106
        $region18: #{tpu_custom_call.1} parent=11 // pred_check_branch
          %375 = sbr.rel (%p373) target = $region20
        $region19: #{tpu_custom_call.1} parent=11 // pred_region
          _
        $region20: #{tpu_custom_call.1} parent=11 // pred_fallthru
          _
        // Predicated region
        $region21: #{tpu_custom_call.1} parent=11 // pred_check
          %p376 = pneg %p127
        $region22: #{tpu_custom_call.1} parent=11 // pred_check_branch
          %378 = sbr.rel (%p376) target = $region24
        $region23: #{tpu_custom_call.1} parent=11 // pred_region
          _
        $region24: #{tpu_custom_call.1} parent=11 // pred_fallthru
          _
        // Predicated region
        $region25: #{tpu_custom_call.1} parent=11 // pred_check
          %p379 = pneg %p148
        $region26: #{tpu_custom_call.1} parent=11 // pred_check_branch
          %381 = sbr.rel (%p379) target = $region28
        $region27: #{tpu_custom_call.1} parent=11 // pred_region
          _
        $region28: #{tpu_custom_call.1} parent=11 // pred_fallthru
          _
        // Predicated region
        $region29: #{tpu_custom_call.1} parent=11 // pred_check
          %p382 = pneg %p169
        $region30: #{tpu_custom_call.1} parent=11 // pred_check_branch
          %384 = sbr.rel (%p382) target = $region32
        $region31: #{tpu_custom_call.1} parent=11 // pred_region
          _
        $region32: #{tpu_custom_call.1} parent=11 // pred_fallthru
          _
        // Predicated region
        $region33: #{tpu_custom_call.1} parent=11 // pred_check
          %p385 = pneg %p190
        $region34: #{tpu_custom_call.1} parent=11 // pred_check_branch
          %387 = sbr.rel (%p385) target = $region36
        $region35: #{tpu_custom_call.1} parent=11 // pred_region
          _
        $region36: #{tpu_custom_call.1} parent=11 // pred_fallthru
          _
        // Predicated region
        $region37: #{tpu_custom_call.1} parent=11 // pred_check
          %p388 = pneg %p211
        $region38: #{tpu_custom_call.1} parent=11 // pred_check_branch
          %390 = sbr.rel (%p388) target = $region40
        $region39: #{tpu_custom_call.1} parent=11 // pred_region
          %392 = vsyncadd [#allocation8], 0
          %s394 = sshll.u32 %s7, 4
          %s395 = int_to_ptr.hbm [resolvable:$true] %s394
          %s396 = sshll.u32 [#allocation7], 4
          %s397 = int_to_ptr.vmem [resolvable:$true] %s396
          %399 = dma.hbm_to_vmem [thread:$0]  %s395, 16, %s397, [#allocation8]
        $region40: #{tpu_custom_call.1} parent=11 // pred_fallthru
          _
        // Predicated region
        $region41: #{tpu_custom_call.1} parent=11 // pred_check
          %p400 = pneg %p232
        $region42: #{tpu_custom_call.1} parent=11 // pred_check_branch
          %402 = sbr.rel (%p400) target = $region44
        $region43: #{tpu_custom_call.1} parent=11 // pred_region
          %404 = vsyncadd [#allocation8], 0
          %s405 = sshll.u32 %s8, 4
          %s406 = int_to_ptr.hbm [resolvable:$true] %s405
          %s407 = sshll.u32 [#allocation9], 4
          %s408 = int_to_ptr.vmem [resolvable:$true] %s407
          %413 = dma.hbm_to_vmem [thread:$0]  %s406, 1024, %s408, [#allocation8], 128, 128, 8
        $region44: #{tpu_custom_call.1} parent=11 // pred_fallthru
          _
        // Predicated region
        $region45: #{tpu_custom_call.1} parent=11 // pred_check
          %p414 = pneg %p253
        $region46: #{tpu_custom_call.1} parent=11 // pred_check_branch
          %416 = sbr.rel (%p414) target = $region48
        $region47: #{tpu_custom_call.1} parent=11 // pred_region
          _
        $region48: #{tpu_custom_call.1} parent=11 // pred_fallthru
          _
        // Predicated region
        $region49: #{tpu_custom_call.1} parent=11 // pred_check
          %p417 = pneg %p274
        $region50: #{tpu_custom_call.1} parent=11 // pred_check_branch
          %419 = sbr.rel (%p417) target = $region52
        $region51: #{tpu_custom_call.1} parent=11 // pred_region
          _
        $region52: #{tpu_custom_call.1} parent=11 // pred_fallthru
          _
        // Predicated region
        $region53: #{tpu_custom_call.1} parent=11 // pred_check
          %p420 = pneg %p295
        $region54: #{tpu_custom_call.1} parent=11 // pred_check_branch
          %422 = sbr.rel (%p420) target = $region56
        $region55: #{tpu_custom_call.1} parent=11 // pred_region
          _
        $region56: #{tpu_custom_call.1} parent=11 // pred_fallthru
          _
        // Predicated region
        $region57: #{tpu_custom_call.1} parent=11 // pred_check
          %p423 = pneg %p316
        $region58: #{tpu_custom_call.1} parent=11 // pred_check_branch
          %425 = sbr.rel (%p423) target = $region60
        $region59: #{tpu_custom_call.1} parent=11 // pred_region
          _
        $region60: #{tpu_custom_call.1} parent=11 // pred_fallthru
          _
      $region12: #{tpu_custom_call.1} parent=5 // pred_fallthru
        _
      %p426 = scmp.lt.s32.totalorder %s24, 2
      // Predicated region
      $region61: #{tpu_custom_call.1} parent=5 // pred_check
        %p427 = pneg %p426
      $region62: #{tpu_custom_call.1} parent=5 // pred_check_branch
        %429 = sbr.rel (%p427) target = $region64
      $region63: #{tpu_custom_call.1} parent=5 // pred_region
        // Predicated region
        $region65: #{tpu_custom_call.1} parent=63 // pred_check
          %p430 = pneg %p58
        $region66: #{tpu_custom_call.1} parent=63 // pred_check_branch
          %432 = sbr.rel (%p430) target = $region68
        $region67: #{tpu_custom_call.1} parent=63 // pred_region
          %p433 = scmp.lt.s32.totalorder %s31, 1
          %s434 = scalar_select %p433, %s31, 1
          %p435 = scmp.lt.s32.totalorder %s32, 0
          %s436 = scalar_select %p435, %s32, 0
          %s437 = sadd.s32 %s436, %s434
          %s438 = smul.addr %s437, 8
          %s439 = scalar_lea.vmem %s0, %s438
        $region68: #{tpu_custom_call.1} parent=63 // pred_fallthru
          _
      $region64: #{tpu_custom_call.1} parent=5 // pred_fallthru
        _
      %p440 = scmp.le.s32.totalorder 1, %s24
      %p441 = scmp.lt.s32.totalorder %s24, 3
      %p442 = pnand %p440, %p441
      %p443 = pneg %p442
      // Predicated region
      $region69: #{tpu_custom_call.1} parent=5 // pred_check
        _
      $region70: #{tpu_custom_call.1} parent=5 // pred_check_branch
        %445 = sbr.rel (%p442) target = $region72
      $region71: #{tpu_custom_call.1} parent=5 // pred_region
        %s446 = ssub.s32 %s24, 1
        // Predicated region
        $region73: #{tpu_custom_call.1} parent=71 // pred_check
          %p447 = pneg %p85
        $region74: #{tpu_custom_call.1} parent=71 // pred_check_branch
          %449 = sbr.rel (%p447) target = $region76
        $region75: #{tpu_custom_call.1} parent=71 // pred_region
          %451 = dma.done [#allocation5], 256
        $region76: #{tpu_custom_call.1} parent=71 // pred_fallthru
          _
        // Predicated region
        $region77: #{tpu_custom_call.1} parent=71 // pred_check
          %p452 = pneg %p211
        $region78: #{tpu_custom_call.1} parent=71 // pred_check_branch
          %454 = sbr.rel (%p452) target = $region80
        $region79: #{tpu_custom_call.1} parent=71 // pred_region
          %456 = dma.done [#allocation8], 16
        $region80: #{tpu_custom_call.1} parent=71 // pred_fallthru
          _
        // Predicated region
        $region81: #{tpu_custom_call.1} parent=71 // pred_check
          %p457 = pneg %p232
        $region82: #{tpu_custom_call.1} parent=71 // pred_check_branch
          %459 = sbr.rel (%p457) target = $region84
        $region83: #{tpu_custom_call.1} parent=71 // pred_region
          %461 = dma.done [#allocation8], 1024
        $region84: #{tpu_custom_call.1} parent=71 // pred_fallthru
          _
        %p462 = scmp.lt.s32.totalorder %s33, 1
        %s463 = scalar_select %p462, %s33, 1
        %p464 = scmp.lt.s32.totalorder %s34, 0
        %s465 = scalar_select %p464, %s34, 0
        %s466 = sadd.s32 %s465, %s463
        %s467 = smul.addr %s466, 8
        %s468 = scalar_lea.vmem %s0, %s467
        %p469 = pneg %p64
        %p470 = pneg %p61
        %p471 = pneg %p85
        %p472 = pneg %p82
        %p473 = pneg %p106
        %p474 = pneg %p103
        %p475 = pneg %p127
        %p476 = pneg %p124
        %p477 = pneg %p148
        %p478 = pneg %p145
        %p479 = pneg %p169
        %p480 = pneg %p166
        %p481 = pneg %p190
        %p482 = pneg %p187
        %p483 = pneg %p211
        %p484 = pneg %p208
        %p485 = pneg %p232
        %p486 = pneg %p229
        %p487 = pneg %p253
        %p488 = pneg %p250
        %p489 = pneg %p274
        %p490 = pneg %p271
        %p491 = pneg %p295
        %p492 = pneg %p292
        %p493 = pneg %p316
        %p494 = pneg %p313
        %p495 = pneg %p344
        %p496 = pneg %p341
        %s497 = sand.u32 %s331, 1
        %s498 = scalar_lea.sflag [#allocation6], %s497
        %s499 = sand.u32 %s331, 1
        %s500 = smul.addr %s499, 8
        %s501 = scalar_lea.vmem [#allocation10], %s500
        %p502 = scmp.lt.s32.totalorder %s33, 1
        %s503 = scalar_select %p502, %s33, 1
        %p504 = scmp.lt.s32.totalorder %s34, 0
        %s505 = scalar_select %p504, %s34, 0
        %s506 = sadd.s32 %s505, %s503
        %s507 = smul.addr %s506, 8
        %s508 = scalar_lea.vmem %s0, %s507
        %p510 = scmp.eq.s32.totalorder %s34, 0
        // Predicated region
        $region85: #{tpu_custom_call.1} parent=71 // pred_check
          %p511 = pneg %p510
        $region86: #{tpu_custom_call.1} parent=71 // pred_check_branch
          %513 = sbr.rel (%p511) target = $region88
        $region87: #{tpu_custom_call.1} parent=71 // pred_region
          %514 = vst [vmem:[#allocation2] sm:$0xff] 0.0
          %515 = vst [vmem:[#allocation2 + $0x8] sm:$0xff] 0.0
          %516 = vst [vmem:[#allocation2 + $0x10] sm:$0xff] 0.0
          %517 = vst [vmem:[#allocation2 + $0x18] sm:$0xff] 0.0
          %518 = vst [vmem:[#allocation2 + $0x20] sm:$0xff] 0.0
          %519 = vst [vmem:[#allocation2 + $0x28] sm:$0xff] 0.0
          %520 = vst [vmem:[#allocation2 + $0x30] sm:$0xff] 0.0
          %521 = vst [vmem:[#allocation2 + $0x38] sm:$0xff] 0.0
          %vm522 = vcmask 523264
          %523 = vst.msk [vmem:[#allocation3] sm:$0xff] %vm522, 0.0
        $region88: #{tpu_custom_call.1} parent=71 // pred_fallthru
          _
        %v524 = vld [vmem:[%s508] sm:$0xff]
        %v525 = vpack.c.bf16 %v524, %v524
        %v526 = vld [vmem:[#allocation4] sm:$0xf]
        %v527 = vld [vmem:[#allocation4 + $0x4] sm:$0xf]
        %v528 = vld [vmem:[#allocation4 + $0x8] sm:$0xf]
        %v529 = vld [vmem:[#allocation4 + $0xc] sm:$0xf]
        %v534 = vunpack.c.l.b16 %v526
        %v535 = vunpack.c.l.b16 %v527
        %v536 = vunpack.c.l.b16 %v528
        %v537 = vunpack.c.l.b16 %v529
        %v538 = vpack.c.b16 %v535, %v534
        %v539 = vpack.c.b16 %v537, %v536
        %vm542 = vcmask 261120
        %v544 = vsel %vm542, %v525, 0
        %546 = vmatpush.bf16.msra.mxu0 0
        %547 = vmatpush.bf16.msra.mxu0 0
        %548 = vmatpush.bf16.msra.mxu0 0
        %549 = vmatpush.bf16.msra.mxu0 0
        %550 = vmatpush.bf16.msra.mxu0 0
        %551 = vmatpush.bf16.msra.mxu0 0
        %552 = vmatpush.bf16.msra.mxu0 %v539
        %553 = vmatpush.bf16.msra.mxu0 %v538
        %554 = vmatmul.bf16.gmra.mxu0 %v544
        %v555 = vpop.f32.mrf.mxu0
        %v556 = vadd.f32 0.0, %v555
        %v557 = vpop.f32.mrf.mxu0
        %558 = vdwg.mxu0
        %vm559 = vcmask 523264
        %560 = vst.msk [vmem:[#allocation3 + $0x8] sm:$0xff] %vm559, %v556
        %v561 = vld [vmem:[%s2] sm:$0xf]
        %v562 = vld [vmem:[#allocation3 + $0x5] sm:$0xff]
        %v563 = vperm.slane %v561, 0
        %v564 = vmul.f32 %v562, %v563
        %v565 = vadd.f32 %v564, 0.0
        %v566 = vld [vmem:[#allocation3 + $0x6] sm:$0xff]
        %v567 = vperm.slane %v561, 1
        %v568 = vmul.f32 %v566, %v567
        %v569 = vadd.f32 %v565, %v568
        %v570 = vld [vmem:[#allocation3 + $0x7] sm:$0xff]
        %v571 = vperm.slane %v561, 2
        %v572 = vmul.f32 %v570, %v571
        %v573 = vadd.f32 %v569, %v572
        %v574 = vld [vmem:[#allocation3 + $0x8] sm:$0xff]
        %v575 = vperm.slane %v561, 3
        %v576 = vmul.f32 %v574, %v575
        %v577 = vadd.f32 %v573, %v576
        %v578 = vld [vmem:[%s3] sm:$0x1]
        %v580 = vperm.slane %v578, 0
        %v582 = vadd.f32 %v577, %v580
        %v583 = vxor.u32 %v582, 2147483648
        %v584 = vmul.f32 %v583, 1.442695
        %v585 = vpow.pop %v584
        %v586 = vadd.f32 %v585, 1.0
        %v587 = vrcp.pop %v586
        %v588 = vmul.f32 %v586, %v587
        %v589 = vsub.f32 1.0, %v588
        %v590 = vmul.f32 %v587, %v589
        %v591 = vadd.f32 %v587, %v590
        %vm592 = vweird.f32 %v586
        %vm593 = vweird.f32 %v587
        %vm594 = vmor %vm592, %vm593
        %v595 = vsel %vm594, %v587, %v591
        %v596 = vand.u32 2147483647, %v586
        %vm597 = vcmp.eq.f32.partialorder %v596, 8.507059e+37
        %v598 = vand.u32 %v586, 2147483648
        %v599 = vor.u32 1.1754944e-38, %v598
        %v600 = vsel %vm597, %v599, %v595
        %v601 = vmul.f32 1.0, %v600
        %v602 = vmul.f32 %v582, %v601
        %v603 = vpack.c.bf16 %v602, %v602
        %v604 = vpack.c.bf16 %v556, %v556
        %v605 = vld [vmem:[%s4] sm:$0xff]
        %v606 = vld [vmem:[%s4 + $0x8] sm:$0xff]
        %v607 = vld [vmem:[%s4 + $0x10] sm:$0xff]
        %v608 = vld [vmem:[%s4 + $0x18] sm:$0xff]
        %v609 = vld [vmem:[%s4 + $0x20] sm:$0xff]
        %v610 = vld [vmem:[%s4 + $0x28] sm:$0xff]
        %v611 = vld [vmem:[%s4 + $0x30] sm:$0xff]
        %v612 = vld [vmem:[%s4 + $0x38] sm:$0xff]
        %v621 = vunpack.c.l.b16 %v605
        %v622 = vunpack.c.h.b16 %v605
        %v623 = vunpack.c.l.b16 %v606
        %v624 = vunpack.c.h.b16 %v606
        %v625 = vunpack.c.l.b16 %v607
        %v626 = vunpack.c.h.b16 %v607
        %v627 = vunpack.c.l.b16 %v608
        %v628 = vunpack.c.h.b16 %v608
        %v629 = vunpack.c.l.b16 %v609
        %v630 = vunpack.c.h.b16 %v609
        %v631 = vunpack.c.l.b16 %v610
        %v632 = vunpack.c.h.b16 %v610
        %v633 = vunpack.c.l.b16 %v611
        %v634 = vunpack.c.h.b16 %v611
        %v635 = vunpack.c.l.b16 %v612
        %v636 = vunpack.c.h.b16 %v612
        %v637 = vpack.c.b16 %v623, %v621
        %v638 = vpack.c.b16 %v624, %v622
        %v639 = vpack.c.b16 %v627, %v625
        %v640 = vpack.c.b16 %v628, %v626
        %v641 = vpack.c.b16 %v631, %v629
        %v642 = vpack.c.b16 %v632, %v630
        %v643 = vpack.c.b16 %v635, %v633
        %v644 = vpack.c.b16 %v636, %v634
        %v654 = vsel %vm559, %v603, 0
        %656 = vmatpush.bf16.msra.mxu0 0
        %657 = vmatpush.bf16.msra.mxu0 0
        %658 = vmatpush.bf16.msra.mxu0 0
        %659 = vmatpush.bf16.msra.mxu0 0
        %660 = vmatpush.bf16.msra.mxu0 %v643
        %661 = vmatpush.bf16.msra.mxu0 %v641
        %662 = vmatpush.bf16.msra.mxu0 %v639
        %663 = vmatpush.bf16.msra.mxu0 %v637
        %664 = vmatmul.bf16.gmra.mxu0 %v654
        %v665 = vpop.f32.mrf.mxu0
        %v666 = vadd.f32 0.0, %v665
        %v667 = vpop.f32.mrf.mxu0
        %668 = vdwg.mxu0
        %669 = vmatpush.bf16.msra.mxu0 0
        %670 = vmatpush.bf16.msra.mxu0 0
        %671 = vmatpush.bf16.msra.mxu0 0
        %672 = vmatpush.bf16.msra.mxu0 0
        %673 = vmatpush.bf16.msra.mxu0 %v644
        %674 = vmatpush.bf16.msra.mxu0 %v642
        %675 = vmatpush.bf16.msra.mxu0 %v640
        %676 = vmatpush.bf16.msra.mxu0 %v638
        %677 = vmatmul.bf16.gmra.mxu0 %v654
        %v678 = vpop.f32.mrf.mxu0
        %v679 = vadd.f32 0.0, %v678
        %v680 = vpop.f32.mrf.mxu0
        %681 = vdwg.mxu0
        %v682 = vld [vmem:[%s5] sm:$0xf]
        %v683 = vld [vmem:[%s5 + $0x4] sm:$0xf]
        %v684 = vld [vmem:[%s5 + $0x8] sm:$0xf]
        %v685 = vld [vmem:[%s5 + $0xc] sm:$0xf]
        %v686 = vld [vmem:[%s5 + $0x10] sm:$0xf]
        %v687 = vld [vmem:[%s5 + $0x14] sm:$0xf]
        %v688 = vld [vmem:[%s5 + $0x18] sm:$0xf]
        %v689 = vld [vmem:[%s5 + $0x1c] sm:$0xf]
        %v698 = vunpack.c.l.b16 %v682
        %v699 = vunpack.c.l.b16 %v683
        %v700 = vunpack.c.l.b16 %v684
        %v701 = vunpack.c.l.b16 %v685
        %v702 = vunpack.c.l.b16 %v686
        %v703 = vunpack.c.l.b16 %v687
        %v704 = vunpack.c.l.b16 %v688
        %v705 = vunpack.c.l.b16 %v689
        %v706 = vpack.c.b16 %v699, %v698
        %v707 = vpack.c.b16 %v701, %v700
        %v708 = vpack.c.b16 %v703, %v702
        %v709 = vpack.c.b16 %v705, %v704
        %v715 = vsel %vm559, %v604, 0
        %717 = vmatpush.bf16.msra.mxu0 0
        %718 = vmatpush.bf16.msra.mxu0 0
        %719 = vmatpush.bf16.msra.mxu0 0
        %720 = vmatpush.bf16.msra.mxu0 0
        %721 = vmatpush.bf16.msra.mxu0 %v709
        %722 = vmatpush.bf16.msra.mxu0 %v708
        %723 = vmatpush.bf16.msra.mxu0 %v707
        %724 = vmatpush.bf16.msra.mxu0 %v706
        %725 = vmatmul.bf16.gmra.mxu0 %v715
        %v726 = vpop.f32.mrf.mxu0
        %v727 = vadd.f32 0.0, %v726
        %v728 = vpop.f32.mrf.mxu0
        %729 = vdwg.mxu0
        %v730 = vpack.c.bf16 %v727, %v727
        %v731 = vld [vmem:[%s6] sm:$0xf]
        %v732 = vld [vmem:[%s6 + $0x4] sm:$0xf]
        %v733 = vld [vmem:[%s6 + $0x8] sm:$0xf]
        %v734 = vld [vmem:[%s6 + $0xc] sm:$0xf]
        %v735 = vld [vmem:[%s6 + $0x10] sm:$0xf]
        %v736 = vld [vmem:[%s6 + $0x14] sm:$0xf]
        %v737 = vld [vmem:[%s6 + $0x18] sm:$0xf]
        %v738 = vld [vmem:[%s6 + $0x1c] sm:$0xf]
        %v739 = vld [vmem:[%s6 + $0x20] sm:$0xf]
        %v740 = vld [vmem:[%s6 + $0x24] sm:$0xf]
        %v741 = vld [vmem:[%s6 + $0x28] sm:$0xf]
        %v742 = vld [vmem:[%s6 + $0x2c] sm:$0xf]
        %v743 = vld [vmem:[%s6 + $0x30] sm:$0xf]
        %v744 = vld [vmem:[%s6 + $0x34] sm:$0xf]
        %v745 = vld [vmem:[%s6 + $0x38] sm:$0xf]
        %v746 = vld [vmem:[%s6 + $0x3c] sm:$0xf]
        %v747 = vld [vmem:[#allocation7] sm:$0x1]
        %v749 = vperm.slane %v747, 0
        %v767 = vunpack.c.l.b16 %v731
        %v768 = vunpack.c.l.b16 %v732
        %v769 = vunpack.c.l.b16 %v733
        %v770 = vunpack.c.l.b16 %v734
        %v771 = vunpack.c.l.b16 %v735
        %v772 = vunpack.c.l.b16 %v736
        %v773 = vunpack.c.l.b16 %v737
        %v774 = vunpack.c.l.b16 %v738
        %v775 = vunpack.c.l.b16 %v739
        %v776 = vunpack.c.l.b16 %v740
        %v777 = vunpack.c.l.b16 %v741
        %v778 = vunpack.c.l.b16 %v742
        %v779 = vunpack.c.l.b16 %v743
        %v780 = vunpack.c.l.b16 %v744
        %v781 = vunpack.c.l.b16 %v745
        %v782 = vunpack.c.l.b16 %v746
        %v783 = vpack.c.b16 %v768, %v767
        %v784 = vpack.c.b16 %v770, %v769
        %v785 = vpack.c.b16 %v772, %v771
        %v786 = vpack.c.b16 %v774, %v773
        %v787 = vpack.c.b16 %v776, %v775
        %v788 = vpack.c.b16 %v778, %v777
        %v789 = vpack.c.b16 %v780, %v779
        %v790 = vpack.c.b16 %v782, %v781
        %799 = vmatpush.bf16.msra.mxu0 %v790
        %800 = vmatpush.bf16.msra.mxu0 %v789
        %801 = vmatpush.bf16.msra.mxu0 %v788
        %802 = vmatpush.bf16.msra.mxu0 %v787
        %803 = vmatpush.bf16.msra.mxu0 %v786
        %804 = vmatpush.bf16.msra.mxu0 %v785
        %805 = vmatpush.bf16.msra.mxu0 %v784
        %806 = vmatpush.bf16.msra.mxu0 %v783
        %807 = vmatmul.bf16.gmra.mxu0 %v730
        %v808 = vpop.f32.mrf.mxu0
        %v809 = vadd.f32 %v749, %v808
        %v810 = vpop.f32.mrf.mxu0
        %811 = vdwg.mxu0
        %v812 = vxor.u32 %v809, 2147483648
        %v813 = vmul.f32 %v812, 1.442695
        %v814 = vpow.pop %v813
        %v815 = vadd.f32 %v814, 1.0
        %v816 = vrcp.pop %v815
        %v817 = vmul.f32 %v815, %v816
        %v818 = vsub.f32 1.0, %v817
        %v819 = vmul.f32 %v816, %v818
        %v820 = vadd.f32 %v816, %v819
        %vm821 = vweird.f32 %v815
        %vm822 = vweird.f32 %v816
        %vm823 = vmor %vm821, %vm822
        %v824 = vsel %vm823, %v816, %v820
        %v825 = vand.u32 2147483647, %v815
        %vm826 = vcmp.eq.f32.partialorder %v825, 8.507059e+37
        %v827 = vand.u32 %v815, 2147483648
        %v828 = vor.u32 1.1754944e-38, %v827
        %v829 = vsel %vm826, %v828, %v824
        %v830 = vmul.f32 1.0, %v829
        %v831 = vmul.f32 %v830, %v556
        %v832 = vpack.c.bf16 %v831, %v831
        %v833 = vld [vmem:[#allocation9] sm:$0xff]
        %v834 = vld [vmem:[#allocation9 + $0x8] sm:$0xff]
        %v835 = vld [vmem:[#allocation9 + $0x10] sm:$0xff]
        %v836 = vld [vmem:[#allocation9 + $0x18] sm:$0xff]
        %v837 = vld [vmem:[#allocation9 + $0x20] sm:$0xff]
        %v838 = vld [vmem:[#allocation9 + $0x28] sm:$0xff]
        %v839 = vld [vmem:[#allocation9 + $0x30] sm:$0xff]
        %v840 = vld [vmem:[#allocation9 + $0x38] sm:$0xff]
        %v841 = vld [vmem:[%s9] sm:$0x3]
        %v843 = vperm.slane %v841, 0
        %v844 = vperm.slane %v841, 1
        %v855 = vunpack.c.l.b16 %v833
        %v856 = vunpack.c.h.b16 %v833
        %v857 = vunpack.c.l.b16 %v834
        %v858 = vunpack.c.h.b16 %v834
        %v859 = vunpack.c.l.b16 %v835
        %v860 = vunpack.c.h.b16 %v835
        %v861 = vunpack.c.l.b16 %v836
        %v862 = vunpack.c.h.b16 %v836
        %v863 = vunpack.c.l.b16 %v837
        %v864 = vunpack.c.h.b16 %v837
        %v865 = vunpack.c.l.b16 %v838
        %v866 = vunpack.c.h.b16 %v838
        %v867 = vunpack.c.l.b16 %v839
        %v868 = vunpack.c.h.b16 %v839
        %v869 = vunpack.c.l.b16 %v840
        %v870 = vunpack.c.h.b16 %v840
        %v871 = vpack.c.b16 %v857, %v855
        %v872 = vpack.c.b16 %v858, %v856
        %v873 = vpack.c.b16 %v861, %v859
        %v874 = vpack.c.b16 %v862, %v860
        %v875 = vpack.c.b16 %v865, %v863
        %v876 = vpack.c.b16 %v866, %v864
        %v877 = vpack.c.b16 %v869, %v867
        %v878 = vpack.c.b16 %v870, %v868
        %887 = vmatpush.bf16.msra.mxu0 0
        %888 = vmatpush.bf16.msra.mxu0 0
        %889 = vmatpush.bf16.msra.mxu0 0
        %890 = vmatpush.bf16.msra.mxu0 0
        %891 = vmatpush.bf16.msra.mxu0 %v877
        %892 = vmatpush.bf16.msra.mxu0 %v875
        %893 = vmatpush.bf16.msra.mxu0 %v873
        %894 = vmatpush.bf16.msra.mxu0 %v871
        %895 = vmatmul.bf16.gmra.mxu0 %v654
        %v896 = vpop.f32.mrf.mxu0
        %v897 = vadd.f32 %v843, %v896
        %v898 = vpop.f32.mrf.mxu0
        %899 = vdwg.mxu0
        %900 = vmatpush.bf16.msra.mxu0 0
        %901 = vmatpush.bf16.msra.mxu0 0
        %902 = vmatpush.bf16.msra.mxu0 0
        %903 = vmatpush.bf16.msra.mxu0 0
        %904 = vmatpush.bf16.msra.mxu0 %v878
        %905 = vmatpush.bf16.msra.mxu0 %v876
        %906 = vmatpush.bf16.msra.mxu0 %v874
        %907 = vmatpush.bf16.msra.mxu0 %v872
        %908 = vmatmul.bf16.gmra.mxu0 %v654
        %v909 = vpop.f32.mrf.mxu0
        %v910 = vadd.f32 %v844, %v909
        %v911 = vpop.f32.mrf.mxu0
        %912 = vdwg.mxu0
        %v913 = vmax.f32 %v897, 0.0
        %vm914 = vcmp.ne.f32.partialorder %v897, %v897
        %v915 = vadd.f32 %v897, 0.0
        %v916 = vand.u32 2147483647, %v897
        %v917 = vsub.f32 0.0, %v916
        %v918 = vmul.f32 %v917, 1.442695
        %v919 = vpow.pop %v918
        %v920 = vadd.f32 %v919, 1.0
        %v921 = vlog2.pop %v920
        %v922 = vmul.f32 %v921, 0.6931472
        %v923 = vmul.f32 -0.5, %v919
        %v924 = vadd.f32 %v923, 1.0
        %v925 = vmul.f32 %v924, %v919
        %v926 = vand.u32 2147483647, %v919
        %vm927 = vcmp.lt.f32.partialorder %v926, 0.0004427343
        %v928 = vsel %vm927, %v925, %v922
        %v929 = vadd.f32 %v913, %v928
        %v930 = vsel %vm914, %v915, %v929
        %v931 = vxor.u32 %v910, 2147483648
        %v932 = vmul.f32 %v931, 1.442695
        %v933 = vpow.pop %v932
        %v934 = vadd.f32 %v933, 1.0
        %v935 = vrcp.pop %v934
        %v936 = vmul.f32 %v934, %v935
        %v937 = vsub.f32 1.0, %v936
        %v938 = vmul.f32 %v935, %v937
        %v939 = vadd.f32 %v935, %v938
        %vm940 = vweird.f32 %v934
        %vm941 = vweird.f32 %v935
        %vm942 = vmor %vm940, %vm941
        %v943 = vsel %vm942, %v935, %v939
        %v944 = vand.u32 2147483647, %v934
        %vm945 = vcmp.eq.f32.partialorder %v944, 8.507059e+37
        %v946 = vand.u32 %v934, 2147483648
        %v947 = vor.u32 1.1754944e-38, %v946
        %v948 = vsel %vm945, %v947, %v943
        %v949 = vmul.f32 1.0, %v948
        %v950 = vmax.f32 %v930, 1e-24
        %v951 = vlog2.pop %v950
        %v952 = vmul.f32 %v951, 0.6931472
        %v953 = vmul.f32 %v949, %v952
        %v954 = vmul.f32 %v953, 1.442695
        %v955 = vpow.pop %v954
        %v956 = vsub.f32 0.0, %v930
        %v957 = vmul.f32 %v956, %v949
        %v958 = vmul.f32 %v679, %v679
        %959 = vadd.xlane.f32.xlu0 %v958
        %v960 = vpop.xlane.xlu0 %959
        %v961 = vrsqrt.pop %v960
        %v962 = vmul.f32 %v961, %v960
        %v963 = vmul.f32 %v962, %v961
        %v964 = vmul.f32 0.5, %v963
        %v965 = vsub.f32 1.5, %v964
        %v966 = vmul.f32 %v961, %v965
        %v967 = vmul.f32 %v960, %v966
        %vm968 = vcmp.eq.f32.partialorder %v960, inf
        %v969 = vsel %vm968, %v960, %v967
        %vm970 = vcmp.eq.f32.partialorder %v960, 0.0
        %v971 = vand.u32 %v960, 2147483648
        %v972 = vsel %vm970, %v971, %v969
        %v973 = vmax.f32 %v972, 1e-12
        %v974 = vrcp.pop %v973
        %v975 = vmul.f32 %v973, %v974
        %v976 = vsub.f32 1.0, %v975
        %v977 = vmul.f32 %v974, %v976
        %v978 = vadd.f32 %v974, %v977
        %vm979 = vweird.f32 %v973
        %vm980 = vweird.f32 %v974
        %vm981 = vmor %vm979, %vm980
        %v982 = vsel %vm981, %v974, %v978
        %v983 = vand.u32 2147483647, %v973
        %vm984 = vcmp.eq.f32.partialorder %v983, 8.507059e+37
        %v985 = vand.u32 %v973, 2147483648
        %v986 = vor.u32 1.1754944e-38, %v985
        %v987 = vsel %vm984, %v986, %v982
        %v988 = vmul.f32 %v679, %v987
        %v989 = vmul.f32 %v988, %v955
        %v990 = vmul.f32 %v666, 0.125
        %v991 = vlaneseq
        %v992 = vshrl.u32 %v991, 7
        %v993 = vlaneseq
        %v994 = vand.u32 %v993, 127
        %vm995 = vcmp.ge.s32.totalorder %v992, %v994
        %v996 = vsel %vm995, 1, 0
        %v997 = vcvt.s32.f32 %v996
        %v998 = vld [vmem:[#allocation2] sm:$0xff]
        %v999 = vld [vmem:[#allocation2 + $0x8] sm:$0xff]
        %v1000 = vld [vmem:[#allocation2 + $0x10] sm:$0xff]
        %v1001 = vld [vmem:[#allocation2 + $0x18] sm:$0xff]
        %v1002 = vld [vmem:[#allocation2 + $0x20] sm:$0xff]
        %v1003 = vld [vmem:[#allocation2 + $0x28] sm:$0xff]
        %v1004 = vld [vmem:[#allocation2 + $0x30] sm:$0xff]
        %v1005 = vld [vmem:[#allocation2 + $0x38] sm:$0xff]
        %vm1006 = vcmask 64512
        %v1008 = vsel %vm1006, %v997, 0
        %1010 = vmatpush.msra.mxu0 0.0
        %1011 = vmatpush.msra.mxu0 0.0
        %1012 = vmatpush.msra.mxu0 0.0
        %1013 = vmatpush.msra.mxu0 0.0
        %1014 = vmatpush.msra.mxu0 0.0
        %1015 = vmatpush.msra.mxu0 0.0
        %1016 = vmatpush.msra.mxu0 0.0
        %1017 = vmatpush.msra.mxu0 0.0
        %1018 = vmatpush.msra.mxu0 0.0
        %1019 = vmatpush.msra.mxu0 0.0
        %1020 = vmatpush.msra.mxu0 0.0
        %1021 = vmatpush.msra.mxu0 0.0
        %1022 = vmatpush.msra.mxu0 0.0
        %1023 = vmatpush.msra.mxu0 0.0
        %1024 = vmatpush.msra.mxu0 0.0
        %1025 = vmatpush.msra.mxu0 %v957
        %1026 = vmatmul.f32.gmra.mxu0 %v1008
        %v1027 = vpop.f32.mrf.mxu0
        %v1028 = vadd.f32 0.0, %v1027
        %1029 = vdwg.mxu0
        %v1030 = vmul.f32 %v1028, 0.5
        %v1031 = vmul.f32 %v1030, 1.442695
        %v1032 = vpow.pop %v1031
        %v1033 = vperm.slane %v1030, 7
        %v1034 = vsub.f32 %v1028, %v1033
        %v1035 = vmax.f32 %v1034, -80.0
        %v1036 = vmin.f32 %v1035, 80.0
        %v1037 = vmul.f32 %v1036, 1.442695
        %v1038 = vpow.pop %v1037
        %v1039 = vrcp.pop %v1038
        %v1040 = vmul.f32 %v1038, %v1039
        %v1041 = vsub.f32 1.0, %v1040
        %v1042 = vmul.f32 %v1039, %v1041
        %v1043 = vadd.f32 %v1039, %v1042
        %vm1044 = vweird.f32 %v1038
        %vm1045 = vweird.f32 %v1039
        %vm1046 = vmor %vm1044, %vm1045
        %v1047 = vsel %vm1046, %v1039, %v1043
        %v1048 = vand.u32 2147483647, %v1038
        %vm1049 = vcmp.eq.f32.partialorder %v1048, 8.507059e+37
        %v1050 = vand.u32 %v1038, 2147483648
        %v1051 = vor.u32 1.1754944e-38, %v1050
        %v1052 = vsel %vm1049, %v1051, %v1047
        %v1053 = vmul.f32 %v990, %v1038
        %v1054 = vpack.c.bf16 %v1053, %v1053
        %v1055 = vmul.f32 %v989, %v1052
        %v1056 = vpack.c.bf16 %v1055, %v1055
        %v1057 = vperm.slane %v1032, 7
        %v1058 = vmul.f32 %v1038, %v1057
        %v1059 = vmul.f32 %v990, %v1058
        %v1060 = vpack.c.bf16 %v1059, %v1059
        %v1061 = vmul.f32 %v1052, %v1057
        %v1062 = vmul.f32 %v989, %v1061
        %v1063 = vpack.c.bf16 %v1062, %v1062
        %v1064 = vpack.c.bf16 %v999, %v998
        %v1065 = vpack.c.bf16 %v1001, %v1000
        %v1066 = vpack.c.bf16 %v1003, %v1002
        %v1067 = vpack.c.bf16 %v1005, %v1004
        %1068 = vmatpush.bf16.xpose.msra.mxu0 0
        %1069 = vmatpush.bf16.xpose.msra.mxu0 0
        %1070 = vmatpush.bf16.xpose.msra.mxu0 0
        %1071 = vmatpush.bf16.xpose.msra.mxu0 0
        %1072 = vmatpush.bf16.xpose.msra.mxu0 0
        %1073 = vmatpush.bf16.xpose.msra.mxu0 0
        %1074 = vmatpush.bf16.xpose.msra.mxu0 0
        %1075 = vmatpush.bf16.xpose.msra.mxu0 %v1056
        %1076 = vmatmul.bf16.gmra.mxu0 %v1054
        %v1077 = vpop.f32.mrf.mxu0
        %v1078 = vadd.f32 0.0, %v1077
        %v1079 = vpop.f32.mrf.mxu0
        %1080 = vdwg.mxu0
        %v1081 = vsel %vm995, %v1078, 0.0
        %v1082 = vpack.c.bf16 %v1081, %v1081
        %v1084 = vsel %vm1006, %v1082, 0
        %vm1086 = vcmask 1043456
        %v1088 = vsel %vm1086, %v832, 0
        %1090 = vmatpush.bf16.msra.mxu0 0
        %1091 = vmatpush.bf16.msra.mxu0 0
        %1092 = vmatpush.bf16.msra.mxu0 0
        %1093 = vmatpush.bf16.msra.mxu0 0
        %1094 = vmatpush.bf16.msra.mxu0 0
        %1095 = vmatpush.bf16.msra.mxu0 0
        %1096 = vmatpush.bf16.msra.mxu0 0
        %1097 = vmatpush.bf16.msra.mxu0 %v1088
        %1098 = vmatmul.bf16.gmra.mxu0 %v1084
        %v1099 = vpop.f32.mrf.mxu0
        %v1100 = vadd.f32 0.0, %v1099
        %v1101 = vpop.f32.mrf.mxu0
        %1102 = vdwg.mxu0
        %1103 = vmatpush.bf16.xpose.msra.mxu0 0
        %1104 = vmatpush.bf16.xpose.msra.mxu0 0
        %1105 = vmatpush.bf16.xpose.msra.mxu0 0
        %1106 = vmatpush.bf16.xpose.msra.mxu0 0
        %1107 = vmatpush.bf16.xpose.msra.mxu0 %v1067
        %1108 = vmatpush.bf16.xpose.msra.mxu0 %v1066
        %1109 = vmatpush.bf16.xpose.msra.mxu0 %v1065
        %1110 = vmatpush.bf16.xpose.msra.mxu0 %v1064
        %1111 = vmatmul.bf16.gmra.mxu0 %v1060
        %v1112 = vpop.f32.mrf.mxu0
        %v1113 = vadd.f32 %v1100, %v1112
        %v1114 = vpop.f32.mrf.mxu0
        %1115 = vdwg.mxu0
        %v1116 = vmul.f32 %v1032, %v1032
        %v1117 = vperm.slane %v1116, 7
        %v1118 = vmul.f32 %v998, %v1117
        %v1119 = vmul.f32 %v999, %v1117
        %v1120 = vmul.f32 %v1000, %v1117
        %v1121 = vmul.f32 %v1001, %v1117
        %v1122 = vmul.f32 %v1002, %v1117
        %v1123 = vmul.f32 %v1003, %v1117
        %v1124 = vmul.f32 %v1004, %v1117
        %v1125 = vmul.f32 %v1005, %v1117
        %1126 = vxpose.xlu0.c.b16.start [1/8] %v832, 128
        %1127 = vxpose.xlu0.c.b16.cont [2/8] 0, 128
        %1128 = vxpose.xlu0.c.b16.cont [3/8] 0, 128
        %1129 = vxpose.xlu0.c.b16.cont [4/8] 0, 128
        %1130 = vxpose.xlu0.c.b16.cont [5/8] 0, 128
        %1131 = vxpose.xlu0.c.b16.cont [6/8] 0, 128
        %1132 = vxpose.xlu0.c.b16.cont [7/8] 0, 128
        %1133 = vxpose.xlu0.c.b16.end [8/8] 0, 128
        %v1134 = vpop.trf.xlu0
        %v1135 = vpop.trf.xlu0
        %v1136 = vpop.trf.xlu0
        %v1137 = vpop.trf.xlu0
        %v1138 = vpop.trf.xlu0
        %v1139 = vpop.trf.xlu0
        %v1140 = vpop.trf.xlu0
        %v1141 = vpop.trf.xlu0
        %v1143 = vsel %vm1006, %v1134, 0
        %v1146 = vsel %vm1006, %v1135, 0
        %v1149 = vsel %vm1006, %v1136, 0
        %v1152 = vsel %vm1006, %v1137, 0
        %v1155 = vsel %vm1086, %v1063, 0
        %1157 = vmatpush.bf16.msra.mxu0 0
        %1158 = vmatpush.bf16.msra.mxu0 0
        %1159 = vmatpush.bf16.msra.mxu0 0
        %1160 = vmatpush.bf16.msra.mxu0 0
        %1161 = vmatpush.bf16.msra.mxu0 0
        %1162 = vmatpush.bf16.msra.mxu0 0
        %1163 = vmatpush.bf16.msra.mxu0 0
        %1164 = vmatpush.bf16.msra.mxu0 %v1155
        %1165 = vmatmul.bf16.gmra.mxu0 %v1143
        %v1166 = vpop.f32.mrf.mxu0
        %v1167 = vadd.f32 0.0, %v1166
        %v1168 = vpop.f32.mrf.mxu0
        %v1169 = vadd.f32 0.0, %v1168
        %1170 = vmatmul.bf16.gmra.mxu0 %v1146
        %v1171 = vpop.f32.mrf.mxu0
        %v1172 = vadd.f32 0.0, %v1171
        %v1173 = vpop.f32.mrf.mxu0
        %v1174 = vadd.f32 0.0, %v1173
        %1175 = vmatmul.bf16.gmra.mxu0 %v1149
        %v1176 = vpop.f32.mrf.mxu0
        %v1177 = vadd.f32 0.0, %v1176
        %v1178 = vpop.f32.mrf.mxu0
        %v1179 = vadd.f32 0.0, %v1178
        %1180 = vmatmul.bf16.gmra.mxu0 %v1152
        %v1181 = vpop.f32.mrf.mxu0
        %v1182 = vadd.f32 0.0, %v1181
        %v1183 = vpop.f32.mrf.mxu0
        %v1184 = vadd.f32 0.0, %v1183
        %1185 = vdwg.mxu0
        %v1186 = vadd.f32 %v1118, %v1167
        %v1187 = vadd.f32 %v1119, %v1169
        %v1188 = vadd.f32 %v1120, %v1172
        %v1189 = vadd.f32 %v1121, %v1174
        %v1190 = vadd.f32 %v1122, %v1177
        %v1191 = vadd.f32 %v1123, %v1179
        %v1192 = vadd.f32 %v1124, %v1182
        %v1193 = vadd.f32 %v1125, %v1184
        %1194 = vst [vmem:[#allocation2] sm:$0xff] %v1186
        %1195 = vst [vmem:[#allocation2 + $0x8] sm:$0xff] %v1187
        %1196 = vst [vmem:[#allocation2 + $0x10] sm:$0xff] %v1188
        %1197 = vst [vmem:[#allocation2 + $0x18] sm:$0xff] %v1189
        %1198 = vst [vmem:[#allocation2 + $0x20] sm:$0xff] %v1190
        %1199 = vst [vmem:[#allocation2 + $0x28] sm:$0xff] %v1191
        %1200 = vst [vmem:[#allocation2 + $0x30] sm:$0xff] %v1192
        %1201 = vst [vmem:[#allocation2 + $0x38] sm:$0xff] %v1193
        %v1202 = vld [vmem:[%s10] sm:$0x1]
        %v1204 = vperm.slane %v1202, 0
        %v1206 = vmul.f32 %v602, %v1204
        %v1207 = vadd.f32 %v1113, %v1206
        %v1208 = vxor.u32 %v556, 2147483648
        %v1209 = vmul.f32 %v1208, 1.442695
        %v1210 = vpow.pop %v1209
        %v1211 = vadd.f32 %v1210, 1.0
        %v1212 = vrcp.pop %v1211
        %v1213 = vmul.f32 %v1211, %v1212
        %v1214 = vsub.f32 1.0, %v1213
        %v1215 = vmul.f32 %v1212, %v1214
        %v1216 = vadd.f32 %v1212, %v1215
        %vm1217 = vweird.f32 %v1211
        %vm1218 = vweird.f32 %v1212
        %vm1219 = vmor %vm1217, %vm1218
        %v1220 = vsel %vm1219, %v1212, %v1216
        %v1221 = vand.u32 2147483647, %v1211
        %vm1222 = vcmp.eq.f32.partialorder %v1221, 8.507059e+37
        %v1223 = vand.u32 %v1211, 2147483648
        %v1224 = vor.u32 1.1754944e-38, %v1223
        %v1225 = vsel %vm1222, %v1224, %v1220
        %v1226 = vmul.f32 1.0, %v1225
        %v1227 = vmul.f32 %v556, %v1226
        %1229 = vrot.lane.b32.xlu0 %v1227, 64
        %v1230 = vpop.permute.xlu0 %1229
        %v1232 = vmul.f32 %v1207, %v1230
        %v1233 = vmul.f32 %v1232, %v1232
        %v1234 = vsel %vm559, %v1233, 0.0
        %1235 = vadd.xlane.f32.xlu0 %v1234
        %v1236 = vpop.xlane.xlu0 %1235
        %v1237 = vrcp.pop 64.0
        %v1238 = vmul.f32 64.0, %v1237
        %v1239 = vsub.f32 1.0, %v1238
        %v1240 = vmul.f32 %v1237, %v1239
        %v1241 = vadd.f32 %v1237, %v1240
        %vm1242 = vweird.f32 %v1237
        %v1243 = vsel %vm1242, %v1237, %v1241
        %v1244 = vmul.f32 %v1236, %v1243
        %v1245 = vadd.f32 %v1244, 1e-05
        %v1246 = vrsqrt.pop %v1245
        %v1247 = vmul.f32 %v1246, %v1245
        %v1248 = vmul.f32 %v1247, %v1246
        %v1249 = vmul.f32 0.5, %v1248
        %v1250 = vsub.f32 1.5, %v1249
        %v1251 = vmul.f32 %v1246, %v1250
        %vm1252 = vweird.f32 %v1245
        %vm1253 = vweird.f32 %v1246
        %vm1254 = vmor %vm1252, %vm1253
        %v1255 = vsel %vm1254, %v1246, %v1251
        %v1256 = vmul.f32 %v1232, %v1255
        %v1257 = vld [vmem:[%s11] sm:$0x1]
        %v1259 = vperm.slane %v1257, 0
        %v1261 = vmul.f32 %v1256, %v1259
        %v1262 = vpack.c.bf16 %v1261, %v1261
        %v1263 = vld [vmem:[%s12] sm:$0xf]
        %v1264 = vld [vmem:[%s12 + $0x4] sm:$0xf]
        %v1265 = vld [vmem:[%s12 + $0x8] sm:$0xf]
        %v1266 = vld [vmem:[%s12 + $0xc] sm:$0xf]
        %v1267 = vld [vmem:[%s12 + $0x10] sm:$0xf]
        %v1268 = vld [vmem:[%s12 + $0x14] sm:$0xf]
        %v1269 = vld [vmem:[%s12 + $0x18] sm:$0xf]
        %v1270 = vld [vmem:[%s12 + $0x1c] sm:$0xf]
        %v1279 = vunpack.c.l.b16 %v1263
        %v1280 = vunpack.c.l.b16 %v1264
        %v1281 = vunpack.c.l.b16 %v1265
        %v1282 = vunpack.c.l.b16 %v1266
        %v1283 = vunpack.c.l.b16 %v1267
        %v1284 = vunpack.c.l.b16 %v1268
        %v1285 = vunpack.c.l.b16 %v1269
        %v1286 = vunpack.c.l.b16 %v1270
        %v1287 = vpack.c.b16 %v1280, %v1279
        %v1288 = vpack.c.b16 %v1282, %v1281
        %v1289 = vpack.c.b16 %v1284, %v1283
        %v1290 = vpack.c.b16 %v1286, %v1285
        %v1296 = vsel %vm559, %v1262, 0
        %1298 = vmatpush.bf16.msra.mxu0 0
        %1299 = vmatpush.bf16.msra.mxu0 0
        %1300 = vmatpush.bf16.msra.mxu0 0
        %1301 = vmatpush.bf16.msra.mxu0 0
        %1302 = vmatpush.bf16.msra.mxu0 %v1290
        %1303 = vmatpush.bf16.msra.mxu0 %v1289
        %1304 = vmatpush.bf16.msra.mxu0 %v1288
        %1305 = vmatpush.bf16.msra.mxu0 %v1287
        %1306 = vmatmul.bf16.gmra.mxu0 %v1296
        %v1307 = vpop.f32.mrf.mxu0
        %v1308 = vadd.f32 0.0, %v1307
        %v1309 = vpop.f32.mrf.mxu0
        %1310 = vdwg.mxu0
        %1311 = vst.msk [vmem:[%s501] sm:$0xff] %vm542, %v1308
        %s1312 = sand.u32 %s331, 1
        %s1313 = scalar_lea.sflag [#allocation6], %s1312
        %s1314 = sand.u32 %s331, 1
        %s1315 = smul.addr %s1314, 8
        %s1316 = scalar_lea.vmem [#allocation10], %s1315
        // Predicated region
        $region89: #{tpu_custom_call.1} parent=71 // pred_check
          %p1317 = pneg %p341
        $region90: #{tpu_custom_call.1} parent=71 // pred_check_branch
          %1319 = sbr.rel (%p1317) target = $region92
        $region91: #{tpu_custom_call.1} parent=71 // pred_region
          %1321 = vsyncadd %s1313, 0
          %s1322 = sadd.s32 %s34, %s33
          %s1323 = smul.addr %s1322, 8
          %s1324 = scalar_lea.hbm %s13, %s1323
          %s1326 = sshll.u32 %s1316, 4
          %s1327 = int_to_ptr.vmem [resolvable:$true] %s1326
          %s1328 = sshll.u32 %s1324, 4
          %s1329 = int_to_ptr.hbm [resolvable:$true] %s1328
          %1331 = dma.vmem_to_hbm [thread:$0]  %s1327, 128, %s1329, %s1313
        $region92: #{tpu_custom_call.1} parent=71 // pred_fallthru
          _
      $region72: #{tpu_custom_call.1} parent=5 // pred_fallthru
        _
      %p1332 = scmp.le.s32.totalorder 2, %s24
      // Predicated region
      $region93: #{tpu_custom_call.1} parent=5 // pred_check
        %p1333 = pneg %p1332
      $region94: #{tpu_custom_call.1} parent=5 // pred_check_branch
        %1335 = sbr.rel (%p1333) target = $region96
      $region95: #{tpu_custom_call.1} parent=5 // pred_region
        %s1336 = ssub.s32 %s24, 2
        // Predicated region
        $region97: #{tpu_custom_call.1} parent=95 // pred_check
          %p1337 = pneg %p347
        $region98: #{tpu_custom_call.1} parent=95 // pred_check_branch
          %1339 = sbr.rel (%p1337) target = $region100
        $region99: #{tpu_custom_call.1} parent=95 // pred_region
          %s1340 = sand.u32 %s332, 1
          %s1341 = scalar_lea.sflag [#allocation6], %s1340
          %s1342 = sand.u32 %s332, 1
          %s1343 = smul.addr %s1342, 8
          %s1344 = scalar_lea.vmem [#allocation10], %s1343
          %1346 = dma.done %s1341, 128
        $region100: #{tpu_custom_call.1} parent=95 // pred_fallthru
          _
      $region96: #{tpu_custom_call.1} parent=5 // pred_fallthru
        _
    $region6: #{tpu_custom_call.1} parent=1 // loop_footer
      %s28 = sadd.s32 1, %s24
    $region7: #{tpu_custom_call.1} parent=1 // loop_footer_branch
      %23 = sbr.rel target = $region3
    $region8: #{tpu_custom_call.1} parent=1 // loop_exit
      _
    %1347 = vsyncpa [#allocation5], 1
    %s1348 = scalar_lea.sflag [#allocation5], 1
    %1349 = vsyncpa %s1348, 1
    %1350 = vsyncpa [#allocation8], 1
    %1351 = vsyncpa [#allocation6], 1
    %s1352 = scalar_lea.sflag [#allocation6], 1
    %1353 = vsyncpa %s1352, 1

// kernel: tpu_custom_call.1
$region0: #{tpu_custom_call.1}
  #allocation0 [shape = 'u32[]', space=smem, size = 0x4, offset = 0x4, fixed_abs, tag = 'smem constant byte address 0x4 - core index']
  #allocation1 [shape = 'u32[72,128]{1,0:T(1,128)}', space=vmem, size = 0x9000, scoped, tag = 'internal scratch']
  #allocation2 [shape = 'f32[64,128]{1,0:T(8,128)}', space=vmem, size = 0x8000, scoped, tag = 'scratch operand']
  #allocation3 [shape = 'f32[16,64]{1,0:T(8,128)}', space=vmem, size = 0x2000, scoped, tag = 'scratch operand']
  %s0 = inlined_call_operand.vmem [shape: f32[2,8,32], index: 0, kind: input, shape index: {}]
  %s1 = inlined_call_operand.hbm [shape: bf16[32,128], index: 1, kind: input, shape index: {}]
  %s2 = inlined_call_operand.vmem [shape: f32[4,64], index: 2, kind: input, shape index: {}]
  %s3 = inlined_call_operand.vmem [shape: f32[1,64], index: 3, kind: input, shape index: {}]
  %s4 = inlined_call_operand.vmem [shape: bf16[64,256], index: 4, kind: input, shape index: {}]
  %s5 = inlined_call_operand.vmem [shape: bf16[64,128], index: 5, kind: input, shape index: {}]
  %s6 = inlined_call_operand.vmem [shape: bf16[128,64], index: 6, kind: input, shape index: {}]
  %s7 = inlined_call_operand.hbm [shape: f32[1,64], index: 7, kind: input, shape index: {}]
  %s8 = inlined_call_operand.hbm [shape: bf16[64,256], index: 8, kind: input, shape index: {}]
  %s9 = inlined_call_operand.vmem [shape: f32[1,256], index: 9, kind: input, shape index: {}]
  %s10 = inlined_call_operand.vmem [shape: f32[1,64], index: 10, kind: input, shape index: {}]
  %s11 = inlined_call_operand.vmem [shape: f32[1,64], index: 11, kind: input, shape index: {}]
  %s12 = inlined_call_operand.vmem [shape: bf16[64,32], index: 12, kind: input, shape index: {}]
  %s13 = inlined_call_operand.hbm [shape: f32[2,8,32], index: 13, kind: output, shape index: {}]
  %s14 = sld [smem:[#allocation0]]
  $region101: #{tpu_custom_call.1} parent=0
    _
  %s16 = ssub.s32 1, %s14
  %s17 = scalar_select 0, %s16, %s14
  $region1: #{tpu_custom_call.1} parent=0
    #allocation4 [shape = 'u8[8192]{0}', space=vmem, size = 0x2000, scoped, tag = 'input window, operand 1, single buffered']
    #allocation5 [shape = 's32[2]{0}', space=sflag, size = 0x8, scoped, tag = 'scoped memory for tpu_custom_call.1']
    #allocation6 [shape = 's32[2]{0}', space=sflag, size = 0x8, scoped, tag = 'scoped memory for tpu_custom_call.1']
    #allocation7 [shape = 'u8[512]{0}', space=vmem, size = 0x400, scoped, tag = 'input window, operand 7, single buffered']
    #allocation8 [shape = 's32[1]{0}', space=sflag, size = 0x4, scoped, tag = 'scoped memory for tpu_custom_call.1']
    #allocation9 [shape = 'u8[32768]{0}', space=vmem, size = 0x8000, scoped, tag = 'input window, operand 8, single buffered']
    #allocation10 [shape = 'u8[8192]{0}', space=vmem, size = 0x2000, scoped, tag = 'output window, operand 0']
    %18 = vsyncpa [#allocation5], 0
    %19 = vsyncpa [#allocation8], 0
    %20 = vsyncpa [#allocation6], 0
    %s21 = scalar_lea.sflag [#allocation6], 1
    %22 = vsyncpa %s21, 0
    loop: start=0, step=1, limit=4
    $region2: #{tpu_custom_call.1} parent=1 // loop_pre_header
      _
    $region3: #{tpu_custom_call.1} parent=1 // loop_header
      %s24 = sphi 0, %s28
      %p25 = scmp.ge.s32.totalorder %s24, 4
      %s31 = sphi 0, %s43
      %s32 = sphi 0, %s39
      %s33 = sphi 0, %s31
      %s34 = sphi 0, %s32
      %s35 = sphi 0, %s33
      %s36 = sphi 0, %s34
      %s48 = sphi 0, %s50
      %s51 = sphi 0, %s48
      %s52 = sphi 0, %s51
      %s68 = sphi 0, %s52
      %s72 = sphi 0, %s72
      %s74 = sphi 0, %s72
      %s75 = sphi 0, %s74
      %s89 = sphi 0, %s75
      %s93 = sphi 0, %s93
      %s95 = sphi 0, %s93
      %s96 = sphi 0, %s95
      %s110 = sphi 0, %s96
      %s114 = sphi 0, %s114
      %s116 = sphi 0, %s114
      %s117 = sphi 0, %s116
      %s131 = sphi 0, %s117
      %s135 = sphi 0, %s135
      %s137 = sphi 0, %s135
      %s138 = sphi 0, %s137
      %s152 = sphi 0, %s138
      %s156 = sphi 0, %s156
      %s158 = sphi 0, %s156
      %s159 = sphi 0, %s158
      %s173 = sphi 0, %s159
      %s177 = sphi 0, %s177
      %s179 = sphi 0, %s177
      %s180 = sphi 0, %s179
      %s194 = sphi 0, %s180
      %s198 = sphi 0, %s198
      %s200 = sphi 0, %s198
      %s201 = sphi 0, %s200
      %s215 = sphi 0, %s201
      %s219 = sphi 0, %s219
      %s221 = sphi 0, %s219
      %s222 = sphi 0, %s221
      %s236 = sphi 0, %s222
      %s240 = sphi 0, %s240
      %s242 = sphi 0, %s240
      %s243 = sphi 0, %s242
      %s257 = sphi 0, %s243
      %s261 = sphi 0, %s261
      %s263 = sphi 0, %s261
      %s264 = sphi 0, %s263
      %s278 = sphi 0, %s264
      %s282 = sphi 0, %s282
      %s284 = sphi 0, %s282
      %s285 = sphi 0, %s284
      %s299 = sphi 0, %s285
      %s303 = sphi 0, %s303
      %s305 = sphi 0, %s303
      %s306 = sphi 0, %s305
      %s320 = sphi 0, %s306
      %s328 = sphi 0, %s330
      %s331 = sphi 0, %s328
      %s332 = sphi 0, %s331
      %s348 = sphi 0, %s332
    $region4: #{tpu_custom_call.1} parent=1 // loop_header_branch
      %27 = sbr.rel (%p25) target = $region8
    $region5: #{tpu_custom_call.1} parent=1 // loop_body
      %s29 = ssub.s32 %s24, 1
      %s30 = ssub.s32 %s24, 2
      %s37 = sadd.s32 1, %s32
      %p38 = scmp.ge.s32.totalorder %s37, 1
      %s39 = scalar_select %p38, 0, %s37
      %s40 = sadd.s32 1, %s31
      %s41 = scalar_select %p38, %s40, %s31
      %p42 = scmp.ge.s32.totalorder %s41, 2
      %s43 = scalar_select %p42, 0, %s41
      %s44 = ssub.s32 %s31, %s43
      %s45 = ssub.s32 %s32, %s39
      %s46 = sor.u32 %s44, %s45
      %p47 = scmp.eq.s32.totalorder %s46, 0
      %s49 = sadd.s32 %s48, 1
      %s50 = scalar_select %p47, %s48, %s49
      %p53 = pneg %p47
      %p54 = scmp.eq.s32.totalorder %s24, 1
      %p55 = por %p53, %p54
      %p56 = scmp.ne.s32.totalorder %s48, %s51
      %p57 = scmp.eq.s32.totalorder %s24, 0
      %p58 = por %p56, %p57
      %p59 = scmp.ne.s32.totalorder %s48, %s51
      %p60 = scmp.eq.s32.totalorder %s29, 1
      %p61 = por %p59, %p60
      %p62 = scmp.ne.s32.totalorder %s51, %s52
      %p63 = scmp.eq.s32.totalorder %s29, 0
      %p64 = por %p62, %p63
      %p65 = scmp.ne.s32.totalorder %s51, %s52
      %p66 = scmp.eq.s32.totalorder %s30, 1
      %p67 = por %p65, %p66
      %p69 = scmp.ne.s32.totalorder %s52, %s68
      %p70 = scmp.eq.s32.totalorder %s30, 0
      %p71 = por %p69, %p70
      %s73 = sadd.s32 %s72, 1
      %p76 = scmp.eq.s32.totalorder %s24, 1
      %p77 = scmp.ne.s32.totalorder %s72, %s74
      %p78 = scmp.eq.s32.totalorder %s24, 0
      %p79 = por %p77, %p78
      %p80 = scmp.ne.s32.totalorder %s72, %s74
      %p81 = scmp.eq.s32.totalorder %s29, 1
      %p82 = por %p80, %p81
      %p83 = scmp.ne.s32.totalorder %s74, %s75
      %p84 = scmp.eq.s32.totalorder %s29, 0
      %p85 = por %p83, %p84
      %p86 = scmp.ne.s32.totalorder %s74, %s75
      %p87 = scmp.eq.s32.totalorder %s30, 1
      %p88 = por %p86, %p87
      %p90 = scmp.ne.s32.totalorder %s75, %s89
      %p91 = scmp.eq.s32.totalorder %s30, 0
      %p92 = por %p90, %p91
      %s94 = sadd.s32 %s93, 1
      %p97 = scmp.eq.s32.totalorder %s24, 1
      %p98 = scmp.ne.s32.totalorder %s93, %s95
      %p99 = scmp.eq.s32.totalorder %s24, 0
      %p100 = por %p98, %p99
      %p101 = scmp.ne.s32.totalorder %s93, %s95
      %p102 = scmp.eq.s32.totalorder %s29, 1
      %p103 = por %p101, %p102
      %p104 = scmp.ne.s32.totalorder %s95, %s96
      %p105 = scmp.eq.s32.totalorder %s29, 0
      %p106 = por %p104, %p105
      %p107 = scmp.ne.s32.totalorder %s95, %s96
      %p108 = scmp.eq.s32.totalorder %s30, 1
      %p109 = por %p107, %p108
      %p111 = scmp.ne.s32.totalorder %s96, %s110
      %p112 = scmp.eq.s32.totalorder %s30, 0
      %p113 = por %p111, %p112
      %s115 = sadd.s32 %s114, 1
      %p118 = scmp.eq.s32.totalorder %s24, 1
      %p119 = scmp.ne.s32.totalorder %s114, %s116
      %p120 = scmp.eq.s32.totalorder %s24, 0
      %p121 = por %p119, %p120
      %p122 = scmp.ne.s32.totalorder %s114, %s116
      %p123 = scmp.eq.s32.totalorder %s29, 1
      %p124 = por %p122, %p123
      %p125 = scmp.ne.s32.totalorder %s116, %s117
      %p126 = scmp.eq.s32.totalorder %s29, 0
      %p127 = por %p125, %p126
      %p128 = scmp.ne.s32.totalorder %s116, %s117
      %p129 = scmp.eq.s32.totalorder %s30, 1
      %p130 = por %p128, %p129
      %p132 = scmp.ne.s32.totalorder %s117, %s131
      %p133 = scmp.eq.s32.totalorder %s30, 0
      %p134 = por %p132, %p133
      %s136 = sadd.s32 %s135, 1
      %p139 = scmp.eq.s32.totalorder %s24, 1
      %p140 = scmp.ne.s32.totalorder %s135, %s137
      %p141 = scmp.eq.s32.totalorder %s24, 0
      %p142 = por %p140, %p141
      %p143 = scmp.ne.s32.totalorder %s135, %s137
      %p144 = scmp.eq.s32.totalorder %s29, 1
      %p145 = por %p143, %p144
      %p146 = scmp.ne.s32.totalorder %s137, %s138
      %p147 = scmp.eq.s32.totalorder %s29, 0
      %p148 = por %p146, %p147
      %p149 = scmp.ne.s32.totalorder %s137, %s138
      %p150 = scmp.eq.s32.totalorder %s30, 1
      %p151 = por %p149, %p150
      %p153 = scmp.ne.s32.totalorder %s138, %s152
      %p154 = scmp.eq.s32.totalorder %s30, 0
      %p155 = por %p153, %p154
      %s157 = sadd.s32 %s156, 1
      %p160 = scmp.eq.s32.totalorder %s24, 1
      %p161 = scmp.ne.s32.totalorder %s156, %s158
      %p162 = scmp.eq.s32.totalorder %s24, 0
      %p163 = por %p161, %p162
      %p164 = scmp.ne.s32.totalorder %s156, %s158
      %p165 = scmp.eq.s32.totalorder %s29, 1
      %p166 = por %p164, %p165
      %p167 = scmp.ne.s32.totalorder %s158, %s159
      %p168 = scmp.eq.s32.totalorder %s29, 0
      %p169 = por %p167, %p168
      %p170 = scmp.ne.s32.totalorder %s158, %s159
      %p171 = scmp.eq.s32.totalorder %s30, 1
      %p172 = por %p170, %p171
      %p174 = scmp.ne.s32.totalorder %s159, %s173
      %p175 = scmp.eq.s32.totalorder %s30, 0
      %p176 = por %p174, %p175
      %s178 = sadd.s32 %s177, 1
      %p181 = scmp.eq.s32.totalorder %s24, 1
      %p182 = scmp.ne.s32.totalorder %s177, %s179
      %p183 = scmp.eq.s32.totalorder %s24, 0
      %p184 = por %p182, %p183
      %p185 = scmp.ne.s32.totalorder %s177, %s179
      %p186 = scmp.eq.s32.totalorder %s29, 1
      %p187 = por %p185, %p186
      %p188 = scmp.ne.s32.totalorder %s179, %s180
      %p189 = scmp.eq.s32.totalorder %s29, 0
      %p190 = por %p188, %p189
      %p191 = scmp.ne.s32.totalorder %s179, %s180
      %p192 = scmp.eq.s32.totalorder %s30, 1
      %p193 = por %p191, %p192
      %p195 = scmp.ne.s32.totalorder %s180, %s194
      %p196 = scmp.eq.s32.totalorder %s30, 0
      %p197 = por %p195, %p196
      %s199 = sadd.s32 %s198, 1
      %p202 = scmp.eq.s32.totalorder %s24, 1
      %p203 = scmp.ne.s32.totalorder %s198, %s200
      %p204 = scmp.eq.s32.totalorder %s24, 0
      %p205 = por %p203, %p204
      %p206 = scmp.ne.s32.totalorder %s198, %s200
      %p207 = scmp.eq.s32.totalorder %s29, 1
      %p208 = por %p206, %p207
      %p209 = scmp.ne.s32.totalorder %s200, %s201
      %p210 = scmp.eq.s32.totalorder %s29, 0
      %p211 = por %p209, %p210
      %p212 = scmp.ne.s32.totalorder %s200, %s201
      %p213 = scmp.eq.s32.totalorder %s30, 1
      %p214 = por %p212, %p213
      %p216 = scmp.ne.s32.totalorder %s201, %s215
      %p217 = scmp.eq.s32.totalorder %s30, 0
      %p218 = por %p216, %p217
      %s220 = sadd.s32 %s219, 1
      %p223 = scmp.eq.s32.totalorder %s24, 1
      %p224 = scmp.ne.s32.totalorder %s219, %s221
      %p225 = scmp.eq.s32.totalorder %s24, 0
      %p226 = por %p224, %p225
      %p227 = scmp.ne.s32.totalorder %s219, %s221
      %p228 = scmp.eq.s32.totalorder %s29, 1
      %p229 = por %p227, %p228
      %p230 = scmp.ne.s32.totalorder %s221, %s222
      %p231 = scmp.eq.s32.totalorder %s29, 0
      %p232 = por %p230, %p231
      %p233 = scmp.ne.s32.totalorder %s221, %s222
      %p234 = scmp.eq.s32.totalorder %s30, 1
      %p235 = por %p233, %p234
      %p237 = scmp.ne.s32.totalorder %s222, %s236
      %p238 = scmp.eq.s32.totalorder %s30, 0
      %p239 = por %p237, %p238
      %s241 = sadd.s32 %s240, 1
      %p244 = scmp.eq.s32.totalorder %s24, 1
      %p245 = scmp.ne.s32.totalorder %s240, %s242
      %p246 = scmp.eq.s32.totalorder %s24, 0
      %p247 = por %p245, %p246
      %p248 = scmp.ne.s32.totalorder %s240, %s242
      %p249 = scmp.eq.s32.totalorder %s29, 1
      %p250 = por %p248, %p249
      %p251 = scmp.ne.s32.totalorder %s242, %s243
      %p252 = scmp.eq.s32.totalorder %s29, 0
      %p253 = por %p251, %p252
      %p254 = scmp.ne.s32.totalorder %s242, %s243
      %p255 = scmp.eq.s32.totalorder %s30, 1
      %p256 = por %p254, %p255
      %p258 = scmp.ne.s32.totalorder %s243, %s257
      %p259 = scmp.eq.s32.totalorder %s30, 0
      %p260 = por %p258, %p259
      %s262 = sadd.s32 %s261, 1
      %p265 = scmp.eq.s32.totalorder %s24, 1
      %p266 = scmp.ne.s32.totalorder %s261, %s263
      %p267 = scmp.eq.s32.totalorder %s24, 0
      %p268 = por %p266, %p267
      %p269 = scmp.ne.s32.totalorder %s261, %s263
      %p270 = scmp.eq.s32.totalorder %s29, 1
      %p271 = por %p269, %p270
      %p272 = scmp.ne.s32.totalorder %s263, %s264
      %p273 = scmp.eq.s32.totalorder %s29, 0
      %p274 = por %p272, %p273
      %p275 = scmp.ne.s32.totalorder %s263, %s264
      %p276 = scmp.eq.s32.totalorder %s30, 1
      %p277 = por %p275, %p276
      %p279 = scmp.ne.s32.totalorder %s264, %s278
      %p280 = scmp.eq.s32.totalorder %s30, 0
      %p281 = por %p279, %p280
      %s283 = sadd.s32 %s282, 1
      %p286 = scmp.eq.s32.totalorder %s24, 1
      %p287 = scmp.ne.s32.totalorder %s282, %s284
      %p288 = scmp.eq.s32.totalorder %s24, 0
      %p289 = por %p287, %p288
      %p290 = scmp.ne.s32.totalorder %s282, %s284
      %p291 = scmp.eq.s32.totalorder %s29, 1
      %p292 = por %p290, %p291
      %p293 = scmp.ne.s32.totalorder %s284, %s285
      %p294 = scmp.eq.s32.totalorder %s29, 0
      %p295 = por %p293, %p294
      %p296 = scmp.ne.s32.totalorder %s284, %s285
      %p297 = scmp.eq.s32.totalorder %s30, 1
      %p298 = por %p296, %p297
      %p300 = scmp.ne.s32.totalorder %s285, %s299
      %p301 = scmp.eq.s32.totalorder %s30, 0
      %p302 = por %p300, %p301
      %s304 = sadd.s32 %s303, 1
      %p307 = scmp.eq.s32.totalorder %s24, 1
      %p308 = scmp.ne.s32.totalorder %s303, %s305
      %p309 = scmp.eq.s32.totalorder %s24, 0
      %p310 = por %p308, %p309
      %p311 = scmp.ne.s32.totalorder %s303, %s305
      %p312 = scmp.eq.s32.totalorder %s29, 1
      %p313 = por %p311, %p312
      %p314 = scmp.ne.s32.totalorder %s305, %s306
      %p315 = scmp.eq.s32.totalorder %s29, 0
      %p316 = por %p314, %p315
      %p317 = scmp.ne.s32.totalorder %s305, %s306
      %p318 = scmp.eq.s32.totalorder %s30, 1
      %p319 = por %p317, %p318
      %p321 = scmp.ne.s32.totalorder %s306, %s320
      %p322 = scmp.eq.s32.totalorder %s30, 0
      %p323 = por %p321, %p322
      %s324 = ssub.s32 %s31, %s43
      %s325 = ssub.s32 %s32, %s39
      %s326 = sor.u32 %s324, %s325
      %p327 = scmp.eq.s32.totalorder %s326, 0
      %s329 = sadd.s32 %s328, 1
      %s330 = scalar_select %p327, %s328, %s329
      %p333 = pneg %p327
      %p334 = scmp.eq.s32.totalorder %s24, 1
      %p335 = por %p333, %p334
      %p336 = scmp.ne.s32.totalorder %s328, %s331
      %p337 = scmp.eq.s32.totalorder %s24, 0
      %p338 = por %p336, %p337
      %p339 = scmp.ne.s32.totalorder %s328, %s331
      %p340 = scmp.eq.s32.totalorder %s29, 1
      %p341 = por %p339, %p340
      %p342 = scmp.ne.s32.totalorder %s331, %s332
      %p343 = scmp.eq.s32.totalorder %s29, 0
      %p344 = por %p342, %p343
      %p345 = scmp.ne.s32.totalorder %s331, %s332
      %p346 = scmp.eq.s32.totalorder %s30, 1
      %p347 = por %p345, %p346
      %p349 = scmp.ne.s32.totalorder %s332, %s348
      %p350 = scmp.eq.s32.totalorder %s30, 0
      %p351 = por %p349, %p350
      %p352 = scmp.le.s32.totalorder 1, %s24
      %p353 = scmp.lt.s32.totalorder %s24, 3
      %p354 = pnand %p352, %p353
      %p355 = pneg %p354
      // Predicated region
      $region9: #{tpu_custom_call.1} parent=5 // pred_check
        _
      $region10: #{tpu_custom_call.1} parent=5 // pred_check_branch
        %357 = sbr.rel (%p354) target = $region12
      $region11: #{tpu_custom_call.1} parent=5 // pred_region
        %s358 = ssub.s32 %s24, 1
        // Predicated region
        $region13: #{tpu_custom_call.1} parent=11 // pred_check
          %p359 = pneg %p85
        $region14: #{tpu_custom_call.1} parent=11 // pred_check_branch
          %361 = sbr.rel (%p359) target = $region16
        $region15: #{tpu_custom_call.1} parent=11 // pred_region
          %363 = vsyncadd [#allocation5], 0
          %s364 = sshll.u32 %s1, 4
          %s365 = int_to_ptr.hbm [resolvable:$true] %s364
          %s366 = sshll.u32 [#allocation4], 4
          %s367 = int_to_ptr.vmem [resolvable:$true] %s366
          %372 = dma.hbm_to_vmem [thread:$0]  %s365, 256, %s367, [#allocation5], 64, 64, 4
        $region16: #{tpu_custom_call.1} parent=11 // pred_fallthru
          _
        // Predicated region
        $region17: #{tpu_custom_call.1} parent=11 // pred_check
          %p373 = pneg %p106
        $region18: #{tpu_custom_call.1} parent=11 // pred_check_branch
          %375 = sbr.rel (%p373) target = $region20
        $region19: #{tpu_custom_call.1} parent=11 // pred_region
          _
        $region20: #{tpu_custom_call.1} parent=11 // pred_fallthru
          _
        // Predicated region
        $region21: #{tpu_custom_call.1} parent=11 // pred_check
          %p376 = pneg %p127
        $region22: #{tpu_custom_call.1} parent=11 // pred_check_branch
          %378 = sbr.rel (%p376) target = $region24
        $region23: #{tpu_custom_call.1} parent=11 // pred_region
          _
        $region24: #{tpu_custom_call.1} parent=11 // pred_fallthru
          _
        // Predicated region
        $region25: #{tpu_custom_call.1} parent=11 // pred_check
          %p379 = pneg %p148
        $region26: #{tpu_custom_call.1} parent=11 // pred_check_branch
          %381 = sbr.rel (%p379) target = $region28
        $region27: #{tpu_custom_call.1} parent=11 // pred_region
          _
        $region28: #{tpu_custom_call.1} parent=11 // pred_fallthru
          _
        // Predicated region
        $region29: #{tpu_custom_call.1} parent=11 // pred_check
          %p382 = pneg %p169
        $region30: #{tpu_custom_call.1} parent=11 // pred_check_branch
          %384 = sbr.rel (%p382) target = $region32
        $region31: #{tpu_custom_call.1} parent=11 // pred_region
          _
        $region32: #{tpu_custom_call.1} parent=11 // pred_fallthru
          _
        // Predicated region
        $region33: #{tpu_custom_call.1} parent=11 // pred_check
          %p385 = pneg %p190
        $region34: #{tpu_custom_call.1} parent=11 // pred_check_branch
          %387 = sbr.rel (%p385) target = $region36
        $region35: #{tpu_custom_call.1} parent=11 // pred_region
          _
        $region36: #{tpu_custom_call.1} parent=11 // pred_fallthru
          _
        // Predicated region
        $region37: #{tpu_custom_call.1} parent=11 // pred_check
          %p388 = pneg %p211
        $region38: #{tpu_custom_call.1} parent=11 // pred_check_branch
          %390 = sbr.rel (%p388) target = $region40
        $region39: #{tpu_custom_call.1} parent=11 // pred_region
          %392 = vsyncadd [#allocation8], 0
          %s394 = sshll.u32 %s7, 4
          %s395 = int_to_ptr.hbm [resolvable:$true] %s394
          %s396 = sshll.u32 [#allocation7], 4
          %s397 = int_to_ptr.vmem [resolvable:$true] %s396
          %399 = dma.hbm_to_vmem [thread:$0]  %s395, 16, %s397, [#allocation8]
        $region40: #{tpu_custom_call.1} parent=11 // pred_fallthru
          _
        // Predicated region
        $region41: #{tpu_custom_call.1} parent=11 // pred_check
          %p400 = pneg %p232
        $region42: #{tpu_custom_call.1} parent=11 // pred_check_branch
          %402 = sbr.rel (%p400) target = $region44
        $region43: #{tpu_custom_call.1} parent=11 // pred_region
          %404 = vsyncadd [#allocation8], 0
          %s405 = sshll.u32 %s8, 4
          %s406 = int_to_ptr.hbm [resolvable:$true] %s405
          %s407 = sshll.u32 [#allocation9], 4
          %s408 = int_to_ptr.vmem [resolvable:$true] %s407
          %413 = dma.hbm_to_vmem [thread:$0]  %s406, 1024, %s408, [#allocation8], 128, 128, 8
        $region44: #{tpu_custom_call.1} parent=11 // pred_fallthru
          _
        // Predicated region
        $region45: #{tpu_custom_call.1} parent=11 // pred_check
          %p414 = pneg %p253
        $region46: #{tpu_custom_call.1} parent=11 // pred_check_branch
          %416 = sbr.rel (%p414) target = $region48
        $region47: #{tpu_custom_call.1} parent=11 // pred_region
          _
        $region48: #{tpu_custom_call.1} parent=11 // pred_fallthru
          _
        // Predicated region
        $region49: #{tpu_custom_call.1} parent=11 // pred_check
          %p417 = pneg %p274
        $region50: #{tpu_custom_call.1} parent=11 // pred_check_branch
          %419 = sbr.rel (%p417) target = $region52
        $region51: #{tpu_custom_call.1} parent=11 // pred_region
          _
        $region52: #{tpu_custom_call.1} parent=11 // pred_fallthru
          _
        // Predicated region
        $region53: #{tpu_custom_call.1} parent=11 // pred_check
          %p420 = pneg %p295
        $region54: #{tpu_custom_call.1} parent=11 // pred_check_branch
          %422 = sbr.rel (%p420) target = $region56
        $region55: #{tpu_custom_call.1} parent=11 // pred_region
          _
        $region56: #{tpu_custom_call.1} parent=11 // pred_fallthru
          _
        // Predicated region
        $region57: #{tpu_custom_call.1} parent=11 // pred_check
          %p423 = pneg %p316
        $region58: #{tpu_custom_call.1} parent=11 // pred_check_branch
          %425 = sbr.rel (%p423) target = $region60
        $region59: #{tpu_custom_call.1} parent=11 // pred_region
          _
        $region60: #{tpu_custom_call.1} parent=11 // pred_fallthru
          _
      $region12: #{tpu_custom_call.1} parent=5 // pred_fallthru
        _
      %p426 = scmp.lt.s32.totalorder %s24, 2
      // Predicated region
      $region61: #{tpu_custom_call.1} parent=5 // pred_check
        %p427 = pneg %p426
      $region62: #{tpu_custom_call.1} parent=5 // pred_check_branch
        %429 = sbr.rel (%p427) target = $region64
      $region63: #{tpu_custom_call.1} parent=5 // pred_region
        // Predicated region
        $region65: #{tpu_custom_call.1} parent=63 // pred_check
          %p430 = pneg %p58
        $region66: #{tpu_custom_call.1} parent=63 // pred_check_branch
          %432 = sbr.rel (%p430) target = $region68
        $region67: #{tpu_custom_call.1} parent=63 // pred_region
          %p433 = scmp.lt.s32.totalorder %s31, 1
          %s434 = scalar_select %p433, %s31, 1
          %p435 = scmp.lt.s32.totalorder %s32, 0
          %s436 = scalar_select %p435, %s32, 0
          %s437 = sadd.s32 %s436, %s434
          %s438 = smul.addr %s437, 8
          %s439 = scalar_lea.vmem %s0, %s438
        $region68: #{tpu_custom_call.1} parent=63 // pred_fallthru
          _
      $region64: #{tpu_custom_call.1} parent=5 // pred_fallthru
        _
      %p440 = scmp.le.s32.totalorder 1, %s24
      %p441 = scmp.lt.s32.totalorder %s24, 3
      %p442 = pnand %p440, %p441
      %p443 = pneg %p442
      // Predicated region
      $region69: #{tpu_custom_call.1} parent=5 // pred_check
        _
      $region70: #{tpu_custom_call.1} parent=5 // pred_check_branch
        %445 = sbr.rel (%p442) target = $region72
      $region71: #{tpu_custom_call.1} parent=5 // pred_region
        %s446 = ssub.s32 %s24, 1
        // Predicated region
        $region73: #{tpu_custom_call.1} parent=71 // pred_check
          %p447 = pneg %p85
        $region74: #{tpu_custom_call.1} parent=71 // pred_check_branch
          %449 = sbr.rel (%p447) target = $region76
        $region75: #{tpu_custom_call.1} parent=71 // pred_region
          %451 = dma.done [#allocation5], 256
        $region76: #{tpu_custom_call.1} parent=71 // pred_fallthru
          _
        // Predicated region
        $region77: #{tpu_custom_call.1} parent=71 // pred_check
          %p452 = pneg %p211
        $region78: #{tpu_custom_call.1} parent=71 // pred_check_branch
          %454 = sbr.rel (%p452) target = $region80
        $region79: #{tpu_custom_call.1} parent=71 // pred_region
          %456 = dma.done [#allocation8], 16
        $region80: #{tpu_custom_call.1} parent=71 // pred_fallthru
          _
        // Predicated region
        $region81: #{tpu_custom_call.1} parent=71 // pred_check
          %p457 = pneg %p232
        $region82: #{tpu_custom_call.1} parent=71 // pred_check_branch
          %459 = sbr.rel (%p457) target = $region84
        $region83: #{tpu_custom_call.1} parent=71 // pred_region
          %461 = dma.done [#allocation8], 1024
        $region84: #{tpu_custom_call.1} parent=71 // pred_fallthru
          _
        %p462 = scmp.lt.s32.totalorder %s33, 1
        %s463 = scalar_select %p462, %s33, 1
        %p464 = scmp.lt.s32.totalorder %s34, 0
        %s465 = scalar_select %p464, %s34, 0
        %s466 = sadd.s32 %s465, %s463
        %s467 = smul.addr %s466, 8
        %s468 = scalar_lea.vmem %s0, %s467
        %p469 = pneg %p64
        %p470 = pneg %p61
        %p471 = pneg %p85
        %p472 = pneg %p82
        %p473 = pneg %p106
        %p474 = pneg %p103
        %p475 = pneg %p127
        %p476 = pneg %p124
        %p477 = pneg %p148
        %p478 = pneg %p145
        %p479 = pneg %p169
        %p480 = pneg %p166
        %p481 = pneg %p190
        %p482 = pneg %p187
        %p483 = pneg %p211
        %p484 = pneg %p208
        %p485 = pneg %p232
        %p486 = pneg %p229
        %p487 = pneg %p253
        %p488 = pneg %p250
        %p489 = pneg %p274
        %p490 = pneg %p271
        %p491 = pneg %p295
        %p492 = pneg %p292
        %p493 = pneg %p316
        %p494 = pneg %p313
        %p495 = pneg %p344
        %p496 = pneg %p341
        %s497 = sand.u32 %s331, 1
        %s498 = scalar_lea.sflag [#allocation6], %s497
        %s499 = sand.u32 %s331, 1
        %s500 = smul.addr %s499, 8
        %s501 = scalar_lea.vmem [#allocation10], %s500
        %p502 = scmp.lt.s32.totalorder %s33, 1
        %s503 = scalar_select %p502, %s33, 1
        %p504 = scmp.lt.s32.totalorder %s34, 0
        %s505 = scalar_select %p504, %s34, 0
        %s506 = sadd.s32 %s505, %s503
        %s507 = smul.addr %s506, 8
        %s508 = scalar_lea.vmem %s0, %s507
        %p510 = scmp.eq.s32.totalorder %s34, 0
        // Predicated region
        $region85: #{tpu_custom_call.1} parent=71 // pred_check
          %p511 = pneg %p510
        $region86: #{tpu_custom_call.1} parent=71 // pred_check_branch
          %513 = sbr.rel (%p511) target = $region88
        $region87: #{tpu_custom_call.1} parent=71 // pred_region
          %514 = vst [vmem:[#allocation2] sm:$0xff] 0.0
          %515 = vst [vmem:[#allocation2 + $0x8] sm:$0xff] 0.0
          %516 = vst [vmem:[#allocation2 + $0x10] sm:$0xff] 0.0
          %517 = vst [vmem:[#allocation2 + $0x18] sm:$0xff] 0.0
          %518 = vst [vmem:[#allocation2 + $0x20] sm:$0xff] 0.0
          %519 = vst [vmem:[#allocation2 + $0x28] sm:$0xff] 0.0
          %520 = vst [vmem:[#allocation2 + $0x30] sm:$0xff] 0.0
          %521 = vst [vmem:[#allocation2 + $0x38] sm:$0xff] 0.0
          %vm522 = vcmask 523264
          %523 = vst.msk [vmem:[#allocation3] sm:$0xff] %vm522, 0.0
        $region88: #{tpu_custom_call.1} parent=71 // pred_fallthru
          _
        %v524 = vld [vmem:[%s508] sm:$0xff]
        %v525 = vpack.c.bf16 %v524, %v524
        %v526 = vld [vmem:[#allocation4] sm:$0xf]
        %v527 = vld [vmem:[#allocation4 + $0x4] sm:$0xf]
        %v528 = vld [vmem:[#allocation4 + $0x8] sm:$0xf]
        %v529 = vld [vmem:[#allocation4 + $0xc] sm:$0xf]
        %v534 = vunpack.c.l.b16 %v526
        %v535 = vunpack.c.l.b16 %v527
        %v536 = vunpack.c.l.b16 %v528
        %v537 = vunpack.c.l.b16 %v529
        %v538 = vpack.c.b16 %v535, %v534
        %v539 = vpack.c.b16 %v537, %v536
        %vm542 = vcmask 261120
        %v544 = vsel %vm542, %v525, 0
        %546 = vmatpush.bf16.msra.mxu0 0
        %547 = vmatpush.bf16.msra.mxu0 0
        %548 = vmatpush.bf16.msra.mxu0 0
        %549 = vmatpush.bf16.msra.mxu0 0
        %550 = vmatpush.bf16.msra.mxu0 0
        %551 = vmatpush.bf16.msra.mxu0 0
        %552 = vmatpush.bf16.msra.mxu0 %v539
        %553 = vmatpush.bf16.msra.mxu0 %v538
        %554 = vmatmul.bf16.gmra.mxu0 %v544
        %v555 = vpop.f32.mrf.mxu0
        %v556 = vadd.f32 0.0, %v555
        %v557 = vpop.f32.mrf.mxu0
        %558 = vdwg.mxu0
        %vm559 = vcmask 523264
        %560 = vst.msk [vmem:[#allocation3 + $0x8] sm:$0xff] %vm559, %v556
        %v561 = vld [vmem:[%s2] sm:$0xf]
        %v562 = vld [vmem:[#allocation3 + $0x5] sm:$0xff]
        %v563 = vperm.slane %v561, 0
        %v564 = vmul.f32 %v562, %v563
        %v565 = vadd.f32 %v564, 0.0
        %v566 = vld [vmem:[#allocation3 + $0x6] sm:$0xff]
        %v567 = vperm.slane %v561, 1
        %v568 = vmul.f32 %v566, %v567
        %v569 = vadd.f32 %v565, %v568
        %v570 = vld [vmem:[#allocation3 + $0x7] sm:$0xff]
        %v571 = vperm.slane %v561, 2
        %v572 = vmul.f32 %v570, %v571
        %v573 = vadd.f32 %v569, %v572
        %v574 = vld [vmem:[#allocation3 + $0x8] sm:$0xff]
        %v575 = vperm.slane %v561, 3
        %v576 = vmul.f32 %v574, %v575
        %v577 = vadd.f32 %v573, %v576
        %v578 = vld [vmem:[%s3] sm:$0x1]
        %v580 = vperm.slane %v578, 0
        %v582 = vadd.f32 %v577, %v580
        %v583 = vxor.u32 %v582, 2147483648
        %v584 = vmul.f32 %v583, 1.442695
        %v585 = vpow.pop %v584
        %v586 = vadd.f32 %v585, 1.0
        %v587 = vrcp.pop %v586
        %v588 = vmul.f32 %v586, %v587
        %v589 = vsub.f32 1.0, %v588
        %v590 = vmul.f32 %v587, %v589
        %v591 = vadd.f32 %v587, %v590
        %vm592 = vweird.f32 %v586
        %vm593 = vweird.f32 %v587
        %vm594 = vmor %vm592, %vm593
        %v595 = vsel %vm594, %v587, %v591
        %v596 = vand.u32 2147483647, %v586
        %vm597 = vcmp.eq.f32.partialorder %v596, 8.507059e+37
        %v598 = vand.u32 %v586, 2147483648
        %v599 = vor.u32 1.1754944e-38, %v598
        %v600 = vsel %vm597, %v599, %v595
        %v601 = vmul.f32 1.0, %v600
        %v602 = vmul.f32 %v582, %v601
        %v603 = vpack.c.bf16 %v602, %v602
        %v604 = vpack.c.bf16 %v556, %v556
        %v605 = vld [vmem:[%s4] sm:$0xff]
        %v606 = vld [vmem:[%s4 + $0x8] sm:$0xff]
        %v607 = vld [vmem:[%s4 + $0x10] sm:$0xff]
        %v608 = vld [vmem:[%s4 + $0x18] sm:$0xff]
        %v609 = vld [vmem:[%s4 + $0x20] sm:$0xff]
        %v610 = vld [vmem:[%s4 + $0x28] sm:$0xff]
        %v611 = vld [vmem:[%s4 + $0x30] sm:$0xff]
        %v612 = vld [vmem:[%s4 + $0x38] sm:$0xff]
        %v621 = vunpack.c.l.b16 %v605
        %v622 = vunpack.c.h.b16 %v605
        %v623 = vunpack.c.l.b16 %v606
        %v624 = vunpack.c.h.b16 %v606
        %v625 = vunpack.c.l.b16 %v607
        %v626 = vunpack.c.h.b16 %v607
        %v627 = vunpack.c.l.b16 %v608
        %v628 = vunpack.c.h.b16 %v608
        %v629 = vunpack.c.l.b16 %v609
        %v630 = vunpack.c.h.b16 %v609
        %v631 = vunpack.c.l.b16 %v610
        %v632 = vunpack.c.h.b16 %v610
        %v633 = vunpack.c.l.b16 %v611
        %v634 = vunpack.c.h.b16 %v611
        %v635 = vunpack.c.l.b16 %v612
        %v636 = vunpack.c.h.b16 %v612
        %v637 = vpack.c.b16 %v623, %v621
        %v638 = vpack.c.b16 %v624, %v622
        %v639 = vpack.c.b16 %v627, %v625
        %v640 = vpack.c.b16 %v628, %v626
        %v641 = vpack.c.b16 %v631, %v629
        %v642 = vpack.c.b16 %v632, %v630
        %v643 = vpack.c.b16 %v635, %v633
        %v644 = vpack.c.b16 %v636, %v634
        %v654 = vsel %vm559, %v603, 0
        %656 = vmatpush.bf16.msra.mxu0 0
        %657 = vmatpush.bf16.msra.mxu0 0
        %658 = vmatpush.bf16.msra.mxu0 0
        %659 = vmatpush.bf16.msra.mxu0 0
        %660 = vmatpush.bf16.msra.mxu0 %v643
        %661 = vmatpush.bf16.msra.mxu0 %v641
        %662 = vmatpush.bf16.msra.mxu0 %v639
        %663 = vmatpush.bf16.msra.mxu0 %v637
        %664 = vmatmul.bf16.gmra.mxu0 %v654
        %v665 = vpop.f32.mrf.mxu0
        %v666 = vadd.f32 0.0, %v665
        %v667 = vpop.f32.mrf.mxu0
        %668 = vdwg.mxu0
        %669 = vmatpush.bf16.msra.mxu0 0
        %670 = vmatpush.bf16.msra.mxu0 0
        %671 = vmatpush.bf16.msra.mxu0 0
        %672 = vmatpush.bf16.msra.mxu0 0
        %673 = vmatpush.bf16.msra.mxu0 %v644
        %674 = vmatpush.bf16.msra.mxu0 %v642
        %675 = vmatpush.bf16.msra.mxu0 %v640
        %676 = vmatpush.bf16.msra.mxu0 %v638
        %677 = vmatmul.bf16.gmra.mxu0 %v654
        %v678 = vpop.f32.mrf.mxu0
        %v679 = vadd.f32 0.0, %v678
        %v680 = vpop.f32.mrf.mxu0
        %681 = vdwg.mxu0
        %v682 = vld [vmem:[%s5] sm:$0xf]
        %v683 = vld [vmem:[%s5 + $0x4] sm:$0xf]
        %v684 = vld [vmem:[%s5 + $0x8] sm:$0xf]
        %v685 = vld [vmem:[%s5 + $0xc] sm:$0xf]
        %v686 = vld [vmem:[%s5 + $0x10] sm:$0xf]
        %v687 = vld [vmem:[%s5 + $0x14] sm:$0xf]
        %v688 = vld [vmem:[%s5 + $0x18] sm:$0xf]
        %v689 = vld [vmem:[%s5 + $0x1c] sm:$0xf]
        %v698 = vunpack.c.l.b16 %v682
        %v699 = vunpack.c.l.b16 %v683
        %v700 = vunpack.c.l.b16 %v684
        %v701 = vunpack.c.l.b16 %v685
        %v702 = vunpack.c.l.b16 %v686
        %v703 = vunpack.c.l.b16 %v687
        %v704 = vunpack.c.l.b16 %v688
        %v705 = vunpack.c.l.b16 %v689
        %v706 = vpack.c.b16 %v699, %v698
        %v707 = vpack.c.b16 %v701, %v700
        %v708 = vpack.c.b16 %v703, %v702
        %v709 = vpack.c.b16 %v705, %v704
        %v715 = vsel %vm559, %v604, 0
        %717 = vmatpush.bf16.msra.mxu0 0
        %718 = vmatpush.bf16.msra.mxu0 0
        %719 = vmatpush.bf16.msra.mxu0 0
        %720 = vmatpush.bf16.msra.mxu0 0
        %721 = vmatpush.bf16.msra.mxu0 %v709
        %722 = vmatpush.bf16.msra.mxu0 %v708
        %723 = vmatpush.bf16.msra.mxu0 %v707
        %724 = vmatpush.bf16.msra.mxu0 %v706
        %725 = vmatmul.bf16.gmra.mxu0 %v715
        %v726 = vpop.f32.mrf.mxu0
        %v727 = vadd.f32 0.0, %v726
        %v728 = vpop.f32.mrf.mxu0
        %729 = vdwg.mxu0
        %v730 = vpack.c.bf16 %v727, %v727
        %v731 = vld [vmem:[%s6] sm:$0xf]
        %v732 = vld [vmem:[%s6 + $0x4] sm:$0xf]
        %v733 = vld [vmem:[%s6 + $0x8] sm:$0xf]
        %v734 = vld [vmem:[%s6 + $0xc] sm:$0xf]
        %v735 = vld [vmem:[%s6 + $0x10] sm:$0xf]
        %v736 = vld [vmem:[%s6 + $0x14] sm:$0xf]
        %v737 = vld [vmem:[%s6 + $0x18] sm:$0xf]
        %v738 = vld [vmem:[%s6 + $0x1c] sm:$0xf]
        %v739 = vld [vmem:[%s6 + $0x20] sm:$0xf]
        %v740 = vld [vmem:[%s6 + $0x24] sm:$0xf]
        %v741 = vld [vmem:[%s6 + $0x28] sm:$0xf]
        %v742 = vld [vmem:[%s6 + $0x2c] sm:$0xf]
        %v743 = vld [vmem:[%s6 + $0x30] sm:$0xf]
        %v744 = vld [vmem:[%s6 + $0x34] sm:$0xf]
        %v745 = vld [vmem:[%s6 + $0x38] sm:$0xf]
        %v746 = vld [vmem:[%s6 + $0x3c] sm:$0xf]
        %v747 = vld [vmem:[#allocation7] sm:$0x1]
        %v749 = vperm.slane %v747, 0
        %v767 = vunpack.c.l.b16 %v731
        %v768 = vunpack.c.l.b16 %v732
        %v769 = vunpack.c.l.b16 %v733
        %v770 = vunpack.c.l.b16 %v734
        %v771 = vunpack.c.l.b16 %v735
        %v772 = vunpack.c.l.b16 %v736
        %v773 = vunpack.c.l.b16 %v737
        %v774 = vunpack.c.l.b16 %v738
        %v775 = vunpack.c.l.b16 %v739
        %v776 = vunpack.c.l.b16 %v740
        %v777 = vunpack.c.l.b16 %v741
        %v778 = vunpack.c.l.b16 %v742
        %v779 = vunpack.c.l.b16 %v743
        %v780 = vunpack.c.l.b16 %v744
        %v781 = vunpack.c.l.b16 %v745
        %v782 = vunpack.c.l.b16 %v746
        %v783 = vpack.c.b16 %v768, %v767
        %v784 = vpack.c.b16 %v770, %v769
        %v785 = vpack.c.b16 %v772, %v771
        %v786 = vpack.c.b16 %v774, %v773
        %v787 = vpack.c.b16 %v776, %v775
        %v788 = vpack.c.b16 %v778, %v777
        %v789 = vpack.c.b16 %v780, %v779
        %v790 = vpack.c.b16 %v782, %v781
        %799 = vmatpush.bf16.msra.mxu0 %v790
        %800 = vmatpush.bf16.msra.mxu0 %v789
        %801 = vmatpush.bf16.msra.mxu0 %v788
        %802 = vmatpush.bf16.msra.mxu0 %v787
        %803 = vmatpush.bf16.msra.mxu0 %v786
        %804 = vmatpush.bf16.msra.mxu0 %v785
        %805 = vmatpush.bf16.msra.mxu0 %v784
        %806 = vmatpush.bf16.msra.mxu0 %v783
        %807 = vmatmul.bf16.gmra.mxu0 %v730
        %v808 = vpop.f32.mrf.mxu0
        %v809 = vadd.f32 %v749, %v808
        %v810 = vpop.f32.mrf.mxu0
        %811 = vdwg.mxu0
        %v812 = vxor.u32 %v809, 2147483648
        %v813 = vmul.f32 %v812, 1.442695
        %v814 = vpow.pop %v813
        %v815 = vadd.f32 %v814, 1.0
        %v816 = vrcp.pop %v815
        %v817 = vmul.f32 %v815, %v816
        %v818 = vsub.f32 1.0, %v817
        %v819 = vmul.f32 %v816, %v818
        %v820 = vadd.f32 %v816, %v819
        %vm821 = vweird.f32 %v815
        %vm822 = vweird.f32 %v816
        %vm823 = vmor %vm821, %vm822
        %v824 = vsel %vm823, %v816, %v820
        %v825 = vand.u32 2147483647, %v815
        %vm826 = vcmp.eq.f32.partialorder %v825, 8.507059e+37
        %v827 = vand.u32 %v815, 2147483648
        %v828 = vor.u32 1.1754944e-38, %v827
        %v829 = vsel %vm826, %v828, %v824
        %v830 = vmul.f32 1.0, %v829
        %v831 = vmul.f32 %v830, %v556
        %v832 = vpack.c.bf16 %v831, %v831
        %v833 = vld [vmem:[#allocation9] sm:$0xff]
        %v834 = vld [vmem:[#allocation9 + $0x8] sm:$0xff]
        %v835 = vld [vmem:[#allocation9 + $0x10] sm:$0xff]
        %v836 = vld [vmem:[#allocation9 + $0x18] sm:$0xff]
        %v837 = vld [vmem:[#allocation9 + $0x20] sm:$0xff]
        %v838 = vld [vmem:[#allocation9 + $0x28] sm:$0xff]
        %v839 = vld [vmem:[#allocation9 + $0x30] sm:$0xff]
        %v840 = vld [vmem:[#allocation9 + $0x38] sm:$0xff]
        %v841 = vld [vmem:[%s9] sm:$0x3]
        %v843 = vperm.slane %v841, 0
        %v844 = vperm.slane %v841, 1
        %v855 = vunpack.c.l.b16 %v833
        %v856 = vunpack.c.h.b16 %v833
        %v857 = vunpack.c.l.b16 %v834
        %v858 = vunpack.c.h.b16 %v834
        %v859 = vunpack.c.l.b16 %v835
        %v860 = vunpack.c.h.b16 %v835
        %v861 = vunpack.c.l.b16 %v836
        %v862 = vunpack.c.h.b16 %v836
        %v863 = vunpack.c.l.b16 %v837
        %v864 = vunpack.c.h.b16 %v837
        %v865 = vunpack.c.l.b16 %v838
        %v866 = vunpack.c.h.b16 %v838
        %v867 = vunpack.c.l.b16 %v839
        %v868 = vunpack.c.h.b16 %v839
        %v869 = vunpack.c.l.b16 %v840
        %v870 = vunpack.c.h.b16 %v840
        %v871 = vpack.c.b16 %v857, %v855
        %v872 = vpack.c.b16 %v858, %v856
        %v873 = vpack.c.b16 %v861, %v859
        %v874 = vpack.c.b16 %v862, %v860
        %v875 = vpack.c.b16 %v865, %v863
        %v876 = vpack.c.b16 %v866, %v864
        %v877 = vpack.c.b16 %v869, %v867
        %v878 = vpack.c.b16 %v870, %v868
        %887 = vmatpush.bf16.msra.mxu0 0
        %888 = vmatpush.bf16.msra.mxu0 0
        %889 = vmatpush.bf16.msra.mxu0 0
        %890 = vmatpush.bf16.msra.mxu0 0
        %891 = vmatpush.bf16.msra.mxu0 %v877
        %892 = vmatpush.bf16.msra.mxu0 %v875
        %893 = vmatpush.bf16.msra.mxu0 %v873
        %894 = vmatpush.bf16.msra.mxu0 %v871
        %895 = vmatmul.bf16.gmra.mxu0 %v654
        %v896 = vpop.f32.mrf.mxu0
        %v897 = vadd.f32 %v843, %v896
        %v898 = vpop.f32.mrf.mxu0
        %899 = vdwg.mxu0
        %900 = vmatpush.bf16.msra.mxu0 0
        %901 = vmatpush.bf16.msra.mxu0 0
        %902 = vmatpush.bf16.msra.mxu0 0
        %903 = vmatpush.bf16.msra.mxu0 0
        %904 = vmatpush.bf16.msra.mxu0 %v878
        %905 = vmatpush.bf16.msra.mxu0 %v876
        %906 = vmatpush.bf16.msra.mxu0 %v874
        %907 = vmatpush.bf16.msra.mxu0 %v872
        %908 = vmatmul.bf16.gmra.mxu0 %v654
        %v909 = vpop.f32.mrf.mxu0
        %v910 = vadd.f32 %v844, %v909
        %v911 = vpop.f32.mrf.mxu0
        %912 = vdwg.mxu0
        %v913 = vmax.f32 %v897, 0.0
        %vm914 = vcmp.ne.f32.partialorder %v897, %v897
        %v915 = vadd.f32 %v897, 0.0
        %v916 = vand.u32 2147483647, %v897
        %v917 = vsub.f32 0.0, %v916
        %v918 = vmul.f32 %v917, 1.442695
        %v919 = vpow.pop %v918
        %v920 = vadd.f32 %v919, 1.0
        %v921 = vlog2.pop %v920
        %v922 = vmul.f32 %v921, 0.6931472
        %v923 = vmul.f32 -0.5, %v919
        %v924 = vadd.f32 %v923, 1.0
        %v925 = vmul.f32 %v924, %v919
        %v926 = vand.u32 2147483647, %v919
        %vm927 = vcmp.lt.f32.partialorder %v926, 0.0004427343
        %v928 = vsel %vm927, %v925, %v922
        %v929 = vadd.f32 %v913, %v928
        %v930 = vsel %vm914, %v915, %v929
        %v931 = vxor.u32 %v910, 2147483648
        %v932 = vmul.f32 %v931, 1.442695
        %v933 = vpow.pop %v932
        %v934 = vadd.f32 %v933, 1.0
        %v935 = vrcp.pop %v934
        %v936 = vmul.f32 %v934, %v935
        %v937 = vsub.f32 1.0, %v936
        %v938 = vmul.f32 %v935, %v937
        %v939 = vadd.f32 %v935, %v938
        %vm940 = vweird.f32 %v934
        %vm941 = vweird.f32 %v935
        %vm942 = vmor %vm940, %vm941
        %v943 = vsel %vm942, %v935, %v939
        %v944 = vand.u32 2147483647, %v934
        %vm945 = vcmp.eq.f32.partialorder %v944, 8.507059e+37
        %v946 = vand.u32 %v934, 2147483648
        %v947 = vor.u32 1.1754944e-38, %v946
        %v948 = vsel %vm945, %v947, %v943
        %v949 = vmul.f32 1.0, %v948
        %v950 = vmax.f32 %v930, 1e-24
        %v951 = vlog2.pop %v950
        %v952 = vmul.f32 %v951, 0.6931472
        %v953 = vmul.f32 %v949, %v952
        %v954 = vmul.f32 %v953, 1.442695
        %v955 = vpow.pop %v954
        %v956 = vsub.f32 0.0, %v930
        %v957 = vmul.f32 %v956, %v949
        %v958 = vmul.f32 %v679, %v679
        %959 = vadd.xlane.f32.xlu0 %v958
        %v960 = vpop.xlane.xlu0 %959
        %v961 = vrsqrt.pop %v960
        %v962 = vmul.f32 %v961, %v960
        %v963 = vmul.f32 %v962, %v961
        %v964 = vmul.f32 0.5, %v963
        %v965 = vsub.f32 1.5, %v964
        %v966 = vmul.f32 %v961, %v965
        %v967 = vmul.f32 %v960, %v966
        %vm968 = vcmp.eq.f32.partialorder %v960, inf
        %v969 = vsel %vm968, %v960, %v967
        %vm970 = vcmp.eq.f32.partialorder %v960, 0.0
        %v971 = vand.u32 %v960, 2147483648
        %v972 = vsel %vm970, %v971, %v969
        %v973 = vmax.f32 %v972, 1e-12
        %v974 = vrcp.pop %v973
        %v975 = vmul.f32 %v973, %v974
        %v976 = vsub.f32 1.0, %v975
        %v977 = vmul.f32 %v974, %v976
        %v978 = vadd.f32 %v974, %v977
        %vm979 = vweird.f32 %v973
        %vm980 = vweird.f32 %v974
        %vm981 = vmor %vm979, %vm980
        %v982 = vsel %vm981, %v974, %v978
        %v983 = vand.u32 2147483647, %v973
        %vm984 = vcmp.eq.f32.partialorder %v983, 8.507059e+37
        %v985 = vand.u32 %v973, 2147483648
        %v986 = vor.u32 1.1754944e-38, %v985
        %v987 = vsel %vm984, %v986, %v982
        %v988 = vmul.f32 %v679, %v987
        %v989 = vmul.f32 %v988, %v955
        %v990 = vmul.f32 %v666, 0.125
        %v991 = vlaneseq
        %v992 = vshrl.u32 %v991, 7
        %v993 = vlaneseq
        %v994 = vand.u32 %v993, 127
        %vm995 = vcmp.ge.s32.totalorder %v992, %v994
        %v996 = vsel %vm995, 1, 0
        %v997 = vcvt.s32.f32 %v996
        %v998 = vld [vmem:[#allocation2] sm:$0xff]
        %v999 = vld [vmem:[#allocation2 + $0x8] sm:$0xff]
        %v1000 = vld [vmem:[#allocation2 + $0x10] sm:$0xff]
        %v1001 = vld [vmem:[#allocation2 + $0x18] sm:$0xff]
        %v1002 = vld [vmem:[#allocation2 + $0x20] sm:$0xff]
        %v1003 = vld [vmem:[#allocation2 + $0x28] sm:$0xff]
        %v1004 = vld [vmem:[#allocation2 + $0x30] sm:$0xff]
        %v1005 = vld [vmem:[#allocation2 + $0x38] sm:$0xff]
        %vm1006 = vcmask 64512
        %v1008 = vsel %vm1006, %v997, 0
        %1010 = vmatpush.msra.mxu0 0.0
        %1011 = vmatpush.msra.mxu0 0.0
        %1012 = vmatpush.msra.mxu0 0.0
        %1013 = vmatpush.msra.mxu0 0.0
        %1014 = vmatpush.msra.mxu0 0.0
        %1015 = vmatpush.msra.mxu0 0.0
        %1016 = vmatpush.msra.mxu0 0.0
        %1017 = vmatpush.msra.mxu0 0.0
        %1018 = vmatpush.msra.mxu0 0.0
        %1019 = vmatpush.msra.mxu0 0.0
        %1020 = vmatpush.msra.mxu0 0.0
        %1021 = vmatpush.msra.mxu0 0.0
        %1022 = vmatpush.msra.mxu0 0.0
        %1023 = vmatpush.msra.mxu0 0.0
        %1024 = vmatpush.msra.mxu0 0.0
        %1025 = vmatpush.msra.mxu0 %v957
        %1026 = vmatmul.f32.gmra.mxu0 %v1008
        %v1027 = vpop.f32.mrf.mxu0
        %v1028 = vadd.f32 0.0, %v1027
        %1029 = vdwg.mxu0
        %v1030 = vmul.f32 %v1028, 0.5
        %v1031 = vmul.f32 %v1030, 1.442695
        %v1032 = vpow.pop %v1031
        %v1033 = vperm.slane %v1030, 7
        %v1034 = vsub.f32 %v1028, %v1033
        %v1035 = vmax.f32 %v1034, -80.0
        %v1036 = vmin.f32 %v1035, 80.0
        %v1037 = vmul.f32 %v1036, 1.442695
        %v1038 = vpow.pop %v1037
        %v1039 = vrcp.pop %v1038
        %v1040 = vmul.f32 %v1038, %v1039
        %v1041 = vsub.f32 1.0, %v1040
        %v1042 = vmul.f32 %v1039, %v1041
        %v1043 = vadd.f32 %v1039, %v1042
        %vm1044 = vweird.f32 %v1038
        %vm1045 = vweird.f32 %v1039
        %vm1046 = vmor %vm1044, %vm1045
        %v1047 = vsel %vm1046, %v1039, %v1043
        %v1048 = vand.u32 2147483647, %v1038
        %vm1049 = vcmp.eq.f32.partialorder %v1048, 8.507059e+37
        %v1050 = vand.u32 %v1038, 2147483648
        %v1051 = vor.u32 1.1754944e-38, %v1050
        %v1052 = vsel %vm1049, %v1051, %v1047
        %v1053 = vmul.f32 %v990, %v1038
        %v1054 = vpack.c.bf16 %v1053, %v1053
        %v1055 = vmul.f32 %v989, %v1052
        %v1056 = vpack.c.bf16 %v1055, %v1055
        %v1057 = vperm.slane %v1032, 7
        %v1058 = vmul.f32 %v1038, %v1057
        %v1059 = vmul.f32 %v990, %v1058
        %v1060 = vpack.c.bf16 %v1059, %v1059
        %v1061 = vmul.f32 %v1052, %v1057
        %v1062 = vmul.f32 %v989, %v1061
        %v1063 = vpack.c.bf16 %v1062, %v1062
        %v1064 = vpack.c.bf16 %v999, %v998
        %v1065 = vpack.c.bf16 %v1001, %v1000
        %v1066 = vpack.c.bf16 %v1003, %v1002
        %v1067 = vpack.c.bf16 %v1005, %v1004
        %1068 = vmatpush.bf16.xpose.msra.mxu0 0
        %1069 = vmatpush.bf16.xpose.msra.mxu0 0
        %1070 = vmatpush.bf16.xpose.msra.mxu0 0
        %1071 = vmatpush.bf16.xpose.msra.mxu0 0
        %1072 = vmatpush.bf16.xpose.msra.mxu0 0
        %1073 = vmatpush.bf16.xpose.msra.mxu0 0
        %1074 = vmatpush.bf16.xpose.msra.mxu0 0
        %1075 = vmatpush.bf16.xpose.msra.mxu0 %v1056
        %1076 = vmatmul.bf16.gmra.mxu0 %v1054
        %v1077 = vpop.f32.mrf.mxu0
        %v1078 = vadd.f32 0.0, %v1077
        %v1079 = vpop.f32.mrf.mxu0
        %1080 = vdwg.mxu0
        %v1081 = vsel %vm995, %v1078, 0.0
        %v1082 = vpack.c.bf16 %v1081, %v1081
        %v1084 = vsel %vm1006, %v1082, 0
        %vm1086 = vcmask 1043456
        %v1088 = vsel %vm1086, %v832, 0
        %1090 = vmatpush.bf16.msra.mxu0 0
        %1091 = vmatpush.bf16.msra.mxu0 0
        %1092 = vmatpush.bf16.msra.mxu0 0
        %1093 = vmatpush.bf16.msra.mxu0 0
        %1094 = vmatpush.bf16.msra.mxu0 0
        %1095 = vmatpush.bf16.msra.mxu0 0
        %1096 = vmatpush.bf16.msra.mxu0 0
        %1097 = vmatpush.bf16.msra.mxu0 %v1088
        %1098 = vmatmul.bf16.gmra.mxu0 %v1084
        %v1099 = vpop.f32.mrf.mxu0
        %v1100 = vadd.f32 0.0, %v1099
        %v1101 = vpop.f32.mrf.mxu0
        %1102 = vdwg.mxu0
        %1103 = vmatpush.bf16.xpose.msra.mxu0 0
        %1104 = vmatpush.bf16.xpose.msra.mxu0 0
        %1105 = vmatpush.bf16.xpose.msra.mxu0 0
        %1106 = vmatpush.bf16.xpose.msra.mxu0 0
        %1107 = vmatpush.bf16.xpose.msra.mxu0 %v1067
        %1108 = vmatpush.bf16.xpose.msra.mxu0 %v1066
        %1109 = vmatpush.bf16.xpose.msra.mxu0 %v1065
        %1110 = vmatpush.bf16.xpose.msra.mxu0 %v1064
        %1111 = vmatmul.bf16.gmra.mxu0 %v1060
        %v1112 = vpop.f32.mrf.mxu0
        %v1113 = vadd.f32 %v1100, %v1112
        %v1114 = vpop.f32.mrf.mxu0
        %1115 = vdwg.mxu0
        %v1116 = vmul.f32 %v1032, %v1032
        %v1117 = vperm.slane %v1116, 7
        %v1118 = vmul.f32 %v998, %v1117
        %v1119 = vmul.f32 %v999, %v1117
        %v1120 = vmul.f32 %v1000, %v1117
        %v1121 = vmul.f32 %v1001, %v1117
        %v1122 = vmul.f32 %v1002, %v1117
        %v1123 = vmul.f32 %v1003, %v1117
        %v1124 = vmul.f32 %v1004, %v1117
        %v1125 = vmul.f32 %v1005, %v1117
        %1126 = vxpose.xlu0.c.b16.start [1/8] %v832, 128
        %1127 = vxpose.xlu0.c.b16.cont [2/8] 0, 128
        %1128 = vxpose.xlu0.c.b16.cont [3/8] 0, 128
        %1129 = vxpose.xlu0.c.b16.cont [4/8] 0, 128
        %1130 = vxpose.xlu0.c.b16.cont [5/8] 0, 128
        %1131 = vxpose.xlu0.c.b16.cont [6/8] 0, 128
        %1132 = vxpose.xlu0.c.b16.cont [7/8] 0, 128
        %1133 = vxpose.xlu0.c.b16.end [8/8] 0, 128
        %v1134 = vpop.trf.xlu0
        %v1135 = vpop.trf.xlu0
        %v1136 = vpop.trf.xlu0
        %v1137 = vpop.trf.xlu0
        %v1138 = vpop.trf.xlu0
        %v1139 = vpop.trf.xlu0
        %v1140 = vpop.trf.xlu0
        %v1141 = vpop.trf.xlu0
        %v1143 = vsel %vm1006, %v1134, 0
        %v1146 = vsel %vm1006, %v1135, 0
        %v1149 = vsel %vm1006, %v1136, 0
        %v1152 = vsel %vm1006, %v1137, 0
        %v1155 = vsel %vm1086, %v1063, 0
        %1157 = vmatpush.bf16.msra.mxu0 0
        %1158 = vmatpush.bf16.msra.mxu0 0
        %1159 = vmatpush.bf16.msra.mxu0 0
        %1160 = vmatpush.bf16.msra.mxu0 0
        %1161 = vmatpush.bf16.msra.mxu0 0
        %1162 = vmatpush.bf16.msra.mxu0 0
        %1163 = vmatpush.bf16.msra.mxu0 0
        %1164 = vmatpush.bf16.msra.mxu0 %v1155
        %1165 = vmatmul.bf16.gmra.mxu0 %v1143
        %v1166 = vpop.f32.mrf.mxu0
        %v1167 = vadd.f32 0.0, %v1166
        %v1168 = vpop.f32.mrf.mxu0
        %v1169 = vadd.f32 0.0, %v1168
        %1170 = vmatmul.bf16.gmra.mxu0 %v1146
        %v1171 = vpop.f32.mrf.mxu0
        %v1172 = vadd.f32 0.0, %v1171
        %v1173 = vpop.f32.mrf.mxu0
        %v1174 = vadd.f32 0.0, %v1173
        %1175 = vmatmul.bf16.gmra.mxu0 %v1149
        %v1176 = vpop.f32.mrf.mxu0
        %v1177 = vadd.f32 0.0, %v1176
        %v1178 = vpop.f32.mrf.mxu0
        %v1179 = vadd.f32 0.0, %v1178
        %1180 = vmatmul.bf16.gmra.mxu0 %v1152
        %v1181 = vpop.f32.mrf.mxu0
        %v1182 = vadd.f32 0.0, %v1181
        %v1183 = vpop.f32.mrf.mxu0
        %v1184 = vadd.f32 0.0, %v1183
        %1185 = vdwg.mxu0
        %v1186 = vadd.f32 %v1118, %v1167
        %v1187 = vadd.f32 %v1119, %v1169
        %v1188 = vadd.f32 %v1120, %v1172
        %v1189 = vadd.f32 %v1121, %v1174
        %v1190 = vadd.f32 %v1122, %v1177
        %v1191 = vadd.f32 %v1123, %v1179
        %v1192 = vadd.f32 %v1124, %v1182
        %v1193 = vadd.f32 %v1125, %v1184
        %1194 = vst [vmem:[#allocation2] sm:$0xff] %v1186
        %1195 = vst [vmem:[#allocation2 + $0x8] sm:$0xff] %v1187
        %1196 = vst [vmem:[#allocation2 + $0x10] sm:$0xff] %v1188
        %1197 = vst [vmem:[#allocation2 + $0x18] sm:$0xff] %v1189
        %1198 = vst [vmem:[#allocation2 + $0x20] sm:$0xff] %v1190
        %1199 = vst [vmem:[#allocation2 + $0x28] sm:$0xff] %v1191
        %1200 = vst [vmem:[#allocation2 + $0x30] sm:$0xff] %v1192
        %1201 = vst [vmem:[#allocation2 + $0x38] sm:$0xff] %v1193
        %v1202 = vld [vmem:[%s10] sm:$0x1]
        %v1204 = vperm.slane %v1202, 0
        %v1206 = vmul.f32 %v602, %v1204
        %v1207 = vadd.f32 %v1113, %v1206
        %v1208 = vxor.u32 %v556, 2147483648
        %v1209 = vmul.f32 %v1208, 1.442695
        %v1210 = vpow.pop %v1209
        %v1211 = vadd.f32 %v1210, 1.0
        %v1212 = vrcp.pop %v1211
        %v1213 = vmul.f32 %v1211, %v1212
        %v1214 = vsub.f32 1.0, %v1213
        %v1215 = vmul.f32 %v1212, %v1214
        %v1216 = vadd.f32 %v1212, %v1215
        %vm1217 = vweird.f32 %v1211
        %vm1218 = vweird.f32 %v1212
        %vm1219 = vmor %vm1217, %vm1218
        %v1220 = vsel %vm1219, %v1212, %v1216
        %v1221 = vand.u32 2147483647, %v1211
        %vm1222 = vcmp.eq.f32.partialorder %v1221, 8.507059e+37
        %v1223 = vand.u32 %v1211, 2147483648
        %v1224 = vor.u32 1.1754944e-38, %v1223
        %v1225 = vsel %vm1222, %v1224, %v1220
        %v1226 = vmul.f32 1.0, %v1225
        %v1227 = vmul.f32 %v556, %v1226
        %1229 = vrot.lane.b32.xlu0 %v1227, 64
        %v1230 = vpop.permute.xlu0 %1229
        %v1232 = vmul.f32 %v1207, %v1230
        %v1233 = vmul.f32 %v1232, %v1232
        %v1234 = vsel %vm559, %v1233, 0.0
        %1235 = vadd.xlane.f32.xlu0 %v1234
        %v1236 = vpop.xlane.xlu0 %1235
        %v1237 = vrcp.pop 64.0
        %v1238 = vmul.f32 64.0, %v1237
        %v1239 = vsub.f32 1.0, %v1238
        %v1240 = vmul.f32 %v1237, %v1239
        %v1241 = vadd.f32 %v1237, %v1240
        %vm1242 = vweird.f32 %v1237
        %v1243 = vsel %vm1242, %v1237, %v1241
        %v1244 = vmul.f32 %v1236, %v1243
        %v1245 = vadd.f32 %v1244, 1e-05
        %v1246 = vrsqrt.pop %v1245
        %v1247 = vmul.f32 %v1246, %v1245
        %v1248 = vmul.f32 %v1247, %v1246
        %v1249 = vmul.f32 0.5, %v1248
        %v1250 = vsub.f32 1.5, %v1249
        %v1251 = vmul.f32 %v1246, %v1250
        %vm1252 = vweird.f32 %v1245
        %vm1253 = vweird.f32 %v1246
        %vm1254 = vmor %vm1252, %vm1253
        %v1255 = vsel %vm1254, %v1246, %v1251
        %v1256 = vmul.f32 %v1232, %v1255
        %v1257 = vld [vmem:[%s11] sm:$0x1]
        %v1259 = vperm.slane %v1257, 0
        %v1261 = vmul.f32 %v1256, %v1259
        %v1262 = vpack.c.bf16 %v1261, %v1261
        %v1263 = vld [vmem:[%s12] sm:$0xf]
        %v1264 = vld [vmem:[%s12 + $0x4] sm:$0xf]
        %v1265 = vld [vmem:[%s12 + $0x8] sm:$0xf]
        %v1266 = vld [vmem:[%s12 + $0xc] sm:$0xf]
        %v1267 = vld [vmem:[%s12 + $0x10] sm:$0xf]
        %v1268 = vld [vmem:[%s12 + $0x14] sm:$0xf]
        %v1269 = vld [vmem:[%s12 + $0x18] sm:$0xf]
        %v1270 = vld [vmem:[%s12 + $0x1c] sm:$0xf]
        %v1279 = vunpack.c.l.b16 %v1263
        %v1280 = vunpack.c.l.b16 %v1264
        %v1281 = vunpack.c.l.b16 %v1265
        %v1282 = vunpack.c.l.b16 %v1266
        %v1283 = vunpack.c.l.b16 %v1267
        %v1284 = vunpack.c.l.b16 %v1268
        %v1285 = vunpack.c.l.b16 %v1269
        %v1286 = vunpack.c.l.b16 %v1270
        %v1287 = vpack.c.b16 %v1280, %v1279
        %v1288 = vpack.c.b16 %v1282, %v1281
        %v1289 = vpack.c.b16 %v1284, %v1283
        %v1290 = vpack.c.b16 %v1286, %v1285
        %v1296 = vsel %vm559, %v1262, 0
        %1298 = vmatpush.bf16.msra.mxu0 0
        %1299 = vmatpush.bf16.msra.mxu0 0
        %1300 = vmatpush.bf16.msra.mxu0 0
        %1301 = vmatpush.bf16.msra.mxu0 0
        %1302 = vmatpush.bf16.msra.mxu0 %v1290
        %1303 = vmatpush.bf16.msra.mxu0 %v1289
        %1304 = vmatpush.bf16.msra.mxu0 %v1288
        %1305 = vmatpush.bf16.msra.mxu0 %v1287
        %1306 = vmatmul.bf16.gmra.mxu0 %v1296
        %v1307 = vpop.f32.mrf.mxu0
        %v1308 = vadd.f32 0.0, %v1307
        %v1309 = vpop.f32.mrf.mxu0
        %1310 = vdwg.mxu0
        %1311 = vst.msk [vmem:[%s501] sm:$0xff] %vm542, %v1308
        %s1312 = sand.u32 %s331, 1
        %s1313 = scalar_lea.sflag [#allocation6], %s1312
        %s1314 = sand.u32 %s331, 1
        %s1315 = smul.addr %s1314, 8
        %s1316 = scalar_lea.vmem [#allocation10], %s1315
        // Predicated region
        $region89: #{tpu_custom_call.1} parent=71 // pred_check
          %p1317 = pneg %p341
        $region90: #{tpu_custom_call.1} parent=71 // pred_check_branch
          %1319 = sbr.rel (%p1317) target = $region92
        $region91: #{tpu_custom_call.1} parent=71 // pred_region
          %1321 = vsyncadd %s1313, 0
          %s1322 = sadd.s32 %s34, %s33
          %s1323 = smul.addr %s1322, 8
          %s1324 = scalar_lea.hbm %s13, %s1323
          %s1326 = sshll.u32 %s1316, 4
          %s1327 = int_to_ptr.vmem [resolvable:$true] %s1326
          %s1328 = sshll.u32 %s1324, 4
          %s1329 = int_to_ptr.hbm [resolvable:$true] %s1328
          %1331 = dma.vmem_to_hbm [thread:$0]  %s1327, 128, %s1329, %s1313
        $region92: #{tpu_custom_call.1} parent=71 // pred_fallthru
          _
      $region72: #{tpu_custom_call.1} parent=5 // pred_fallthru
        _
      %p1332 = scmp.le.s32.totalorder 2, %s24
      // Predicated region
      $region93: #{tpu_custom_call.1} parent=5 // pred_check
        %p1333 = pneg %p1332
      $region94: #{tpu_custom_call.1} parent=5 // pred_check_branch
        %1335 = sbr.rel (%p1333) target = $region96
      $region95: #{tpu_custom_call.1} parent=5 // pred_region
        %s1336 = ssub.s32 %s24, 2
        // Predicated region
        $region97: #{tpu_custom_call.1} parent=95 // pred_check
          %p1337 = pneg %p347
        $region98: #{tpu_custom_call.1} parent=95 // pred_check_branch
          %1339 = sbr.rel (%p1337) target = $region100
        $region99: #{tpu_custom_call.1} parent=95 // pred_region
          %s1340 = sand.u32 %s332, 1
          %s1341 = scalar_lea.sflag [#allocation6], %s1340
          %s1342 = sand.u32 %s332, 1
          %s1343 = smul.addr %s1342, 8
          %s1344 = scalar_lea.vmem [#allocation10], %s1343
          %1346 = dma.done %s1341, 128
        $region100: #{tpu_custom_call.1} parent=95 // pred_fallthru
          _
      $region96: #{tpu_custom_call.1} parent=5 // pred_fallthru
        _
    $region6: #{tpu_custom_call.1} parent=1 // loop_footer
      %s28 = sadd.s32 1, %s24
    $region7: #{tpu_custom_call.1} parent=1 // loop_footer_branch
      %23 = sbr.rel target = $region3
    $region8: #{tpu_custom_call.1} parent=1 // loop_exit
      _
    %1347 = vsyncpa [#allocation5], 1
    %s1348 = scalar_lea.sflag [#allocation5], 1
    %1349 = vsyncpa %s1348, 1
    %1350 = vsyncpa [#allocation8], 1
    %1351 = vsyncpa [#allocation6], 1
    %s1352 = scalar_lea.sflag [#allocation6], 1
    %1353 = vsyncpa %s1352, 1

</llo_original>
